<compile_context>
chip_gen: v7x
topology: tpu7x:2x2x1
jax: 0.10.0
libtpu: 0.0.40
codegen_flags: <defaults>
</compile_context>

<pallas_src>
import functools

import jax
import jax.numpy as jnp
from jax.experimental import pallas as pl
from jax.experimental.pallas import tpu as pltpu

INPUT_SIZE = 21          # len('ACDEFGHIKLMNPQRSTVWYX')
HIDDEN_SIZE = 64
EMBED = 2 * HIDDEN_SIZE  # bidirectional LSTM output width
NUM_HEADS = 8
HEAD_DIM = EMBED // NUM_HEADS

# Matmul operand dtype.  jnp.float32 keeps exact parity with the f32 PyTorch
# module (and the 3e-2 self-check below).  On v6e/v7x flip to jnp.bfloat16 for
# ~2x MXU throughput and half the weight bytes; keep f32 on v5e (no bf16 VPU
# path).  Gate math, softmax and the LSTM cell state stay f32 either way via
# preferred_element_type=f32.
MATMUL_DTYPE = jnp.float32


# ---------------------------------------------------------------------------
# Fused BiLSTM + multi-head self-attention kernel (one grid step = one batch
# block; everything fits comfortably in VMEM at these sizes).
# ---------------------------------------------------------------------------
def _fused_kernel(x_ref, wih_ref, whh_ref, bg_ref, wqkv_ref, bqkv_ref,
                  wo_ref, bo_ref, lstm_ref, ctx_ref, *,
                  seq_len, batch_block, hidden, num_heads):
    T, BB, H, NH = seq_len, batch_block, hidden, num_heads
    H2 = 2 * H               # fused fwd+bwd hidden width (= 128 lanes)
    G = 8 * H                # fused gate width (= 512 lanes)
    E = 2 * H                # attention embed dim
    HD = E // NH             # head dim
    f32 = jnp.float32
    mm = wih_ref.dtype       # matmul operand dtype

    # ------------------------------ BiLSTM --------------------------------
    # Hoisted input projection: one (BB*T, I) @ (I, 8H) MXU matmul, bias folded.
    x2 = x_ref[...].astype(mm)                                    # rows b*T + t
    xg = jnp.dot(x2, wih_ref[...], preferred_element_type=f32) + bg_ref[...]

    col = jax.lax.broadcasted_iota(jnp.int32, (1, G), 1)
    fwd_cols = (col % H2) < H         # fwd-direction columns of the gate slab
    lane = jax.lax.broadcasted_iota(jnp.int32, (1, H2), 1)
    fwd_half = lane < H               # fwd half of a (., 2H) activation row

    # Direction merge hoisted OUT of the recurrence (off the serial critical
    # path): fused-step-major slab, row s*BB + b = [fwd gates @ time s |
    # bwd gates @ time T-1-s] for batch row b.  All indices are static.
    def gather_rows(slab, row_ids):
        if list(row_ids) == list(range(slab.shape[0])):
            return slab
        return jnp.concatenate([slab[r:r + 1, :] for r in row_ids], axis=0)

    fwd_ids = [b * T + s for s in range(T) for b in range(BB)]
    bwd_ids = [b * T + (T - 1 - s) for s in range(T) for b in range(BB)]
    xg_fused = jnp.where(fwd_cols, gather_rows(xg, fwd_ids),
                         gather_rows(xg, bwd_ids))                # (T*BB, G)

    # Fused fwd/bwd recurrence, statically unrolled (T is small and fixed).
    # Packed gate order [i|f|o|g]: one sigmoid over the first 3*2H lanes and
    # one tanh over the last 2H lanes per step (2 EUP pushes instead of 4).
    whh = whh_ref[...]
    h = jnp.zeros((BB, H2), f32)      # [h_fwd | h_bwd]
    c = jnp.zeros((BB, H2), f32)      # [c_fwd | c_bwd]
    hs = []
    for s in range(T):
        gates = xg_fused[s * BB:(s + 1) * BB, :] + jnp.dot(
            h.astype(mm), whh, preferred_element_type=f32)        # (BB, 8H)
        sig = jax.nn.sigmoid(gates[:, 0:3 * H2])
        i_g = sig[:, 0:H2]
        f_g = sig[:, H2:2 * H2]
        o_g = sig[:, 2 * H2:3 * H2]
        g_g = jnp.tanh(gates[:, 3 * H2:4 * H2])
        c = f_g * c + i_g * g_g
        h = o_g * jnp.tanh(c)
        hs.append(h)

    # Vectorized epilogue: one fwd/bwd select over the whole hidden stack, then
    # a static row re-order to batch-major (free when BB == 1).
    fwd_tm = jnp.concatenate(hs, axis=0)          # row s*BB + b = hs[s][b]
    bwd_tm = jnp.concatenate(hs[::-1], axis=0)    # row s*BB + b = hs[T-1-s][b]
    merged = jnp.where(fwd_half, fwd_tm, bwd_tm)  # (T*BB, 2H)
    if BB == 1:
        act = merged                              # time-major == batch-major
    else:
        act = jnp.concatenate(
            [merged[t * BB + b:t * BB + b + 1, :]
             for b in range(BB) for t in range(T)], axis=0)       # (BB*T, 2H)
    lstm_ref[...] = act
    # dropout1 (p=0.9): identity in eval mode.

    # ---------------------- Multi-head self-attention ----------------------
    # Fused QKV projection for the whole block (1/sqrt(HD) folded into q).
    qkv = (jnp.dot(act.astype(mm), wqkv_ref[...], preferred_element_type=f32)
           + bqkv_ref[...])                                       # (BB*T, 3E)

    # All (batch row, head) score fragments stacked along sublanes so the
    # softmax (max / exp / sum / reciprocal) runs ONCE over a single slab.
    s_blocks = []
    for b in range(BB):
        r0 = b * T
        for hh in range(NH):
            c0 = hh * HD
            qh = qkv[r0:r0 + T, c0:c0 + HD]
            kh = qkv[r0:r0 + T, E + c0:E + c0 + HD]
            s_blocks.append(jax.lax.dot_general(
                qh.astype(mm), kh.astype(mm), (((1,), (1,)), ((), ())),
                preferred_element_type=f32))                      # (T, T)
    s_all = jnp.concatenate(s_blocks, axis=0)                     # (BB*NH*T, T)
    s_all = s_all - jnp.max(s_all, axis=-1, keepdims=True)
    e = jnp.exp(s_all)
    p_all = e * pl.reciprocal(jnp.sum(e, axis=-1, keepdims=True), approx=True)
    # attention dropout (p=0.5): identity in eval mode.

    # Per-head context chunks lane-concatenated into one (BB*T, E) slab, then a
    # single full-K output projection (instead of 8 K=16 accumulation matmuls).
    ctx_rows = []
    for b in range(BB):
        r0 = b * T
        chunks = []
        for hh in range(NH):
            c0 = hh * HD
            vh = qkv[r0:r0 + T, 2 * E + c0:2 * E + c0 + HD]
            p_bh = p_all[(b * NH + hh) * T:(b * NH + hh + 1) * T, :]
            chunks.append(jnp.dot(p_bh.astype(mm), vh.astype(mm),
                                  preferred_element_type=f32))    # (T, HD)
        ctx_rows.append(jnp.concatenate(chunks, axis=1))          # (T, E)
    ctx = ctx_rows[0] if BB == 1 else jnp.concatenate(ctx_rows, axis=0)
    ctx_ref[...] = (jnp.dot(ctx.astype(mm), wo_ref[...],
                            preferred_element_type=f32) + bo_ref[...])


def _default_batch_block(batch):
    """>= 2 grid steps on v7x so both TensorCores get work; 1 step elsewhere."""
    try:
        kind = jax.devices()[0].device_kind.lower()
    except Exception:
        kind = ""
    if "v7" in kind and batch > 1 and batch % 2 == 0:
        return batch // 2
    return batch


# ---------------------------------------------------------------------------
# Full forward pass:  ((Bilstm_outputs, MutilHead_output), context)
# ---------------------------------------------------------------------------
def model_forward(x, kp, *, batch_block=None):
    B, T, I = x.shape
    E = EMBED
    bb = _default_batch_block(B) if batch_block is None else batch_block
    assert B % bb == 0

    # Free, contiguity-preserving view: batch-major rows b*T + t.
    x2 = x.reshape(B * T, I).astype(jnp.float32)

    kernel = functools.partial(_fused_kernel, seq_len=T, batch_block=bb,
                               hidden=HIDDEN_SIZE, num_heads=NUM_HEADS)

    def full(arr):
        return pl.BlockSpec(arr.shape, lambda i: (0,) * arr.ndim)

    lstm2d, ctx2d = pl.pallas_call(
        kernel,
        grid=(B // bb,),
        out_shape=(jax.ShapeDtypeStruct((B * T, E), jnp.float32),
                   jax.ShapeDtypeStruct((B * T, E), jnp.float32)),
        in_specs=[pl.BlockSpec((bb * T, I), lambda i: (i, 0)),
                  full(kp['wih']), full(kp['whh']), full(kp['b']),
                  full(kp['wqkv']), full(kp['bqkv']),
                  full(kp['wo']), full(kp['bo'])],
        out_specs=(pl.BlockSpec((bb * T, E), lambda i: (i, 0)),
                   pl.BlockSpec((bb * T, E), lambda i: (i, 0))),
        compiler_params=pltpu.CompilerParams(
            dimension_semantics=("parallel",)),
    )(x2, kp['wih'], kp['whh'], kp['b'], kp['wqkv'], kp['bqkv'],
      kp['wo'], kp['bo'])

    lstm_out = lstm2d.reshape(B, T, E)      # free views of the output slabs
    context = ctx2d.reshape(B, T, E)
    return ((lstm_out, context), context)


# ---------------------------------------------------------------------------
# Parameters: generated in PyTorch layout, then packed into the kernel layout.
# ---------------------------------------------------------------------------
def init_raw_params(key):
    H, I, E = HIDDEN_SIZE, INPUT_SIZE, EMBED
    ks = jax.random.split(key, 12)

    def rnd(k, shape, s=0.2):
        return jax.random.normal(k, shape, jnp.float32) * s

    return {
        # nn.LSTM (bidirectional): weight_ih/hh (4H, in) with gate order i,f,g,o
        'w_ih_f': rnd(ks[0], (4 * H, I)), 'w_hh_f': rnd(ks[1], (4 * H, H)),
        'b_ih_f': rnd(ks[2], (4 * H,)),   'b_hh_f': rnd(ks[3], (4 * H,)),
        'w_ih_b': rnd(ks[4], (4 * H, I)), 'w_hh_b': rnd(ks[5], (4 * H, H)),
        'b_ih_b': rnd(ks[6], (4 * H,)),   'b_hh_b': rnd(ks[7], (4 * H,)),
        # nn.MultiheadAttention: in_proj (3E, E)+(3E,), out_proj (E, E)+(E,)
        'in_w': rnd(ks[8], (3 * E, E)),   'in_b': rnd(ks[9], (3 * E,)),
        'out_w': rnd(ks[10], (E, E)),     'out_b': rnd(ks[11], (E,)),
        # NOTE: cls_layer (nn.Linear(2H, num_classes)) is defined in __init__
        # but never used in forward(), so it is intentionally omitted here.
    }


def pack_params(raw):
    H, E, HD = HIDDEN_SIZE, EMBED, HEAD_DIM
    f32 = jnp.float32

    def gate(w, g):                     # g-th (H, in) gate block of (4H, in)
        return w[g * H:(g + 1) * H, :]

    # Packed gate layout [i_f i_b | f_f f_b | o_f o_b | g_f g_b]:
    #   - fwd/bwd interleaved per gate so every activation group is a 128-lane
    #     aligned slice inside the kernel,
    #   - PyTorch gate order i,f,g,o -> packed order (0,1,3,2) so the kernel can
    #     apply one sigmoid to the first 3*2H lanes and one tanh to the rest.
    bias_f = raw['b_ih_f'] + raw['b_hh_f']
    bias_b = raw['b_ih_b'] + raw['b_hh_b']
    zhh = jnp.zeros((H, H), f32)
    wih_cols, whh_cols, b_cols = [], [], []
    for g in (0, 1, 3, 2):
        wih_cols += [gate(raw['w_ih_f'], g).T, gate(raw['w_ih_b'], g).T]
        # block-diagonal: h_fwd only feeds forward gates, h_bwd only backward.
        whh_cols += [jnp.concatenate([gate(raw['w_hh_f'], g).T, zhh], axis=0),
                     jnp.concatenate([zhh, gate(raw['w_hh_b'], g).T], axis=0)]
        b_cols += [bias_f[g * H:(g + 1) * H], bias_b[g * H:(g + 1) * H]]
    wih = jnp.concatenate(wih_cols, axis=1)           # (I, 8H)
    whh = jnp.concatenate(whh_cols, axis=1)           # (2H, 8H)
    b_gates = jnp.concatenate(b_cols)[None, :]        # (1, 8H)

    # Fused QKV with the 1/sqrt(head_dim) scale folded into the query columns.
    scale = 1.0 / (HD ** 0.5)
    wq = raw['in_w'][0:E, :].T * scale
    wk = raw['in_w'][E:2 * E, :].T
    wv = raw['in_w'][2 * E:3 * E, :].T
    wqkv = jnp.concatenate([wq, wk, wv], axis=1)      # (E, 3E)
    bqkv = jnp.concatenate([raw['in_b'][0:E] * scale,
                            raw['in_b'][E:2 * E],
                            raw['in_b'][2 * E:3 * E]])[None, :]   # (1, 3E)
    wo = raw['out_w'].T                               # (E, E)
    bo = raw['out_b'][None, :]                        # (1, E)

    return {
        'wih': wih.astype(MATMUL_DTYPE), 'whh': whh.astype(MATMUL_DTYPE),
        'b': b_gates.astype(f32),
        'wqkv': wqkv.astype(MATMUL_DTYPE), 'bqkv': bqkv.astype(f32),
        'wo': wo.astype(MATMUL_DTYPE), 'bo': bo.astype(f32),
    }


# ---------------------------------------------------------------------------
# Pure-JAX (XLA) reference of the PyTorch forward, for a numerical self-check.
# ---------------------------------------------------------------------------
def _reference_forward(x, raw):
    H, E, NH = HIDDEN_SIZE, EMBED, NUM_HEADS
    B, T, _ = x.shape

    def run_dir(w_ih, w_hh, b_ih, b_hh, reverse):
        h = jnp.zeros((B, H), jnp.float32)
        c = jnp.zeros((B, H), jnp.float32)
        outs = [None] * T
        order = range(T - 1, -1, -1) if reverse else range(T)
        for t in order:
            g = x[:, t, :] @ w_ih.T + b_ih + h @ w_hh.T + b_hh
            i = jax.nn.sigmoid(g[:, 0:H])
            f = jax.nn.sigmoid(g[:, H:2 * H])
            gg = jnp.tanh(g[:, 2 * H:3 * H])
            o = jax.nn.sigmoid(g[:, 3 * H:4 * H])
            c = f * c + i * gg
            h = o * jnp.tanh(c)
            outs[t] = h
        return jnp.stack(outs, axis=1)                 # (B, T, H)

    out_f = run_dir(raw['w_ih_f'], raw['w_hh_f'], raw['b_ih_f'], raw['b_hh_f'], False)
    out_b = run_dir(raw['w_ih_b'], raw['w_hh_b'], raw['b_ih_b'], raw['b_hh_b'], True)
    lstm_out = jnp.concatenate([out_f, out_b], axis=-1)

    hd = E // NH
    qkv = lstm_out @ raw['in_w'].T + raw['in_b']       # (B, T, 3E)
    q = qkv[..., 0:E].reshape(B, T, NH, hd).transpose(0, 2, 1, 3)
    k = qkv[..., E:2 * E].reshape(B, T, NH, hd).transpose(0, 2, 1, 3)
    v = qkv[..., 2 * E:3 * E].reshape(B, T, NH, hd).transpose(0, 2, 1, 3)
    s = jnp.einsum('bhqd,bhkd->bhqk', q, k) / (hd ** 0.5)
    p = jax.nn.softmax(s, axis=-1)
    ctx = jnp.einsum('bhqk,bhkd->bhqd', p, v)
    ctx = ctx.transpose(0, 2, 1, 3).reshape(B, T, E)
    context = ctx @ raw['out_w'].T + raw['out_b']
    return lstm_out, context


if __name__ == "__main__":
    key = jax.random.PRNGKey(0)
    pkey, xkey = jax.random.split(key)
    raw = init_raw_params(pkey)
    kp = pack_params(raw)

    B, T = 2, 8
    x = jax.random.normal(xkey, (B, T, INPUT_SIZE), jnp.float32)

    fwd = jax.jit(model_forward)
    (lstm_out, mh_out), context = fwd(x, kp)
    jax.block_until_ready((lstm_out, mh_out, context))

    assert lstm_out.shape == (B, T, EMBED)
    assert mh_out.shape == (B, T, EMBED)
    assert context.shape == (B, T, EMBED)

    # Numerical self-check against the pure-JAX reference of the PyTorch module.
    ref_lstm, ref_ctx = _reference_forward(x, raw)
    err_lstm = float(jnp.max(jnp.abs(lstm_out - ref_lstm)))
    err_ctx = float(jnp.max(jnp.abs(context - ref_ctx)))
    assert err_lstm < 3e-2 and err_ctx < 3e-2, (err_lstm, err_ctx)

    print("KERNEL_OK")
</pallas_src>

<mosaic_0001>
module attributes {stable_mosaic.version = 11 : i64} {
  func.func @_fused_kernel(%arg0: i32, %arg1: memref<16x21xf32, #tpu.memory_space<vmem>>, %arg2: memref<21x512xf32, #tpu.memory_space<vmem>>, %arg3: memref<128x512xf32, #tpu.memory_space<vmem>>, %arg4: memref<1x512xf32, #tpu.memory_space<vmem>>, %arg5: memref<128x384xf32, #tpu.memory_space<vmem>>, %arg6: memref<1x384xf32, #tpu.memory_space<vmem>>, %arg7: memref<128x128xf32, #tpu.memory_space<vmem>>, %arg8: memref<1x128xf32, #tpu.memory_space<vmem>>, %arg9: memref<16x128xf32, #tpu.memory_space<vmem>>, %arg10: memref<16x128xf32, #tpu.memory_space<vmem>>) attributes {dimension_semantics = [#tpu.dimension_semantics<parallel>], iteration_bounds = array<i64: 1>, scalar_prefetch = 0 : i64, scratch_operands = 0 : i64, tpu.core_type = #tpu.core_type<tc>, window_params = [{transform_indices = @transform_0, window_bounds = array<i64: 16, 21>}, {pipeline_mode = #tpu.pipeline_mode<synchronous>, transform_indices = @transform_1, window_bounds = array<i64: 21, 512>}, {pipeline_mode = #tpu.pipeline_mode<synchronous>, transform_indices = @transform_2, window_bounds = array<i64: 128, 512>}, {pipeline_mode = #tpu.pipeline_mode<synchronous>, transform_indices = @transform_3, window_bounds = array<i64: 1, 512>}, {pipeline_mode = #tpu.pipeline_mode<synchronous>, transform_indices = @transform_4, window_bounds = array<i64: 128, 384>}, {pipeline_mode = #tpu.pipeline_mode<synchronous>, transform_indices = @transform_5, window_bounds = array<i64: 1, 384>}, {pipeline_mode = #tpu.pipeline_mode<synchronous>, transform_indices = @transform_6, window_bounds = array<i64: 128, 128>}, {pipeline_mode = #tpu.pipeline_mode<synchronous>, transform_indices = @transform_7, window_bounds = array<i64: 1, 128>}, {transform_indices = @transform_8, window_bounds = array<i64: 16, 128>}, {transform_indices = @transform_9, window_bounds = array<i64: 16, 128>}]} {
    %c0 = arith.constant 0 : index
    %c0_0 = arith.constant 0 : index
    %0 = vector.load %arg1[%c0, %c0_0] : memref<16x21xf32, #tpu.memory_space<vmem>>, vector<16x21xf32>
    %c0_1 = arith.constant 0 : index
    %c0_2 = arith.constant 0 : index
    %1 = vector.load %arg2[%c0_1, %c0_2] : memref<21x512xf32, #tpu.memory_space<vmem>>, vector<21x512xf32>
    %cst = arith.constant dense<0.000000e+00> : vector<16x512xf32>
    %2 = tpu.matmul %0, %1, %cst {dimension_numbers = #tpu.dot_dimension_numbers<[1], [0], [0], [1], [0, 0, 1, 1], [], []>} : vector<16x21xf32>, vector<21x512xf32>, vector<16x512xf32> -> vector<16x512xf32>
    %c0_3 = arith.constant 0 : index
    %c0_4 = arith.constant 0 : index
    %3 = vector.load %arg4[%c0_3, %c0_4] : memref<1x512xf32, #tpu.memory_space<vmem>>, vector<1x512xf32>
    %4 = vector.broadcast %3 : vector<1x512xf32> to vector<16x512xf32>
    %5 = arith.addf %2, %4 : vector<16x512xf32>
    %6 = tpu.iota {dimensions = array<i32: 1>} : vector<1x512xi32>
    %c128_i32 = arith.constant 128 : i32
    %c0_i32 = arith.constant 0 : i32
    %7 = arith.cmpi eq, %c128_i32, %c0_i32 : i32
    %c1_i32 = arith.constant 1 : i32
    %8 = arith.select %7, %c1_i32, %c128_i32 : i32
    %9 = vector.broadcast %8 : i32 to vector<1x512xi32>
    %10 = arith.remsi %6, %9 : vector<1x512xi32>
    %c0_i32_5 = arith.constant 0 : i32
    %11 = vector.broadcast %c0_i32_5 : i32 to vector<1x512xi32>
    %12 = arith.cmpi ne, %10, %11 : vector<1x512xi32>
    %c0_i32_6 = arith.constant 0 : i32
    %13 = vector.broadcast %c0_i32_6 : i32 to vector<1x512xi32>
    %14 = arith.cmpi slt, %10, %13 : vector<1x512xi32>
    %c0_i32_7 = arith.constant 0 : i32
    %15 = arith.cmpi slt, %8, %c0_i32_7 : i32
    %16 = vector.broadcast %15 : i1 to vector<1x512xi1>
    %17 = vector.broadcast %16 : vector<1x512xi1> to vector<1x512xi1>
    %18 = arith.xori %14, %17 : vector<1x512xi1>
    %19 = arith.andi %18, %12 : vector<1x512xi1>
    %20 = vector.broadcast %8 : i32 to vector<1x512xi32>
    %21 = arith.addi %10, %20 : vector<1x512xi32>
    %22 = arith.select %19, %21, %10 : vector<1x512xi1>, vector<1x512xi32>
    %c64_i32 = arith.constant 64 : i32
    %23 = vector.broadcast %c64_i32 : i32 to vector<1x512xi32>
    %24 = arith.cmpi slt, %22, %23 : vector<1x512xi32>
    %25 = tpu.iota {dimensions = array<i32: 1>} : vector<1x128xi32>
    %c64_i32_8 = arith.constant 64 : i32
    %26 = vector.broadcast %c64_i32_8 : i32 to vector<1x128xi32>
    %27 = arith.cmpi slt, %25, %26 : vector<1x128xi32>
    %28 = vector.extract_strided_slice %5 {offsets = [0, 0], sizes = [1, 512], strides = [1, 1]} : vector<16x512xf32> to vector<1x512xf32>
    %29 = vector.extract_strided_slice %5 {offsets = [8, 0], sizes = [1, 512], strides = [1, 1]} : vector<16x512xf32> to vector<1x512xf32>
    %30 = vector.extract_strided_slice %5 {offsets = [1, 0], sizes = [1, 512], strides = [1, 1]} : vector<16x512xf32> to vector<1x512xf32>
    %31 = vector.extract_strided_slice %5 {offsets = [9, 0], sizes = [1, 512], strides = [1, 1]} : vector<16x512xf32> to vector<1x512xf32>
    %32 = vector.extract_strided_slice %5 {offsets = [2, 0], sizes = [1, 512], strides = [1, 1]} : vector<16x512xf32> to vector<1x512xf32>
    %33 = vector.extract_strided_slice %5 {offsets = [10, 0], sizes = [1, 512], strides = [1, 1]} : vector<16x512xf32> to vector<1x512xf32>
    %34 = vector.extract_strided_slice %5 {offsets = [3, 0], sizes = [1, 512], strides = [1, 1]} : vector<16x512xf32> to vector<1x512xf32>
    %35 = vector.extract_strided_slice %5 {offsets = [11, 0], sizes = [1, 512], strides = [1, 1]} : vector<16x512xf32> to vector<1x512xf32>
    %36 = vector.extract_strided_slice %5 {offsets = [4, 0], sizes = [1, 512], strides = [1, 1]} : vector<16x512xf32> to vector<1x512xf32>
    %37 = vector.extract_strided_slice %5 {offsets = [12, 0], sizes = [1, 512], strides = [1, 1]} : vector<16x512xf32> to vector<1x512xf32>
    %38 = vector.extract_strided_slice %5 {offsets = [5, 0], sizes = [1, 512], strides = [1, 1]} : vector<16x512xf32> to vector<1x512xf32>
    %39 = vector.extract_strided_slice %5 {offsets = [13, 0], sizes = [1, 512], strides = [1, 1]} : vector<16x512xf32> to vector<1x512xf32>
    %40 = vector.extract_strided_slice %5 {offsets = [6, 0], sizes = [1, 512], strides = [1, 1]} : vector<16x512xf32> to vector<1x512xf32>
    %41 = vector.extract_strided_slice %5 {offsets = [14, 0], sizes = [1, 512], strides = [1, 1]} : vector<16x512xf32> to vector<1x512xf32>
    %42 = vector.extract_strided_slice %5 {offsets = [7, 0], sizes = [1, 512], strides = [1, 1]} : vector<16x512xf32> to vector<1x512xf32>
    %43 = vector.extract_strided_slice %5 {offsets = [15, 0], sizes = [1, 512], strides = [1, 1]} : vector<16x512xf32> to vector<1x512xf32>
    %44 = tpu.concatenate %28, %29, %30, %31, %32, %33, %34, %35, %36, %37, %38, %39, %40, %41, %42, %43 in 0 : vector<1x512xf32>, vector<1x512xf32>, vector<1x512xf32>, vector<1x512xf32>, vector<1x512xf32>, vector<1x512xf32>, vector<1x512xf32>, vector<1x512xf32>, vector<1x512xf32>, vector<1x512xf32>, vector<1x512xf32>, vector<1x512xf32>, vector<1x512xf32>, vector<1x512xf32>, vector<1x512xf32>, vector<1x512xf32> -> vector<16x512xf32>
    %45 = vector.extract_strided_slice %5 {offsets = [7, 0], sizes = [1, 512], strides = [1, 1]} : vector<16x512xf32> to vector<1x512xf32>
    %46 = vector.extract_strided_slice %5 {offsets = [15, 0], sizes = [1, 512], strides = [1, 1]} : vector<16x512xf32> to vector<1x512xf32>
    %47 = vector.extract_strided_slice %5 {offsets = [6, 0], sizes = [1, 512], strides = [1, 1]} : vector<16x512xf32> to vector<1x512xf32>
    %48 = vector.extract_strided_slice %5 {offsets = [14, 0], sizes = [1, 512], strides = [1, 1]} : vector<16x512xf32> to vector<1x512xf32>
    %49 = vector.extract_strided_slice %5 {offsets = [5, 0], sizes = [1, 512], strides = [1, 1]} : vector<16x512xf32> to vector<1x512xf32>
    %50 = vector.extract_strided_slice %5 {offsets = [13, 0], sizes = [1, 512], strides = [1, 1]} : vector<16x512xf32> to vector<1x512xf32>
    %51 = vector.extract_strided_slice %5 {offsets = [4, 0], sizes = [1, 512], strides = [1, 1]} : vector<16x512xf32> to vector<1x512xf32>
    %52 = vector.extract_strided_slice %5 {offsets = [12, 0], sizes = [1, 512], strides = [1, 1]} : vector<16x512xf32> to vector<1x512xf32>
    %53 = vector.extract_strided_slice %5 {offsets = [3, 0], sizes = [1, 512], strides = [1, 1]} : vector<16x512xf32> to vector<1x512xf32>
    %54 = vector.extract_strided_slice %5 {offsets = [11, 0], sizes = [1, 512], strides = [1, 1]} : vector<16x512xf32> to vector<1x512xf32>
    %55 = vector.extract_strided_slice %5 {offsets = [2, 0], sizes = [1, 512], strides = [1, 1]} : vector<16x512xf32> to vector<1x512xf32>
    %56 = vector.extract_strided_slice %5 {offsets = [10, 0], sizes = [1, 512], strides = [1, 1]} : vector<16x512xf32> to vector<1x512xf32>
    %57 = vector.extract_strided_slice %5 {offsets = [1, 0], sizes = [1, 512], strides = [1, 1]} : vector<16x512xf32> to vector<1x512xf32>
    %58 = vector.extract_strided_slice %5 {offsets = [9, 0], sizes = [1, 512], strides = [1, 1]} : vector<16x512xf32> to vector<1x512xf32>
    %59 = vector.extract_strided_slice %5 {offsets = [0, 0], sizes = [1, 512], strides = [1, 1]} : vector<16x512xf32> to vector<1x512xf32>
    %60 = vector.extract_strided_slice %5 {offsets = [8, 0], sizes = [1, 512], strides = [1, 1]} : vector<16x512xf32> to vector<1x512xf32>
    %61 = tpu.concatenate %45, %46, %47, %48, %49, %50, %51, %52, %53, %54, %55, %56, %57, %58, %59, %60 in 0 : vector<1x512xf32>, vector<1x512xf32>, vector<1x512xf32>, vector<1x512xf32>, vector<1x512xf32>, vector<1x512xf32>, vector<1x512xf32>, vector<1x512xf32>, vector<1x512xf32>, vector<1x512xf32>, vector<1x512xf32>, vector<1x512xf32>, vector<1x512xf32>, vector<1x512xf32>, vector<1x512xf32>, vector<1x512xf32> -> vector<16x512xf32>
    %62 = vector.shape_cast %24 : vector<1x512xi1> to vector<1x512xi1>
    %63 = vector.broadcast %62 : vector<1x512xi1> to vector<16x512xi1>
    %64 = arith.select %63, %44, %61 : vector<16x512xi1>, vector<16x512xf32>
    %c0_9 = arith.constant 0 : index
    %c0_10 = arith.constant 0 : index
    %65 = vector.load %arg3[%c0_9, %c0_10] : memref<128x512xf32, #tpu.memory_space<vmem>>, vector<128x512xf32>
    %cst_11 = arith.constant 0.000000e+00 : f32
    %66 = vector.broadcast %cst_11 : f32 to vector<2x128xf32>
    %cst_12 = arith.constant 0.000000e+00 : f32
    %67 = vector.broadcast %cst_12 : f32 to vector<2x128xf32>
    %68 = vector.extract_strided_slice %64 {offsets = [0, 0], sizes = [2, 512], strides = [1, 1]} : vector<16x512xf32> to vector<2x512xf32>
    %cst_13 = arith.constant dense<0.000000e+00> : vector<2x512xf32>
    %69 = tpu.matmul %66, %65, %cst_13 {dimension_numbers = #tpu.dot_dimension_numbers<[1], [0], [0], [1], [0, 0, 1, 1], [], []>} : vector<2x128xf32>, vector<128x512xf32>, vector<2x512xf32> -> vector<2x512xf32>
    %70 = arith.addf %68, %69 : vector<2x512xf32>
    %71 = vector.extract_strided_slice %70 {offsets = [0, 0], sizes = [2, 384], strides = [1, 1]} : vector<2x512xf32> to vector<2x384xf32>
    %72 = arith.negf %71 : vector<2x384xf32>
    %73 = math.exp %72 : vector<2x384xf32>
    %cst_14 = arith.constant 1.000000e+00 : f32
    %74 = vector.broadcast %cst_14 : f32 to vector<2x384xf32>
    %75 = arith.addf %74, %73 : vector<2x384xf32>
    %76 = arith.divf %74, %75 : vector<2x384xf32>
    %77 = vector.extract_strided_slice %76 {offsets = [0, 0], sizes = [2, 128], strides = [1, 1]} : vector<2x384xf32> to vector<2x128xf32>
    %78 = vector.extract_strided_slice %76 {offsets = [0, 128], sizes = [2, 128], strides = [1, 1]} : vector<2x384xf32> to vector<2x128xf32>
    %79 = vector.extract_strided_slice %76 {offsets = [0, 256], sizes = [2, 128], strides = [1, 1]} : vector<2x384xf32> to vector<2x128xf32>
    %80 = vector.extract_strided_slice %70 {offsets = [0, 384], sizes = [2, 128], strides = [1, 1]} : vector<2x512xf32> to vector<2x128xf32>
    %81 = math.tanh %80 : vector<2x128xf32>
    %82 = arith.mulf %78, %67 : vector<2x128xf32>
    %83 = arith.mulf %77, %81 : vector<2x128xf32>
    %84 = arith.addf %82, %83 : vector<2x128xf32>
    %85 = math.tanh %84 : vector<2x128xf32>
    %86 = arith.mulf %79, %85 : vector<2x128xf32>
    %87 = vector.extract_strided_slice %64 {offsets = [2, 0], sizes = [2, 512], strides = [1, 1]} : vector<16x512xf32> to vector<2x512xf32>
    %cst_15 = arith.constant dense<0.000000e+00> : vector<2x512xf32>
    %88 = tpu.matmul %86, %65, %cst_15 {dimension_numbers = #tpu.dot_dimension_numbers<[1], [0], [0], [1], [0, 0, 1, 1], [], []>} : vector<2x128xf32>, vector<128x512xf32>, vector<2x512xf32> -> vector<2x512xf32>
    %89 = arith.addf %87, %88 : vector<2x512xf32>
    %90 = vector.extract_strided_slice %89 {offsets = [0, 0], sizes = [2, 384], strides = [1, 1]} : vector<2x512xf32> to vector<2x384xf32>
    %91 = arith.negf %90 : vector<2x384xf32>
    %92 = math.exp %91 : vector<2x384xf32>
    %cst_16 = arith.constant 1.000000e+00 : f32
    %93 = vector.broadcast %cst_16 : f32 to vector<2x384xf32>
    %94 = arith.addf %93, %92 : vector<2x384xf32>
    %95 = arith.divf %93, %94 : vector<2x384xf32>
    %96 = vector.extract_strided_slice %95 {offsets = [0, 0], sizes = [2, 128], strides = [1, 1]} : vector<2x384xf32> to vector<2x128xf32>
    %97 = vector.extract_strided_slice %95 {offsets = [0, 128], sizes = [2, 128], strides = [1, 1]} : vector<2x384xf32> to vector<2x128xf32>
    %98 = vector.extract_strided_slice %95 {offsets = [0, 256], sizes = [2, 128], strides = [1, 1]} : vector<2x384xf32> to vector<2x128xf32>
    %99 = vector.extract_strided_slice %89 {offsets = [0, 384], sizes = [2, 128], strides = [1, 1]} : vector<2x512xf32> to vector<2x128xf32>
    %100 = math.tanh %99 : vector<2x128xf32>
    %101 = arith.mulf %97, %84 : vector<2x128xf32>
    %102 = arith.mulf %96, %100 : vector<2x128xf32>
    %103 = arith.addf %101, %102 : vector<2x128xf32>
    %104 = math.tanh %103 : vector<2x128xf32>
    %105 = arith.mulf %98, %104 : vector<2x128xf32>
    %106 = vector.extract_strided_slice %64 {offsets = [4, 0], sizes = [2, 512], strides = [1, 1]} : vector<16x512xf32> to vector<2x512xf32>
    %cst_17 = arith.constant dense<0.000000e+00> : vector<2x512xf32>
    %107 = tpu.matmul %105, %65, %cst_17 {dimension_numbers = #tpu.dot_dimension_numbers<[1], [0], [0], [1], [0, 0, 1, 1], [], []>} : vector<2x128xf32>, vector<128x512xf32>, vector<2x512xf32> -> vector<2x512xf32>
    %108 = arith.addf %106, %107 : vector<2x512xf32>
    %109 = vector.extract_strided_slice %108 {offsets = [0, 0], sizes = [2, 384], strides = [1, 1]} : vector<2x512xf32> to vector<2x384xf32>
    %110 = arith.negf %109 : vector<2x384xf32>
    %111 = math.exp %110 : vector<2x384xf32>
    %cst_18 = arith.constant 1.000000e+00 : f32
    %112 = vector.broadcast %cst_18 : f32 to vector<2x384xf32>
    %113 = arith.addf %112, %111 : vector<2x384xf32>
    %114 = arith.divf %112, %113 : vector<2x384xf32>
    %115 = vector.extract_strided_slice %114 {offsets = [0, 0], sizes = [2, 128], strides = [1, 1]} : vector<2x384xf32> to vector<2x128xf32>
    %116 = vector.extract_strided_slice %114 {offsets = [0, 128], sizes = [2, 128], strides = [1, 1]} : vector<2x384xf32> to vector<2x128xf32>
    %117 = vector.extract_strided_slice %114 {offsets = [0, 256], sizes = [2, 128], strides = [1, 1]} : vector<2x384xf32> to vector<2x128xf32>
    %118 = vector.extract_strided_slice %108 {offsets = [0, 384], sizes = [2, 128], strides = [1, 1]} : vector<2x512xf32> to vector<2x128xf32>
    %119 = math.tanh %118 : vector<2x128xf32>
    %120 = arith.mulf %116, %103 : vector<2x128xf32>
    %121 = arith.mulf %115, %119 : vector<2x128xf32>
    %122 = arith.addf %120, %121 : vector<2x128xf32>
    %123 = math.tanh %122 : vector<2x128xf32>
    %124 = arith.mulf %117, %123 : vector<2x128xf32>
    %125 = vector.extract_strided_slice %64 {offsets = [6, 0], sizes = [2, 512], strides = [1, 1]} : vector<16x512xf32> to vector<2x512xf32>
    %cst_19 = arith.constant dense<0.000000e+00> : vector<2x512xf32>
    %126 = tpu.matmul %124, %65, %cst_19 {dimension_numbers = #tpu.dot_dimension_numbers<[1], [0], [0], [1], [0, 0, 1, 1], [], []>} : vector<2x128xf32>, vector<128x512xf32>, vector<2x512xf32> -> vector<2x512xf32>
    %127 = arith.addf %125, %126 : vector<2x512xf32>
    %128 = vector.extract_strided_slice %127 {offsets = [0, 0], sizes = [2, 384], strides = [1, 1]} : vector<2x512xf32> to vector<2x384xf32>
    %129 = arith.negf %128 : vector<2x384xf32>
    %130 = math.exp %129 : vector<2x384xf32>
    %cst_20 = arith.constant 1.000000e+00 : f32
    %131 = vector.broadcast %cst_20 : f32 to vector<2x384xf32>
    %132 = arith.addf %131, %130 : vector<2x384xf32>
    %133 = arith.divf %131, %132 : vector<2x384xf32>
    %134 = vector.extract_strided_slice %133 {offsets = [0, 0], sizes = [2, 128], strides = [1, 1]} : vector<2x384xf32> to vector<2x128xf32>
    %135 = vector.extract_strided_slice %133 {offsets = [0, 128], sizes = [2, 128], strides = [1, 1]} : vector<2x384xf32> to vector<2x128xf32>
    %136 = vector.extract_strided_slice %133 {offsets = [0, 256], sizes = [2, 128], strides = [1, 1]} : vector<2x384xf32> to vector<2x128xf32>
    %137 = vector.extract_strided_slice %127 {offsets = [0, 384], sizes = [2, 128], strides = [1, 1]} : vector<2x512xf32> to vector<2x128xf32>
    %138 = math.tanh %137 : vector<2x128xf32>
    %139 = arith.mulf %135, %122 : vector<2x128xf32>
    %140 = arith.mulf %134, %138 : vector<2x128xf32>
    %141 = arith.addf %139, %140 : vector<2x128xf32>
    %142 = math.tanh %141 : vector<2x128xf32>
    %143 = arith.mulf %136, %142 : vector<2x128xf32>
    %144 = vector.extract_strided_slice %64 {offsets = [8, 0], sizes = [2, 512], strides = [1, 1]} : vector<16x512xf32> to vector<2x512xf32>
    %cst_21 = arith.constant dense<0.000000e+00> : vector<2x512xf32>
    %145 = tpu.matmul %143, %65, %cst_21 {dimension_numbers = #tpu.dot_dimension_numbers<[1], [0], [0], [1], [0, 0, 1, 1], [], []>} : vector<2x128xf32>, vector<128x512xf32>, vector<2x512xf32> -> vector<2x512xf32>
    %146 = arith.addf %144, %145 : vector<2x512xf32>
    %147 = vector.extract_strided_slice %146 {offsets = [0, 0], sizes = [2, 384], strides = [1, 1]} : vector<2x512xf32> to vector<2x384xf32>
    %148 = arith.negf %147 : vector<2x384xf32>
    %149 = math.exp %148 : vector<2x384xf32>
    %cst_22 = arith.constant 1.000000e+00 : f32
    %150 = vector.broadcast %cst_22 : f32 to vector<2x384xf32>
    %151 = arith.addf %150, %149 : vector<2x384xf32>
    %152 = arith.divf %150, %151 : vector<2x384xf32>
    %153 = vector.extract_strided_slice %152 {offsets = [0, 0], sizes = [2, 128], strides = [1, 1]} : vector<2x384xf32> to vector<2x128xf32>
    %154 = vector.extract_strided_slice %152 {offsets = [0, 128], sizes = [2, 128], strides = [1, 1]} : vector<2x384xf32> to vector<2x128xf32>
    %155 = vector.extract_strided_slice %152 {offsets = [0, 256], sizes = [2, 128], strides = [1, 1]} : vector<2x384xf32> to vector<2x128xf32>
    %156 = vector.extract_strided_slice %146 {offsets = [0, 384], sizes = [2, 128], strides = [1, 1]} : vector<2x512xf32> to vector<2x128xf32>
    %157 = math.tanh %156 : vector<2x128xf32>
    %158 = arith.mulf %154, %141 : vector<2x128xf32>
    %159 = arith.mulf %153, %157 : vector<2x128xf32>
    %160 = arith.addf %158, %159 : vector<2x128xf32>
    %161 = math.tanh %160 : vector<2x128xf32>
    %162 = arith.mulf %155, %161 : vector<2x128xf32>
    %163 = vector.extract_strided_slice %64 {offsets = [10, 0], sizes = [2, 512], strides = [1, 1]} : vector<16x512xf32> to vector<2x512xf32>
    %cst_23 = arith.constant dense<0.000000e+00> : vector<2x512xf32>
    %164 = tpu.matmul %162, %65, %cst_23 {dimension_numbers = #tpu.dot_dimension_numbers<[1], [0], [0], [1], [0, 0, 1, 1], [], []>} : vector<2x128xf32>, vector<128x512xf32>, vector<2x512xf32> -> vector<2x512xf32>
    %165 = arith.addf %163, %164 : vector<2x512xf32>
    %166 = vector.extract_strided_slice %165 {offsets = [0, 0], sizes = [2, 384], strides = [1, 1]} : vector<2x512xf32> to vector<2x384xf32>
    %167 = arith.negf %166 : vector<2x384xf32>
    %168 = math.exp %167 : vector<2x384xf32>
    %cst_24 = arith.constant 1.000000e+00 : f32
    %169 = vector.broadcast %cst_24 : f32 to vector<2x384xf32>
    %170 = arith.addf %169, %168 : vector<2x384xf32>
    %171 = arith.divf %169, %170 : vector<2x384xf32>
    %172 = vector.extract_strided_slice %171 {offsets = [0, 0], sizes = [2, 128], strides = [1, 1]} : vector<2x384xf32> to vector<2x128xf32>
    %173 = vector.extract_strided_slice %171 {offsets = [0, 128], sizes = [2, 128], strides = [1, 1]} : vector<2x384xf32> to vector<2x128xf32>
    %174 = vector.extract_strided_slice %171 {offsets = [0, 256], sizes = [2, 128], strides = [1, 1]} : vector<2x384xf32> to vector<2x128xf32>
    %175 = vector.extract_strided_slice %165 {offsets = [0, 384], sizes = [2, 128], strides = [1, 1]} : vector<2x512xf32> to vector<2x128xf32>
    %176 = math.tanh %175 : vector<2x128xf32>
    %177 = arith.mulf %173, %160 : vector<2x128xf32>
    %178 = arith.mulf %172, %176 : vector<2x128xf32>
    %179 = arith.addf %177, %178 : vector<2x128xf32>
    %180 = math.tanh %179 : vector<2x128xf32>
    %181 = arith.mulf %174, %180 : vector<2x128xf32>
    %182 = vector.extract_strided_slice %64 {offsets = [12, 0], sizes = [2, 512], strides = [1, 1]} : vector<16x512xf32> to vector<2x512xf32>
    %cst_25 = arith.constant dense<0.000000e+00> : vector<2x512xf32>
    %183 = tpu.matmul %181, %65, %cst_25 {dimension_numbers = #tpu.dot_dimension_numbers<[1], [0], [0], [1], [0, 0, 1, 1], [], []>} : vector<2x128xf32>, vector<128x512xf32>, vector<2x512xf32> -> vector<2x512xf32>
    %184 = arith.addf %182, %183 : vector<2x512xf32>
    %185 = vector.extract_strided_slice %184 {offsets = [0, 0], sizes = [2, 384], strides = [1, 1]} : vector<2x512xf32> to vector<2x384xf32>
    %186 = arith.negf %185 : vector<2x384xf32>
    %187 = math.exp %186 : vector<2x384xf32>
    %cst_26 = arith.constant 1.000000e+00 : f32
    %188 = vector.broadcast %cst_26 : f32 to vector<2x384xf32>
    %189 = arith.addf %188, %187 : vector<2x384xf32>
    %190 = arith.divf %188, %189 : vector<2x384xf32>
    %191 = vector.extract_strided_slice %190 {offsets = [0, 0], sizes = [2, 128], strides = [1, 1]} : vector<2x384xf32> to vector<2x128xf32>
    %192 = vector.extract_strided_slice %190 {offsets = [0, 128], sizes = [2, 128], strides = [1, 1]} : vector<2x384xf32> to vector<2x128xf32>
    %193 = vector.extract_strided_slice %190 {offsets = [0, 256], sizes = [2, 128], strides = [1, 1]} : vector<2x384xf32> to vector<2x128xf32>
    %194 = vector.extract_strided_slice %184 {offsets = [0, 384], sizes = [2, 128], strides = [1, 1]} : vector<2x512xf32> to vector<2x128xf32>
    %195 = math.tanh %194 : vector<2x128xf32>
    %196 = arith.mulf %192, %179 : vector<2x128xf32>
    %197 = arith.mulf %191, %195 : vector<2x128xf32>
    %198 = arith.addf %196, %197 : vector<2x128xf32>
    %199 = math.tanh %198 : vector<2x128xf32>
    %200 = arith.mulf %193, %199 : vector<2x128xf32>
    %201 = vector.extract_strided_slice %64 {offsets = [14, 0], sizes = [2, 512], strides = [1, 1]} : vector<16x512xf32> to vector<2x512xf32>
    %cst_27 = arith.constant dense<0.000000e+00> : vector<2x512xf32>
    %202 = tpu.matmul %200, %65, %cst_27 {dimension_numbers = #tpu.dot_dimension_numbers<[1], [0], [0], [1], [0, 0, 1, 1], [], []>} : vector<2x128xf32>, vector<128x512xf32>, vector<2x512xf32> -> vector<2x512xf32>
    %203 = arith.addf %201, %202 : vector<2x512xf32>
    %204 = vector.extract_strided_slice %203 {offsets = [0, 0], sizes = [2, 384], strides = [1, 1]} : vector<2x512xf32> to vector<2x384xf32>
    %205 = arith.negf %204 : vector<2x384xf32>
    %206 = math.exp %205 : vector<2x384xf32>
    %cst_28 = arith.constant 1.000000e+00 : f32
    %207 = vector.broadcast %cst_28 : f32 to vector<2x384xf32>
    %208 = arith.addf %207, %206 : vector<2x384xf32>
    %209 = arith.divf %207, %208 : vector<2x384xf32>
    %210 = vector.extract_strided_slice %209 {offsets = [0, 0], sizes = [2, 128], strides = [1, 1]} : vector<2x384xf32> to vector<2x128xf32>
    %211 = vector.extract_strided_slice %209 {offsets = [0, 128], sizes = [2, 128], strides = [1, 1]} : vector<2x384xf32> to vector<2x128xf32>
    %212 = vector.extract_strided_slice %209 {offsets = [0, 256], sizes = [2, 128], strides = [1, 1]} : vector<2x384xf32> to vector<2x128xf32>
    %213 = vector.extract_strided_slice %203 {offsets = [0, 384], sizes = [2, 128], strides = [1, 1]} : vector<2x512xf32> to vector<2x128xf32>
    %214 = math.tanh %213 : vector<2x128xf32>
    %215 = arith.mulf %211, %198 : vector<2x128xf32>
    %216 = arith.mulf %210, %214 : vector<2x128xf32>
    %217 = arith.addf %215, %216 : vector<2x128xf32>
    %218 = math.tanh %217 : vector<2x128xf32>
    %219 = arith.mulf %212, %218 : vector<2x128xf32>
    %220 = tpu.concatenate %86, %105, %124, %143, %162, %181, %200, %219 in 0 : vector<2x128xf32>, vector<2x128xf32>, vector<2x128xf32>, vector<2x128xf32>, vector<2x128xf32>, vector<2x128xf32>, vector<2x128xf32>, vector<2x128xf32> -> vector<16x128xf32>
    %221 = tpu.concatenate %219, %200, %181, %162, %143, %124, %105, %86 in 0 : vector<2x128xf32>, vector<2x128xf32>, vector<2x128xf32>, vector<2x128xf32>, vector<2x128xf32>, vector<2x128xf32>, vector<2x128xf32>, vector<2x128xf32> -> vector<16x128xf32>
    %222 = vector.shape_cast %27 : vector<1x128xi1> to vector<1x128xi1>
    %223 = vector.broadcast %222 : vector<1x128xi1> to vector<16x128xi1>
    %224 = arith.select %223, %220, %221 : vector<16x128xi1>, vector<16x128xf32>
    %225 = vector.extract_strided_slice %224 {offsets = [0, 0], sizes = [1, 128], strides = [1, 1]} : vector<16x128xf32> to vector<1x128xf32>
    %226 = vector.extract_strided_slice %224 {offsets = [2, 0], sizes = [1, 128], strides = [1, 1]} : vector<16x128xf32> to vector<1x128xf32>
    %227 = vector.extract_strided_slice %224 {offsets = [4, 0], sizes = [1, 128], strides = [1, 1]} : vector<16x128xf32> to vector<1x128xf32>
    %228 = vector.extract_strided_slice %224 {offsets = [6, 0], sizes = [1, 128], strides = [1, 1]} : vector<16x128xf32> to vector<1x128xf32>
    %229 = vector.extract_strided_slice %224 {offsets = [8, 0], sizes = [1, 128], strides = [1, 1]} : vector<16x128xf32> to vector<1x128xf32>
    %230 = vector.extract_strided_slice %224 {offsets = [10, 0], sizes = [1, 128], strides = [1, 1]} : vector<16x128xf32> to vector<1x128xf32>
    %231 = vector.extract_strided_slice %224 {offsets = [12, 0], sizes = [1, 128], strides = [1, 1]} : vector<16x128xf32> to vector<1x128xf32>
    %232 = vector.extract_strided_slice %224 {offsets = [14, 0], sizes = [1, 128], strides = [1, 1]} : vector<16x128xf32> to vector<1x128xf32>
    %233 = vector.extract_strided_slice %224 {offsets = [1, 0], sizes = [1, 128], strides = [1, 1]} : vector<16x128xf32> to vector<1x128xf32>
    %234 = vector.extract_strided_slice %224 {offsets = [3, 0], sizes = [1, 128], strides = [1, 1]} : vector<16x128xf32> to vector<1x128xf32>
    %235 = vector.extract_strided_slice %224 {offsets = [5, 0], sizes = [1, 128], strides = [1, 1]} : vector<16x128xf32> to vector<1x128xf32>
    %236 = vector.extract_strided_slice %224 {offsets = [7, 0], sizes = [1, 128], strides = [1, 1]} : vector<16x128xf32> to vector<1x128xf32>
    %237 = vector.extract_strided_slice %224 {offsets = [9, 0], sizes = [1, 128], strides = [1, 1]} : vector<16x128xf32> to vector<1x128xf32>
    %238 = vector.extract_strided_slice %224 {offsets = [11, 0], sizes = [1, 128], strides = [1, 1]} : vector<16x128xf32> to vector<1x128xf32>
    %239 = vector.extract_strided_slice %224 {offsets = [13, 0], sizes = [1, 128], strides = [1, 1]} : vector<16x128xf32> to vector<1x128xf32>
    %240 = vector.extract_strided_slice %224 {offsets = [15, 0], sizes = [1, 128], strides = [1, 1]} : vector<16x128xf32> to vector<1x128xf32>
    %241 = tpu.concatenate %225, %226, %227, %228, %229, %230, %231, %232, %233, %234, %235, %236, %237, %238, %239, %240 in 0 : vector<1x128xf32>, vector<1x128xf32>, vector<1x128xf32>, vector<1x128xf32>, vector<1x128xf32>, vector<1x128xf32>, vector<1x128xf32>, vector<1x128xf32>, vector<1x128xf32>, vector<1x128xf32>, vector<1x128xf32>, vector<1x128xf32>, vector<1x128xf32>, vector<1x128xf32>, vector<1x128xf32>, vector<1x128xf32> -> vector<16x128xf32>
    %c0_29 = arith.constant 0 : index
    %c0_30 = arith.constant 0 : index
    %242 = vector.load %arg9[%c0_29, %c0_30] : memref<16x128xf32, #tpu.memory_space<vmem>>, vector<16x128xf32>
    tpu.vector_store %arg9[%c0_29, %c0_30], %241 {strides = array<i32>} : memref<16x128xf32, #tpu.memory_space<vmem>>, vector<16x128xf32>,
    %c0_31 = arith.constant 0 : index
    %c0_32 = arith.constant 0 : index
    %243 = vector.load %arg5[%c0_31, %c0_32] : memref<128x384xf32, #tpu.memory_space<vmem>>, vector<128x384xf32>
    %cst_33 = arith.constant dense<0.000000e+00> : vector<16x384xf32>
    %244 = tpu.matmul %241, %243, %cst_33 {dimension_numbers = #tpu.dot_dimension_numbers<[1], [0], [0], [1], [0, 0, 1, 1], [], []>} : vector<16x128xf32>, vector<128x384xf32>, vector<16x384xf32> -> vector<16x384xf32>
    %c0_34 = arith.constant 0 : index
    %c0_35 = arith.constant 0 : index
    %245 = vector.load %arg6[%c0_34, %c0_35] : memref<1x384xf32, #tpu.memory_space<vmem>>, vector<1x384xf32>
    %246 = vector.broadcast %245 : vector<1x384xf32> to vector<16x384xf32>
    %247 = arith.addf %244, %246 : vector<16x384xf32>
    %248 = vector.extract_strided_slice %247 {offsets = [0, 0], sizes = [8, 16], strides = [1, 1]} : vector<16x384xf32> to vector<8x16xf32>
    %249 = vector.extract_strided_slice %247 {offsets = [0, 128], sizes = [8, 16], strides = [1, 1]} : vector<16x384xf32> to vector<8x16xf32>
    %cst_36 = arith.constant dense<0.000000e+00> : vector<8x8xf32>
    %250 = tpu.matmul %248, %249, %cst_36 {dimension_numbers = #tpu.dot_dimension_numbers<[1], [1], [0], [0], [0, 0, 1, 0], [], []>} : vector<8x16xf32>, vector<8x16xf32>, vector<8x8xf32> -> vector<8x8xf32>
    %251 = vector.extract_strided_slice %247 {offsets = [0, 16], sizes = [8, 16], strides = [1, 1]} : vector<16x384xf32> to vector<8x16xf32>
    %252 = vector.extract_strided_slice %247 {offsets = [0, 144], sizes = [8, 16], strides = [1, 1]} : vector<16x384xf32> to vector<8x16xf32>
    %cst_37 = arith.constant dense<0.000000e+00> : vector<8x8xf32>
    %253 = tpu.matmul %251, %252, %cst_37 {dimension_numbers = #tpu.dot_dimension_numbers<[1], [1], [0], [0], [0, 0, 1, 0], [], []>} : vector<8x16xf32>, vector<8x16xf32>, vector<8x8xf32> -> vector<8x8xf32>
    %254 = vector.extract_strided_slice %247 {offsets = [0, 32], sizes = [8, 16], strides = [1, 1]} : vector<16x384xf32> to vector<8x16xf32>
    %255 = vector.extract_strided_slice %247 {offsets = [0, 160], sizes = [8, 16], strides = [1, 1]} : vector<16x384xf32> to vector<8x16xf32>
    %cst_38 = arith.constant dense<0.000000e+00> : vector<8x8xf32>
    %256 = tpu.matmul %254, %255, %cst_38 {dimension_numbers = #tpu.dot_dimension_numbers<[1], [1], [0], [0], [0, 0, 1, 0], [], []>} : vector<8x16xf32>, vector<8x16xf32>, vector<8x8xf32> -> vector<8x8xf32>
    %257 = vector.extract_strided_slice %247 {offsets = [0, 48], sizes = [8, 16], strides = [1, 1]} : vector<16x384xf32> to vector<8x16xf32>
    %258 = vector.extract_strided_slice %247 {offsets = [0, 176], sizes = [8, 16], strides = [1, 1]} : vector<16x384xf32> to vector<8x16xf32>
    %cst_39 = arith.constant dense<0.000000e+00> : vector<8x8xf32>
    %259 = tpu.matmul %257, %258, %cst_39 {dimension_numbers = #tpu.dot_dimension_numbers<[1], [1], [0], [0], [0, 0, 1, 0], [], []>} : vector<8x16xf32>, vector<8x16xf32>, vector<8x8xf32> -> vector<8x8xf32>
    %260 = vector.extract_strided_slice %247 {offsets = [0, 64], sizes = [8, 16], strides = [1, 1]} : vector<16x384xf32> to vector<8x16xf32>
    %261 = vector.extract_strided_slice %247 {offsets = [0, 192], sizes = [8, 16], strides = [1, 1]} : vector<16x384xf32> to vector<8x16xf32>
    %cst_40 = arith.constant dense<0.000000e+00> : vector<8x8xf32>
    %262 = tpu.matmul %260, %261, %cst_40 {dimension_numbers = #tpu.dot_dimension_numbers<[1], [1], [0], [0], [0, 0, 1, 0], [], []>} : vector<8x16xf32>, vector<8x16xf32>, vector<8x8xf32> -> vector<8x8xf32>
    %263 = vector.extract_strided_slice %247 {offsets = [0, 80], sizes = [8, 16], strides = [1, 1]} : vector<16x384xf32> to vector<8x16xf32>
    %264 = vector.extract_strided_slice %247 {offsets = [0, 208], sizes = [8, 16], strides = [1, 1]} : vector<16x384xf32> to vector<8x16xf32>
    %cst_41 = arith.constant dense<0.000000e+00> : vector<8x8xf32>
    %265 = tpu.matmul %263, %264, %cst_41 {dimension_numbers = #tpu.dot_dimension_numbers<[1], [1], [0], [0], [0, 0, 1, 0], [], []>} : vector<8x16xf32>, vector<8x16xf32>, vector<8x8xf32> -> vector<8x8xf32>
    %266 = vector.extract_strided_slice %247 {offsets = [0, 96], sizes = [8, 16], strides = [1, 1]} : vector<16x384xf32> to vector<8x16xf32>
    %267 = vector.extract_strided_slice %247 {offsets = [0, 224], sizes = [8, 16], strides = [1, 1]} : vector<16x384xf32> to vector<8x16xf32>
    %cst_42 = arith.constant dense<0.000000e+00> : vector<8x8xf32>
    %268 = tpu.matmul %266, %267, %cst_42 {dimension_numbers = #tpu.dot_dimension_numbers<[1], [1], [0], [0], [0, 0, 1, 0], [], []>} : vector<8x16xf32>, vector<8x16xf32>, vector<8x8xf32> -> vector<8x8xf32>
    %269 = vector.extract_strided_slice %247 {offsets = [0, 112], sizes = [8, 16], strides = [1, 1]} : vector<16x384xf32> to vector<8x16xf32>
    %270 = vector.extract_strided_slice %247 {offsets = [0, 240], sizes = [8, 16], strides = [1, 1]} : vector<16x384xf32> to vector<8x16xf32>
    %cst_43 = arith.constant dense<0.000000e+00> : vector<8x8xf32>
    %271 = tpu.matmul %269, %270, %cst_43 {dimension_numbers = #tpu.dot_dimension_numbers<[1], [1], [0], [0], [0, 0, 1, 0], [], []>} : vector<8x16xf32>, vector<8x16xf32>, vector<8x8xf32> -> vector<8x8xf32>
    %272 = vector.extract_strided_slice %247 {offsets = [8, 0], sizes = [8, 16], strides = [1, 1]} : vector<16x384xf32> to vector<8x16xf32>
    %273 = vector.extract_strided_slice %247 {offsets = [8, 128], sizes = [8, 16], strides = [1, 1]} : vector<16x384xf32> to vector<8x16xf32>
    %cst_44 = arith.constant dense<0.000000e+00> : vector<8x8xf32>
    %274 = tpu.matmul %272, %273, %cst_44 {dimension_numbers = #tpu.dot_dimension_numbers<[1], [1], [0], [0], [0, 0, 1, 0], [], []>} : vector<8x16xf32>, vector<8x16xf32>, vector<8x8xf32> -> vector<8x8xf32>
    %275 = vector.extract_strided_slice %247 {offsets = [8, 16], sizes = [8, 16], strides = [1, 1]} : vector<16x384xf32> to vector<8x16xf32>
    %276 = vector.extract_strided_slice %247 {offsets = [8, 144], sizes = [8, 16], strides = [1, 1]} : vector<16x384xf32> to vector<8x16xf32>
    %cst_45 = arith.constant dense<0.000000e+00> : vector<8x8xf32>
    %277 = tpu.matmul %275, %276, %cst_45 {dimension_numbers = #tpu.dot_dimension_numbers<[1], [1], [0], [0], [0, 0, 1, 0], [], []>} : vector<8x16xf32>, vector<8x16xf32>, vector<8x8xf32> -> vector<8x8xf32>
    %278 = vector.extract_strided_slice %247 {offsets = [8, 32], sizes = [8, 16], strides = [1, 1]} : vector<16x384xf32> to vector<8x16xf32>
    %279 = vector.extract_strided_slice %247 {offsets = [8, 160], sizes = [8, 16], strides = [1, 1]} : vector<16x384xf32> to vector<8x16xf32>
    %cst_46 = arith.constant dense<0.000000e+00> : vector<8x8xf32>
    %280 = tpu.matmul %278, %279, %cst_46 {dimension_numbers = #tpu.dot_dimension_numbers<[1], [1], [0], [0], [0, 0, 1, 0], [], []>} : vector<8x16xf32>, vector<8x16xf32>, vector<8x8xf32> -> vector<8x8xf32>
    %281 = vector.extract_strided_slice %247 {offsets = [8, 48], sizes = [8, 16], strides = [1, 1]} : vector<16x384xf32> to vector<8x16xf32>
    %282 = vector.extract_strided_slice %247 {offsets = [8, 176], sizes = [8, 16], strides = [1, 1]} : vector<16x384xf32> to vector<8x16xf32>
    %cst_47 = arith.constant dense<0.000000e+00> : vector<8x8xf32>
    %283 = tpu.matmul %281, %282, %cst_47 {dimension_numbers = #tpu.dot_dimension_numbers<[1], [1], [0], [0], [0, 0, 1, 0], [], []>} : vector<8x16xf32>, vector<8x16xf32>, vector<8x8xf32> -> vector<8x8xf32>
    %284 = vector.extract_strided_slice %247 {offsets = [8, 64], sizes = [8, 16], strides = [1, 1]} : vector<16x384xf32> to vector<8x16xf32>
    %285 = vector.extract_strided_slice %247 {offsets = [8, 192], sizes = [8, 16], strides = [1, 1]} : vector<16x384xf32> to vector<8x16xf32>
    %cst_48 = arith.constant dense<0.000000e+00> : vector<8x8xf32>
    %286 = tpu.matmul %284, %285, %cst_48 {dimension_numbers = #tpu.dot_dimension_numbers<[1], [1], [0], [0], [0, 0, 1, 0], [], []>} : vector<8x16xf32>, vector<8x16xf32>, vector<8x8xf32> -> vector<8x8xf32>
    %287 = vector.extract_strided_slice %247 {offsets = [8, 80], sizes = [8, 16], strides = [1, 1]} : vector<16x384xf32> to vector<8x16xf32>
    %288 = vector.extract_strided_slice %247 {offsets = [8, 208], sizes = [8, 16], strides = [1, 1]} : vector<16x384xf32> to vector<8x16xf32>
    %cst_49 = arith.constant dense<0.000000e+00> : vector<8x8xf32>
    %289 = tpu.matmul %287, %288, %cst_49 {dimension_numbers = #tpu.dot_dimension_numbers<[1], [1], [0], [0], [0, 0, 1, 0], [], []>} : vector<8x16xf32>, vector<8x16xf32>, vector<8x8xf32> -> vector<8x8xf32>
    %290 = vector.extract_strided_slice %247 {offsets = [8, 96], sizes = [8, 16], strides = [1, 1]} : vector<16x384xf32> to vector<8x16xf32>
    %291 = vector.extract_strided_slice %247 {offsets = [8, 224], sizes = [8, 16], strides = [1, 1]} : vector<16x384xf32> to vector<8x16xf32>
    %cst_50 = arith.constant dense<0.000000e+00> : vector<8x8xf32>
    %292 = tpu.matmul %290, %291, %cst_50 {dimension_numbers = #tpu.dot_dimension_numbers<[1], [1], [0], [0], [0, 0, 1, 0], [], []>} : vector<8x16xf32>, vector<8x16xf32>, vector<8x8xf32> -> vector<8x8xf32>
    %293 = vector.extract_strided_slice %247 {offsets = [8, 112], sizes = [8, 16], strides = [1, 1]} : vector<16x384xf32> to vector<8x16xf32>
    %294 = vector.extract_strided_slice %247 {offsets = [8, 240], sizes = [8, 16], strides = [1, 1]} : vector<16x384xf32> to vector<8x16xf32>
    %cst_51 = arith.constant dense<0.000000e+00> : vector<8x8xf32>
    %295 = tpu.matmul %293, %294, %cst_51 {dimension_numbers = #tpu.dot_dimension_numbers<[1], [1], [0], [0], [0, 0, 1, 0], [], []>} : vector<8x16xf32>, vector<8x16xf32>, vector<8x8xf32> -> vector<8x8xf32>
    %296 = tpu.concatenate %250, %253, %256, %259, %262, %265, %268, %271, %274, %277, %280, %283, %286, %289, %292, %295 in 0 : vector<8x8xf32>, vector<8x8xf32>, vector<8x8xf32>, vector<8x8xf32>, vector<8x8xf32>, vector<8x8xf32>, vector<8x8xf32>, vector<8x8xf32>, vector<8x8xf32>, vector<8x8xf32>, vector<8x8xf32>, vector<8x8xf32>, vector<8x8xf32>, vector<8x8xf32>, vector<8x8xf32>, vector<8x8xf32> -> vector<128x8xf32>
    %cst_52 = arith.constant dense<0xFF800000> : vector<128xf32>
    %297 = vector.multi_reduction <maximumf>, %296, %cst_52 [1] : vector<128x8xf32> to vector<128xf32>
    %298 = vector.shape_cast %297 : vector<128xf32> to vector<128x1xf32>
    %299 = vector.broadcast %298 : vector<128x1xf32> to vector<128x8xf32>
    %300 = arith.subf %296, %299 : vector<128x8xf32>
    %301 = math.exp %300 : vector<128x8xf32>
    %cst_53 = arith.constant dense<0.000000e+00> : vector<128xf32>
    %302 = vector.multi_reduction <add>, %301, %cst_53 [1] : vector<128x8xf32> to vector<128xf32>
    %303 = vector.shape_cast %302 : vector<128xf32> to vector<128x1xf32>
    %304 = tpu.reciprocal %303 {approx = true} : vector<128x1xf32> -> vector<128x1xf32>
    %305 = vector.broadcast %304 : vector<128x1xf32> to vector<128x8xf32>
    %306 = arith.mulf %301, %305 : vector<128x8xf32>
    %307 = vector.extract_strided_slice %247 {offsets = [0, 256], sizes = [8, 16], strides = [1, 1]} : vector<16x384xf32> to vector<8x16xf32>
    %308 = vector.extract_strided_slice %306 {offsets = [0, 0], sizes = [8, 8], strides = [1, 1]} : vector<128x8xf32> to vector<8x8xf32>
    %cst_54 = arith.constant dense<0.000000e+00> : vector<8x16xf32>
    %309 = tpu.matmul %308, %307, %cst_54 {dimension_numbers = #tpu.dot_dimension_numbers<[1], [0], [0], [1], [0, 0, 1, 1], [], []>} : vector<8x8xf32>, vector<8x16xf32>, vector<8x16xf32> -> vector<8x16xf32>
    %310 = vector.extract_strided_slice %247 {offsets = [0, 272], sizes = [8, 16], strides = [1, 1]} : vector<16x384xf32> to vector<8x16xf32>
    %311 = vector.extract_strided_slice %306 {offsets = [8, 0], sizes = [8, 8], strides = [1, 1]} : vector<128x8xf32> to vector<8x8xf32>
    %cst_55 = arith.constant dense<0.000000e+00> : vector<8x16xf32>
    %312 = tpu.matmul %311, %310, %cst_55 {dimension_numbers = #tpu.dot_dimension_numbers<[1], [0], [0], [1], [0, 0, 1, 1], [], []>} : vector<8x8xf32>, vector<8x16xf32>, vector<8x16xf32> -> vector<8x16xf32>
    %313 = vector.extract_strided_slice %247 {offsets = [0, 288], sizes = [8, 16], strides = [1, 1]} : vector<16x384xf32> to vector<8x16xf32>
    %314 = vector.extract_strided_slice %306 {offsets = [16, 0], sizes = [8, 8], strides = [1, 1]} : vector<128x8xf32> to vector<8x8xf32>
    %cst_56 = arith.constant dense<0.000000e+00> : vector<8x16xf32>
    %315 = tpu.matmul %314, %313, %cst_56 {dimension_numbers = #tpu.dot_dimension_numbers<[1], [0], [0], [1], [0, 0, 1, 1], [], []>} : vector<8x8xf32>, vector<8x16xf32>, vector<8x16xf32> -> vector<8x16xf32>
    %316 = vector.extract_strided_slice %247 {offsets = [0, 304], sizes = [8, 16], strides = [1, 1]} : vector<16x384xf32> to vector<8x16xf32>
    %317 = vector.extract_strided_slice %306 {offsets = [24, 0], sizes = [8, 8], strides = [1, 1]} : vector<128x8xf32> to vector<8x8xf32>
    %cst_57 = arith.constant dense<0.000000e+00> : vector<8x16xf32>
    %318 = tpu.matmul %317, %316, %cst_57 {dimension_numbers = #tpu.dot_dimension_numbers<[1], [0], [0], [1], [0, 0, 1, 1], [], []>} : vector<8x8xf32>, vector<8x16xf32>, vector<8x16xf32> -> vector<8x16xf32>
    %319 = vector.extract_strided_slice %247 {offsets = [0, 320], sizes = [8, 16], strides = [1, 1]} : vector<16x384xf32> to vector<8x16xf32>
    %320 = vector.extract_strided_slice %306 {offsets = [32, 0], sizes = [8, 8], strides = [1, 1]} : vector<128x8xf32> to vector<8x8xf32>
    %cst_58 = arith.constant dense<0.000000e+00> : vector<8x16xf32>
    %321 = tpu.matmul %320, %319, %cst_58 {dimension_numbers = #tpu.dot_dimension_numbers<[1], [0], [0], [1], [0, 0, 1, 1], [], []>} : vector<8x8xf32>, vector<8x16xf32>, vector<8x16xf32> -> vector<8x16xf32>
    %322 = vector.extract_strided_slice %247 {offsets = [0, 336], sizes = [8, 16], strides = [1, 1]} : vector<16x384xf32> to vector<8x16xf32>
    %323 = vector.extract_strided_slice %306 {offsets = [40, 0], sizes = [8, 8], strides = [1, 1]} : vector<128x8xf32> to vector<8x8xf32>
    %cst_59 = arith.constant dense<0.000000e+00> : vector<8x16xf32>
    %324 = tpu.matmul %323, %322, %cst_59 {dimension_numbers = #tpu.dot_dimension_numbers<[1], [0], [0], [1], [0, 0, 1, 1], [], []>} : vector<8x8xf32>, vector<8x16xf32>, vector<8x16xf32> -> vector<8x16xf32>
    %325 = vector.extract_strided_slice %247 {offsets = [0, 352], sizes = [8, 16], strides = [1, 1]} : vector<16x384xf32> to vector<8x16xf32>
    %326 = vector.extract_strided_slice %306 {offsets = [48, 0], sizes = [8, 8], strides = [1, 1]} : vector<128x8xf32> to vector<8x8xf32>
    %cst_60 = arith.constant dense<0.000000e+00> : vector<8x16xf32>
    %327 = tpu.matmul %326, %325, %cst_60 {dimension_numbers = #tpu.dot_dimension_numbers<[1], [0], [0], [1], [0, 0, 1, 1], [], []>} : vector<8x8xf32>, vector<8x16xf32>, vector<8x16xf32> -> vector<8x16xf32>
    %328 = vector.extract_strided_slice %247 {offsets = [0, 368], sizes = [8, 16], strides = [1, 1]} : vector<16x384xf32> to vector<8x16xf32>
    %329 = vector.extract_strided_slice %306 {offsets = [56, 0], sizes = [8, 8], strides = [1, 1]} : vector<128x8xf32> to vector<8x8xf32>
    %cst_61 = arith.constant dense<0.000000e+00> : vector<8x16xf32>
    %330 = tpu.matmul %329, %328, %cst_61 {dimension_numbers = #tpu.dot_dimension_numbers<[1], [0], [0], [1], [0, 0, 1, 1], [], []>} : vector<8x8xf32>, vector<8x16xf32>, vector<8x16xf32> -> vector<8x16xf32>
    %331 = tpu.concatenate %309, %312, %315, %318, %321, %324, %327, %330 in 1 : vector<8x16xf32>, vector<8x16xf32>, vector<8x16xf32>, vector<8x16xf32>, vector<8x16xf32>, vector<8x16xf32>, vector<8x16xf32>, vector<8x16xf32> -> vector<8x128xf32>
    %332 = vector.extract_strided_slice %247 {offsets = [8, 256], sizes = [8, 16], strides = [1, 1]} : vector<16x384xf32> to vector<8x16xf32>
    %333 = vector.extract_strided_slice %306 {offsets = [64, 0], sizes = [8, 8], strides = [1, 1]} : vector<128x8xf32> to vector<8x8xf32>
    %cst_62 = arith.constant dense<0.000000e+00> : vector<8x16xf32>
    %334 = tpu.matmul %333, %332, %cst_62 {dimension_numbers = #tpu.dot_dimension_numbers<[1], [0], [0], [1], [0, 0, 1, 1], [], []>} : vector<8x8xf32>, vector<8x16xf32>, vector<8x16xf32> -> vector<8x16xf32>
    %335 = vector.extract_strided_slice %247 {offsets = [8, 272], sizes = [8, 16], strides = [1, 1]} : vector<16x384xf32> to vector<8x16xf32>
    %336 = vector.extract_strided_slice %306 {offsets = [72, 0], sizes = [8, 8], strides = [1, 1]} : vector<128x8xf32> to vector<8x8xf32>
    %cst_63 = arith.constant dense<0.000000e+00> : vector<8x16xf32>
    %337 = tpu.matmul %336, %335, %cst_63 {dimension_numbers = #tpu.dot_dimension_numbers<[1], [0], [0], [1], [0, 0, 1, 1], [], []>} : vector<8x8xf32>, vector<8x16xf32>, vector<8x16xf32> -> vector<8x16xf32>
    %338 = vector.extract_strided_slice %247 {offsets = [8, 288], sizes = [8, 16], strides = [1, 1]} : vector<16x384xf32> to vector<8x16xf32>
    %339 = vector.extract_strided_slice %306 {offsets = [80, 0], sizes = [8, 8], strides = [1, 1]} : vector<128x8xf32> to vector<8x8xf32>
    %cst_64 = arith.constant dense<0.000000e+00> : vector<8x16xf32>
    %340 = tpu.matmul %339, %338, %cst_64 {dimension_numbers = #tpu.dot_dimension_numbers<[1], [0], [0], [1], [0, 0, 1, 1], [], []>} : vector<8x8xf32>, vector<8x16xf32>, vector<8x16xf32> -> vector<8x16xf32>
    %341 = vector.extract_strided_slice %247 {offsets = [8, 304], sizes = [8, 16], strides = [1, 1]} : vector<16x384xf32> to vector<8x16xf32>
    %342 = vector.extract_strided_slice %306 {offsets = [88, 0], sizes = [8, 8], strides = [1, 1]} : vector<128x8xf32> to vector<8x8xf32>
    %cst_65 = arith.constant dense<0.000000e+00> : vector<8x16xf32>
    %343 = tpu.matmul %342, %341, %cst_65 {dimension_numbers = #tpu.dot_dimension_numbers<[1], [0], [0], [1], [0, 0, 1, 1], [], []>} : vector<8x8xf32>, vector<8x16xf32>, vector<8x16xf32> -> vector<8x16xf32>
    %344 = vector.extract_strided_slice %247 {offsets = [8, 320], sizes = [8, 16], strides = [1, 1]} : vector<16x384xf32> to vector<8x16xf32>
    %345 = vector.extract_strided_slice %306 {offsets = [96, 0], sizes = [8, 8], strides = [1, 1]} : vector<128x8xf32> to vector<8x8xf32>
    %cst_66 = arith.constant dense<0.000000e+00> : vector<8x16xf32>
    %346 = tpu.matmul %345, %344, %cst_66 {dimension_numbers = #tpu.dot_dimension_numbers<[1], [0], [0], [1], [0, 0, 1, 1], [], []>} : vector<8x8xf32>, vector<8x16xf32>, vector<8x16xf32> -> vector<8x16xf32>
    %347 = vector.extract_strided_slice %247 {offsets = [8, 336], sizes = [8, 16], strides = [1, 1]} : vector<16x384xf32> to vector<8x16xf32>
    %348 = vector.extract_strided_slice %306 {offsets = [104, 0], sizes = [8, 8], strides = [1, 1]} : vector<128x8xf32> to vector<8x8xf32>
    %cst_67 = arith.constant dense<0.000000e+00> : vector<8x16xf32>
    %349 = tpu.matmul %348, %347, %cst_67 {dimension_numbers = #tpu.dot_dimension_numbers<[1], [0], [0], [1], [0, 0, 1, 1], [], []>} : vector<8x8xf32>, vector<8x16xf32>, vector<8x16xf32> -> vector<8x16xf32>
    %350 = vector.extract_strided_slice %247 {offsets = [8, 352], sizes = [8, 16], strides = [1, 1]} : vector<16x384xf32> to vector<8x16xf32>
    %351 = vector.extract_strided_slice %306 {offsets = [112, 0], sizes = [8, 8], strides = [1, 1]} : vector<128x8xf32> to vector<8x8xf32>
    %cst_68 = arith.constant dense<0.000000e+00> : vector<8x16xf32>
    %352 = tpu.matmul %351, %350, %cst_68 {dimension_numbers = #tpu.dot_dimension_numbers<[1], [0], [0], [1], [0, 0, 1, 1], [], []>} : vector<8x8xf32>, vector<8x16xf32>, vector<8x16xf32> -> vector<8x16xf32>
    %353 = vector.extract_strided_slice %247 {offsets = [8, 368], sizes = [8, 16], strides = [1, 1]} : vector<16x384xf32> to vector<8x16xf32>
    %354 = vector.extract_strided_slice %306 {offsets = [120, 0], sizes = [8, 8], strides = [1, 1]} : vector<128x8xf32> to vector<8x8xf32>
    %cst_69 = arith.constant dense<0.000000e+00> : vector<8x16xf32>
    %355 = tpu.matmul %354, %353, %cst_69 {dimension_numbers = #tpu.dot_dimension_numbers<[1], [0], [0], [1], [0, 0, 1, 1], [], []>} : vector<8x8xf32>, vector<8x16xf32>, vector<8x16xf32> -> vector<8x16xf32>
    %356 = tpu.concatenate %334, %337, %340, %343, %346, %349, %352, %355 in 1 : vector<8x16xf32>, vector<8x16xf32>, vector<8x16xf32>, vector<8x16xf32>, vector<8x16xf32>, vector<8x16xf32>, vector<8x16xf32>, vector<8x16xf32> -> vector<8x128xf32>
    %357 = tpu.concatenate %331, %356 in 0 : vector<8x128xf32>, vector<8x128xf32> -> vector<16x128xf32>
    %c0_70 = arith.constant 0 : index
    %c0_71 = arith.constant 0 : index
    %358 = vector.load %arg7[%c0_70, %c0_71] : memref<128x128xf32, #tpu.memory_space<vmem>>, vector<128x128xf32>
    %cst_72 = arith.constant dense<0.000000e+00> : vector<16x128xf32>
    %359 = tpu.matmul %357, %358, %cst_72 {dimension_numbers = #tpu.dot_dimension_numbers<[1], [0], [0], [1], [0, 0, 1, 1], [], []>} : vector<16x128xf32>, vector<128x128xf32>, vector<16x128xf32> -> vector<16x128xf32>
    %c0_73 = arith.constant 0 : index
    %c0_74 = arith.constant 0 : index
    %360 = vector.load %arg8[%c0_73, %c0_74] : memref<1x128xf32, #tpu.memory_space<vmem>>, vector<1x128xf32>
    %361 = vector.broadcast %360 : vector<1x128xf32> to vector<16x128xf32>
    %362 = arith.addf %359, %361 : vector<16x128xf32>
    %c0_75 = arith.constant 0 : index
    %c0_76 = arith.constant 0 : index
    %363 = vector.load %arg10[%c0_75, %c0_76] : memref<16x128xf32, #tpu.memory_space<vmem>>, vector<16x128xf32>
    tpu.vector_store %arg10[%c0_75, %c0_76], %362 {strides = array<i32>} : memref<16x128xf32, #tpu.memory_space<vmem>>, vector<16x128xf32>,
    return
  }
  func.func @transform_0(%arg0: i32) -> (i32, i32) {
    %c0_i32 = arith.constant 0 : i32
    %c0_i32_0 = arith.constant 0 : i32
    return %arg0, %c0_i32 : i32, i32
  }
  func.func @transform_1(%arg0: i32) -> (i32, i32) {
    %c0_i32 = arith.constant 0 : i32
    %c0_i32_0 = arith.constant 0 : i32
    %c0_i32_1 = arith.constant 0 : i32
    return %c0_i32, %c0_i32_0 : i32, i32
  }
  func.func @transform_2(%arg0: i32) -> (i32, i32) {
    %c0_i32 = arith.constant 0 : i32
    %c0_i32_0 = arith.constant 0 : i32
    %c0_i32_1 = arith.constant 0 : i32
    return %c0_i32, %c0_i32_0 : i32, i32
  }
  func.func @transform_3(%arg0: i32) -> (i32, i32) {
    %c0_i32 = arith.constant 0 : i32
    %c0_i32_0 = arith.constant 0 : i32
    %c0_i32_1 = arith.constant 0 : i32
    return %c0_i32, %c0_i32_0 : i32, i32
  }
  func.func @transform_4(%arg0: i32) -> (i32, i32) {
    %c0_i32 = arith.constant 0 : i32
    %c0_i32_0 = arith.constant 0 : i32
    %c0_i32_1 = arith.constant 0 : i32
    return %c0_i32, %c0_i32_0 : i32, i32
  }
  func.func @transform_5(%arg0: i32) -> (i32, i32) {
    %c0_i32 = arith.constant 0 : i32
    %c0_i32_0 = arith.constant 0 : i32
    %c0_i32_1 = arith.constant 0 : i32
    return %c0_i32, %c0_i32_0 : i32, i32
  }
  func.func @transform_6(%arg0: i32) -> (i32, i32) {
    %c0_i32 = arith.constant 0 : i32
    %c0_i32_0 = arith.constant 0 : i32
    %c0_i32_1 = arith.constant 0 : i32
    return %c0_i32, %c0_i32_0 : i32, i32
  }
  func.func @transform_7(%arg0: i32) -> (i32, i32) {
    %c0_i32 = arith.constant 0 : i32
    %c0_i32_0 = arith.constant 0 : i32
    %c0_i32_1 = arith.constant 0 : i32
    return %c0_i32, %c0_i32_0 : i32, i32
  }
  func.func @transform_8(%arg0: i32) -> (i32, i32) {
    %c0_i32 = arith.constant 0 : i32
    %c0_i32_0 = arith.constant 0 : i32
    return %arg0, %c0_i32 : i32, i32
  }
  func.func @transform_9(%arg0: i32) -> (i32, i32) {
    %c0_i32 = arith.constant 0 : i32
    %c0_i32_0 = arith.constant 0 : i32
    return %arg0, %c0_i32 : i32, i32
  }
}

</mosaic_0001>

<llo_original>
// kernel: model_forward.1
$region0: #{model_forward.1}
  #allocation0 [shape = 'u32[]', space=smem, size = 0x4, offset = 0x4, fixed_abs, tag = 'smem constant byte address 0x4 - core index']
  #allocation1 [shape = 'u32[144,128]{1,0:T(1,128)}', space=vmem, size = 0x12000, scoped, tag = 'internal scratch']
  %s0 = inlined_call_operand.hbm [shape: f32[16,21], index: 0, kind: input, shape index: {}]
  %s1 = inlined_call_operand.hbm [shape: f32[21,512], index: 1, kind: input, shape index: {}]
  %s2 = inlined_call_operand.hbm [shape: f32[128,512], index: 2, kind: input, shape index: {}]
  %s3 = inlined_call_operand.vmem [shape: f32[1,512], index: 3, kind: input, shape index: {}]
  %s4 = inlined_call_operand.hbm [shape: f32[128,384], index: 4, kind: input, shape index: {}]
  %s5 = inlined_call_operand.vmem [shape: f32[1,384], index: 5, kind: input, shape index: {}]
  %s6 = inlined_call_operand.hbm [shape: f32[128,128], index: 6, kind: input, shape index: {}]
  %s7 = inlined_call_operand.vmem [shape: f32[1,128], index: 7, kind: input, shape index: {}]
  %s8 = inlined_call_operand.hbm [shape: f32[16,128], index: 8, kind: output, shape index: {0}]
  %s9 = inlined_call_operand.vmem [shape: f32[16,128], index: 9, kind: output, shape index: {1}]
  %10 = xla_tuple %s8, %s9
  %s11 = sld [smem:[#allocation0]]
  $region70: #{model_forward.1} parent=0
    _
  %s13 = ssub.s32 1, %s11
  %s14 = scalar_select 0, %s13, %s11
  $region1: #{model_forward.1} parent=0
    #allocation2 [shape = 'u8[8192]{0}', space=vmem, size = 0x2000, scoped, tag = 'input window, operand 0, single buffered']
    #allocation3 [shape = 's32[1]{0}', space=sflag, size = 0x4, scoped, tag = 'scoped memory for model_forward.1']
    #allocation4 [shape = 's32[1]{0}', space=sflag, size = 0x4, scoped, tag = 'scoped memory for model_forward.1']
    #allocation5 [shape = 'u8[49152]{0}', space=vmem, size = 0xc000, scoped, tag = 'input window, operand 1, single buffered']
    #allocation6 [shape = 's32[1]{0}', space=sflag, size = 0x4, scoped, tag = 'scoped memory for model_forward.1']
    #allocation7 [shape = 'u8[262144]{0}', space=vmem, size = 0x40000, scoped, tag = 'input window, operand 2, single buffered']
    #allocation8 [shape = 'u8[196608]{0}', space=vmem, size = 0x30000, scoped, tag = 'input window, operand 4, single buffered']
    #allocation9 [shape = 's32[1]{0}', space=sflag, size = 0x4, scoped, tag = 'scoped memory for model_forward.1']
    #allocation10 [shape = 'u8[65536]{0}', space=vmem, size = 0x10000, scoped, tag = 'input window, operand 6, single buffered']
    #allocation11 [shape = 'u8[8192]{0}', space=vmem, size = 0x2000, scoped, tag = 'output window, operand 0, single buffered']
    %15 = vsyncpa [#allocation3], 0
    %16 = vsyncpa [#allocation6], 0
    %17 = vsyncpa [#allocation9], 0
    %18 = vsyncpa [#allocation4], 0
    // Predicated region
    $region2: #{model_forward.1} parent=1 // pred_check
      _
    $region3: #{model_forward.1} parent=1 // pred_check_branch
      %20 = sbr.rel (0) target = $region5
    $region4: #{model_forward.1} parent=1 // pred_region
      %s22 = ssub.s32 256, 256
      %23 = vsyncadd [#allocation3], %s22
      %s24 = sshll.u32 [#allocation2], 4
      %s25 = int_to_ptr.vmem [resolvable:$true] %s24
      %30 = dma.hbm_to_vmem [thread:$0]  %s0, 256, %s25, [#allocation3], 128, 128, 8
    $region5: #{model_forward.1} parent=1 // pred_fallthru
      _
    // Predicated region
    $region6: #{model_forward.1} parent=1 // pred_check
      _
    $region7: #{model_forward.1} parent=1 // pred_check_branch
      %32 = sbr.rel (0) target = $region9
    $region8: #{model_forward.1} parent=1 // pred_region
      %s34 = ssub.s32 1536, 1536
      %35 = vsyncadd [#allocation6], %s34
      %s36 = sshll.u32 [#allocation5], 4
      %s37 = int_to_ptr.vmem [resolvable:$true] %s36
      %42 = dma.hbm_to_vmem [thread:$0]  %s1, 1536, %s37, [#allocation6], 512, 512, 32
    $region9: #{model_forward.1} parent=1 // pred_fallthru
      _
    // Predicated region
    $region10: #{model_forward.1} parent=1 // pred_check
      _
    $region11: #{model_forward.1} parent=1 // pred_check_branch
      %44 = sbr.rel (0) target = $region13
    $region12: #{model_forward.1} parent=1 // pred_region
      %s46 = ssub.s32 8192, 8192
      %47 = vsyncadd [#allocation6], %s46
      %s48 = sshll.u32 [#allocation7], 4
      %s49 = int_to_ptr.vmem [resolvable:$true] %s48
      %54 = dma.hbm_to_vmem [thread:$0]  %s2, 8192, %s49, [#allocation6], 512, 512, 32
    $region13: #{model_forward.1} parent=1 // pred_fallthru
      _
    // Predicated region
    $region14: #{model_forward.1} parent=1 // pred_check
      _
    $region15: #{model_forward.1} parent=1 // pred_check_branch
      %56 = sbr.rel (0) target = $region17
    $region16: #{model_forward.1} parent=1 // pred_region
      _
    $region17: #{model_forward.1} parent=1 // pred_fallthru
      _
    // Predicated region
    $region18: #{model_forward.1} parent=1 // pred_check
      _
    $region19: #{model_forward.1} parent=1 // pred_check_branch
      %58 = sbr.rel (0) target = $region21
    $region20: #{model_forward.1} parent=1 // pred_region
      %s60 = ssub.s32 6144, 6144
      %61 = vsyncadd [#allocation9], %s60
      %s62 = sshll.u32 [#allocation8], 4
      %s63 = int_to_ptr.vmem [resolvable:$true] %s62
      %68 = dma.hbm_to_vmem [thread:$0]  %s4, 6144, %s63, [#allocation9], 384, 384, 24
    $region21: #{model_forward.1} parent=1 // pred_fallthru
      _
    // Predicated region
    $region22: #{model_forward.1} parent=1 // pred_check
      _
    $region23: #{model_forward.1} parent=1 // pred_check_branch
      %70 = sbr.rel (0) target = $region25
    $region24: #{model_forward.1} parent=1 // pred_region
      _
    $region25: #{model_forward.1} parent=1 // pred_fallthru
      _
    // Predicated region
    $region26: #{model_forward.1} parent=1 // pred_check
      _
    $region27: #{model_forward.1} parent=1 // pred_check_branch
      %72 = sbr.rel (0) target = $region29
    $region28: #{model_forward.1} parent=1 // pred_region
      %s74 = ssub.s32 2048, 2048
      %75 = vsyncadd [#allocation9], %s74
      %s76 = sshll.u32 [#allocation10], 4
      %s77 = int_to_ptr.vmem [resolvable:$true] %s76
      %82 = dma.hbm_to_vmem [thread:$0]  %s6, 2048, %s77, [#allocation9], 128, 128, 8
    $region29: #{model_forward.1} parent=1 // pred_fallthru
      _
    // Predicated region
    $region30: #{model_forward.1} parent=1 // pred_check
      _
    $region31: #{model_forward.1} parent=1 // pred_check_branch
      %84 = sbr.rel (0) target = $region33
    $region32: #{model_forward.1} parent=1 // pred_region
      _
    $region33: #{model_forward.1} parent=1 // pred_fallthru
      _
    // Predicated region
    $region34: #{model_forward.1} parent=1 // pred_check
      _
    $region35: #{model_forward.1} parent=1 // pred_check_branch
      %86 = sbr.rel (0) target = $region37
    $region36: #{model_forward.1} parent=1 // pred_region
      %87 = dma.done [#allocation3], 256
    $region37: #{model_forward.1} parent=1 // pred_fallthru
      _
    // Predicated region
    $region38: #{model_forward.1} parent=1 // pred_check
      _
    $region39: #{model_forward.1} parent=1 // pred_check_branch
      %89 = sbr.rel (0) target = $region41
    $region40: #{model_forward.1} parent=1 // pred_region
      %90 = dma.done [#allocation6], 1536
    $region41: #{model_forward.1} parent=1 // pred_fallthru
      _
    // Predicated region
    $region42: #{model_forward.1} parent=1 // pred_check
      _
    $region43: #{model_forward.1} parent=1 // pred_check_branch
      %92 = sbr.rel (0) target = $region45
    $region44: #{model_forward.1} parent=1 // pred_region
      %93 = dma.done [#allocation6], 8192
    $region45: #{model_forward.1} parent=1 // pred_fallthru
      _
    // Predicated region
    $region46: #{model_forward.1} parent=1 // pred_check
      _
    $region47: #{model_forward.1} parent=1 // pred_check_branch
      %95 = sbr.rel (0) target = $region49
    $region48: #{model_forward.1} parent=1 // pred_region
      %96 = dma.done [#allocation9], 6144
    $region49: #{model_forward.1} parent=1 // pred_fallthru
      _
    // Predicated region
    $region50: #{model_forward.1} parent=1 // pred_check
      _
    $region51: #{model_forward.1} parent=1 // pred_check_branch
      %98 = sbr.rel (0) target = $region53
    $region52: #{model_forward.1} parent=1 // pred_region
      %99 = dma.done [#allocation9], 2048
    $region53: #{model_forward.1} parent=1 // pred_fallthru
      _
    %v100 = vld [vmem:[#allocation2] sm:$0xff]
    %v101 = vld [vmem:[#allocation2 + $0x8] sm:$0xff]
    %v102 = vld [vmem:[#allocation5] sm:$0xff]
    %v103 = vld [vmem:[#allocation5 + $0x8] sm:$0xff]
    %v104 = vld [vmem:[#allocation5 + $0x10] sm:$0xff]
    %v105 = vld [vmem:[#allocation5 + $0x18] sm:$0xff]
    %v106 = vld [vmem:[#allocation5 + $0x20] sm:$0xff]
    %v107 = vld [vmem:[#allocation5 + $0x28] sm:$0xff]
    %v108 = vld [vmem:[#allocation5 + $0x30] sm:$0xff]
    %v109 = vld [vmem:[#allocation5 + $0x38] sm:$0xff]
    %v110 = vld [vmem:[#allocation5 + $0x40] sm:$0x1f]
    %v111 = vld [vmem:[#allocation5 + $0x48] sm:$0x1f]
    %v112 = vld [vmem:[#allocation5 + $0x50] sm:$0x1f]
    %v113 = vld [vmem:[#allocation5 + $0x58] sm:$0x1f]
    %v114 = vld [vmem:[%s3] sm:$0xf]
    %v116 = vlaneseq
    %v117 = vshrl.u32 %v116, 7
    %v118 = vsub.s32 0, %v117
    %v119 = vrot.slane %v114, %v118
    %v120 = vlaneseq
    %v121 = vshrl.u32 %v120, 7
    %v122 = vsub.s32 1, %v121
    %v123 = vrot.slane %v114, %v122
    %v124 = vlaneseq
    %v125 = vshrl.u32 %v124, 7
    %v126 = vsub.s32 2, %v125
    %v127 = vrot.slane %v114, %v126
    %v128 = vlaneseq
    %v129 = vshrl.u32 %v128, 7
    %v130 = vsub.s32 3, %v129
    %v131 = vrot.slane %v114, %v130
    %vm136 = vcmask 171008
    %v138 = vsel %vm136, %v100, 0
    %v141 = vsel %vm136, %v101, 0
    %vm143 = vcmask 1044480
    %v145 = vsel %vm143, %v110, 0
    %v148 = vsel %vm143, %v111, 0
    %v151 = vsel %vm143, %v112, 0
    %v154 = vsel %vm143, %v113, 0
    %156 = vmatprep.subr.mxu0 %v103
    %157 = vmatpush1.msra.mxu0 %v102
    %158 = vmatprep.subr.mxu0 %v107
    %159 = vmatpush1.msra.mxu0 %v106
    %160 = vmatprep.subr.mxu0 %v148
    %161 = vmatpush1.msra.mxu0 %v145
    %162 = vmatprep.subr.mxu0 0.0
    %163 = vmatpush1.msra.mxu0 0.0
    %164 = vmatprep.subr.mxu0 0.0
    %165 = vmatpush1.msra.mxu0 0.0
    %166 = vmatprep.subr.mxu0 0.0
    %167 = vmatpush1.msra.mxu0 0.0
    %168 = vmatprep.subr.mxu0 0.0
    %169 = vmatpush1.msra.mxu0 0.0
    %170 = vmatprep.subr.mxu0 0.0
    %171 = vmatpush1.msra.mxu0 0.0
    %172 = vmatprep.subr.mxu0 0.0
    %173 = vmatpush1.msra.mxu0 0.0
    %174 = vmatprep.subr.mxu0 0.0
    %175 = vmatpush1.msra.mxu0 0.0
    %176 = vmatprep.subr.mxu0 0.0
    %177 = vmatpush1.msra.mxu0 0.0
    %178 = vmatprep.subr.mxu0 0.0
    %179 = vmatpush1.msra.mxu0 0.0
    %180 = vmatprep.subr.mxu0 0.0
    %181 = vmatpush1.msra.mxu0 0.0
    %182 = vmatprep.subr.mxu0 0.0
    %183 = vmatpush1.msra.mxu0 0.0
    %184 = vmatprep.subr.mxu0 0.0
    %185 = vmatpush1.msra.mxu0 0.0
    %186 = vmatprep.subr.mxu0 0.0
    %187 = vmatpush1.msra.mxu0 0.0
    %188 = vmatprep.subr.mxu0 0.0
    %189 = vmatpush1.msra.mxu0 0.0
    %190 = vmatprep.subr.mxu0 0.0
    %191 = vmatpush1.msra.mxu0 0.0
    %192 = vmatprep.subr.mxu0 0.0
    %193 = vmatpush1.msra.mxu0 0.0
    %194 = vmatprep.subr.mxu0 0.0
    %195 = vmatpush1.msra.mxu0 0.0
    %196 = vmatprep.subr.mxu0 0.0
    %197 = vmatpush1.msra.mxu0 0.0
    %198 = vmatprep.subr.mxu0 0.0
    %199 = vmatpush1.msra.mxu0 0.0
    %200 = vmatprep.subr.mxu0 0.0
    %201 = vmatpush1.msra.mxu0 0.0
    %202 = vmatprep.subr.mxu0 0.0
    %203 = vmatpush1.msra.mxu0 0.0
    %204 = vmatprep.subr.mxu0 0.0
    %205 = vmatpush1.msra.mxu0 0.0
    %206 = vmatprep.subr.mxu0 0.0
    %207 = vmatpush1.msra.mxu0 0.0
    %208 = vmatprep.subr.mxu0 0.0
    %209 = vmatpush1.msra.mxu0 0.0
    %210 = vmatprep.subr.mxu0 0.0
    %211 = vmatpush1.msra.mxu0 0.0
    %212 = vmatprep.subr.mxu0 0.0
    %213 = vmatpush1.msra.mxu0 0.0
    %214 = vmatprep.subr.mxu0 0.0
    %215 = vmatpush1.msra.mxu0 0.0
    %216 = vmatprep.subr.mxu0 0.0
    %217 = vmatpush1.msra.mxu0 0.0
    %218 = vmatprep.subr.mxu0 0.0
    %219 = vmatpush1.msra.mxu0 0.0
    %220 = vmatprep.mubr.f32.mxu0 0.0
    %221 = vmatmul.mubr.f32.gmra.mrb[0].mxu0 %v138
    %v222 = vpop.f32.mrb[0].mxu0
    %v223 = vadd.f32 %v119, %v222
    %v224 = vpop.f32.mrb[0].mxu0
    %v225 = vadd.f32 %v123, %v224
    %226 = vmatprep.mubr.f32.mxu0 0.0
    %227 = vmatmul.mubr.f32.gmra.mrb[0].mxu0 %v141
    %v228 = vpop.f32.mrb[0].mxu0
    %v229 = vadd.f32 %v119, %v228
    %v230 = vpop.f32.mrb[0].mxu0
    %v231 = vadd.f32 %v123, %v230
    %232 = vdwg.mxu0
    %233 = vmatprep.subr.mxu0 %v105
    %234 = vmatpush1.msra.mxu0 %v104
    %235 = vmatprep.subr.mxu0 %v109
    %236 = vmatpush1.msra.mxu0 %v108
    %237 = vmatprep.subr.mxu0 %v154
    %238 = vmatpush1.msra.mxu0 %v151
    %239 = vmatprep.subr.mxu0 0.0
    %240 = vmatpush1.msra.mxu0 0.0
    %241 = vmatprep.subr.mxu0 0.0
    %242 = vmatpush1.msra.mxu0 0.0
    %243 = vmatprep.subr.mxu0 0.0
    %244 = vmatpush1.msra.mxu0 0.0
    %245 = vmatprep.subr.mxu0 0.0
    %246 = vmatpush1.msra.mxu0 0.0
    %247 = vmatprep.subr.mxu0 0.0
    %248 = vmatpush1.msra.mxu0 0.0
    %249 = vmatprep.subr.mxu0 0.0
    %250 = vmatpush1.msra.mxu0 0.0
    %251 = vmatprep.subr.mxu0 0.0
    %252 = vmatpush1.msra.mxu0 0.0
    %253 = vmatprep.subr.mxu0 0.0
    %254 = vmatpush1.msra.mxu0 0.0
    %255 = vmatprep.subr.mxu0 0.0
    %256 = vmatpush1.msra.mxu0 0.0
    %257 = vmatprep.subr.mxu0 0.0
    %258 = vmatpush1.msra.mxu0 0.0
    %259 = vmatprep.subr.mxu0 0.0
    %260 = vmatpush1.msra.mxu0 0.0
    %261 = vmatprep.subr.mxu0 0.0
    %262 = vmatpush1.msra.mxu0 0.0
    %263 = vmatprep.subr.mxu0 0.0
    %264 = vmatpush1.msra.mxu0 0.0
    %265 = vmatprep.subr.mxu0 0.0
    %266 = vmatpush1.msra.mxu0 0.0
    %267 = vmatprep.subr.mxu0 0.0
    %268 = vmatpush1.msra.mxu0 0.0
    %269 = vmatprep.subr.mxu0 0.0
    %270 = vmatpush1.msra.mxu0 0.0
    %271 = vmatprep.subr.mxu0 0.0
    %272 = vmatpush1.msra.mxu0 0.0
    %273 = vmatprep.subr.mxu0 0.0
    %274 = vmatpush1.msra.mxu0 0.0
    %275 = vmatprep.subr.mxu0 0.0
    %276 = vmatpush1.msra.mxu0 0.0
    %277 = vmatprep.subr.mxu0 0.0
    %278 = vmatpush1.msra.mxu0 0.0
    %279 = vmatprep.subr.mxu0 0.0
    %280 = vmatpush1.msra.mxu0 0.0
    %281 = vmatprep.subr.mxu0 0.0
    %282 = vmatpush1.msra.mxu0 0.0
    %283 = vmatprep.subr.mxu0 0.0
    %284 = vmatpush1.msra.mxu0 0.0
    %285 = vmatprep.subr.mxu0 0.0
    %286 = vmatpush1.msra.mxu0 0.0
    %287 = vmatprep.subr.mxu0 0.0
    %288 = vmatpush1.msra.mxu0 0.0
    %289 = vmatprep.subr.mxu0 0.0
    %290 = vmatpush1.msra.mxu0 0.0
    %291 = vmatprep.subr.mxu0 0.0
    %292 = vmatpush1.msra.mxu0 0.0
    %293 = vmatprep.subr.mxu0 0.0
    %294 = vmatpush1.msra.mxu0 0.0
    %295 = vmatprep.subr.mxu0 0.0
    %296 = vmatpush1.msra.mxu0 0.0
    %297 = vmatprep.mubr.f32.mxu0 0.0
    %298 = vmatmul.mubr.f32.gmra.mrb[0].mxu0 %v138
    %v299 = vpop.f32.mrb[0].mxu0
    %v300 = vadd.f32 %v127, %v299
    %v301 = vpop.f32.mrb[0].mxu0
    %v302 = vadd.f32 %v131, %v301
    %303 = vmatprep.mubr.f32.mxu0 0.0
    %304 = vmatmul.mubr.f32.gmra.mrb[0].mxu0 %v141
    %v305 = vpop.f32.mrb[0].mxu0
    %v306 = vadd.f32 %v127, %v305
    %v307 = vpop.f32.mrb[0].mxu0
    %v308 = vadd.f32 %v131, %v307
    %309 = vdwg.mxu0
    %v310 = vlaneseq
    %v311 = vand.u32 %v310, 127
    %v312 = vadd.s32 %v311, 128
    %v313 = vadd.s32 %v311, 256
    %v314 = vadd.s32 %v311, 384
    %vm315 = vcmp.lt.s32.totalorder %v311, 0
    %v316 = vsub.s32 0, %v311
    %v317 = vsel %vm315, %v316, %v311
    %v318 = vshrl.u32 %v317, 7
    %v319 = vand.u32 %v317, 127
    %v320 = vsub.s32 0, %v319
    %v321 = vsel %vm315, %v320, %v319
    %vm322 = vcmp.lt.s32.totalorder %v312, 0
    %v323 = vsub.s32 0, %v312
    %v324 = vsel %vm322, %v323, %v312
    %v325 = vshrl.u32 %v324, 7
    %v326 = vand.u32 %v324, 127
    %v327 = vsub.s32 0, %v326
    %v328 = vsel %vm322, %v327, %v326
    %vm329 = vcmp.lt.s32.totalorder %v313, 0
    %v330 = vsub.s32 0, %v313
    %v331 = vsel %vm329, %v330, %v313
    %v332 = vshrl.u32 %v331, 7
    %v333 = vand.u32 %v331, 127
    %v334 = vsub.s32 0, %v333
    %v335 = vsel %vm329, %v334, %v333
    %vm336 = vcmp.lt.s32.totalorder %v314, 0
    %v337 = vsub.s32 0, %v314
    %v338 = vsel %vm336, %v337, %v314
    %v339 = vshrl.u32 %v338, 7
    %v340 = vand.u32 %v338, 127
    %v341 = vsub.s32 0, %v340
    %v342 = vsel %vm336, %v341, %v340
    %vm343 = vcmp.ne.s32.totalorder %v321, 0
    %vm344 = vcmp.ne.s32.totalorder %v328, 0
    %vm345 = vcmp.ne.s32.totalorder %v335, 0
    %vm346 = vcmp.ne.s32.totalorder %v342, 0
    %vm347 = vcmp.lt.s32.totalorder %v321, 0
    %vm348 = vcmp.lt.s32.totalorder %v328, 0
    %vm349 = vcmp.lt.s32.totalorder %v335, 0
    %vm350 = vcmp.lt.s32.totalorder %v342, 0
    %vm351 = vmand %vm347, %vm343
    %vm352 = vmand %vm348, %vm344
    %vm353 = vmand %vm349, %vm345
    %vm354 = vmand %vm350, %vm346
    %v355 = vadd.s32 %v321, 128
    %v356 = vadd.s32 %v328, 128
    %v357 = vadd.s32 %v335, 128
    %v358 = vadd.s32 %v342, 128
    %v359 = vsel %vm351, %v355, %v321
    %v360 = vsel %vm352, %v356, %v328
    %v361 = vsel %vm353, %v357, %v335
    %v362 = vsel %vm354, %v358, %v342
    %vm363 = vcmp.lt.s32.totalorder %v359, 64
    %vm364 = vcmp.lt.s32.totalorder %v360, 64
    %vm365 = vcmp.lt.s32.totalorder %v361, 64
    %vm366 = vcmp.lt.s32.totalorder %v362, 64
    %vm367 = vcmp.lt.s32.totalorder %v311, 64
    %v372 = vrot.slane %v229, 7
    %v373 = vrot.slane %v231, 7
    %v374 = vrot.slane %v306, 7
    %v375 = vrot.slane %v308, 7
    %v384 = vrot.slane %v223, 7
    %v385 = vrot.slane %v225, 7
    %v386 = vrot.slane %v300, 7
    %v387 = vrot.slane %v302, 7
    %v392 = vrot.slane %v229, 6
    %v393 = vrot.slane %v231, 6
    %v394 = vrot.slane %v306, 6
    %v395 = vrot.slane %v308, 6
    %v400 = vrot.slane %v223, 6
    %v401 = vrot.slane %v225, 6
    %v402 = vrot.slane %v300, 6
    %v403 = vrot.slane %v302, 6
    %v408 = vrot.slane %v229, 5
    %v409 = vrot.slane %v231, 5
    %v410 = vrot.slane %v306, 5
    %v411 = vrot.slane %v308, 5
    %v416 = vrot.slane %v223, 5
    %v417 = vrot.slane %v225, 5
    %v418 = vrot.slane %v300, 5
    %v419 = vrot.slane %v302, 5
    %v424 = vrot.slane %v229, 4
    %v425 = vrot.slane %v231, 4
    %v426 = vrot.slane %v306, 4
    %v427 = vrot.slane %v308, 4
    %v432 = vrot.slane %v223, 4
    %v433 = vrot.slane %v225, 4
    %v434 = vrot.slane %v300, 4
    %v435 = vrot.slane %v302, 4
    %v440 = vrot.slane %v229, 3
    %v441 = vrot.slane %v231, 3
    %v442 = vrot.slane %v306, 3
    %v443 = vrot.slane %v308, 3
    %v448 = vrot.slane %v223, 3
    %v449 = vrot.slane %v225, 3
    %v450 = vrot.slane %v300, 3
    %v451 = vrot.slane %v302, 3
    %v456 = vrot.slane %v229, 2
    %v457 = vrot.slane %v231, 2
    %v458 = vrot.slane %v306, 2
    %v459 = vrot.slane %v308, 2
    %v464 = vrot.slane %v223, 2
    %v465 = vrot.slane %v225, 2
    %v466 = vrot.slane %v300, 2
    %v467 = vrot.slane %v302, 2
    %v472 = vrot.slane %v229, 1
    %v473 = vrot.slane %v231, 1
    %v474 = vrot.slane %v306, 1
    %v475 = vrot.slane %v308, 1
    %v480 = vrot.slane %v223, 1
    %v481 = vrot.slane %v225, 1
    %v482 = vrot.slane %v300, 1
    %v483 = vrot.slane %v302, 1
    %vm488 = vcmask 1040384
    %v489 = vsel %vm488, %v223, %v372
    %v490 = vsel %vm488, %v225, %v373
    %v491 = vsel %vm488, %v300, %v374
    %v492 = vsel %vm488, %v302, %v375
    %vm493 = vcmask 1041408
    %v494 = vsel %vm493, %v489, %v384
    %v495 = vsel %vm493, %v490, %v385
    %v496 = vsel %vm493, %v491, %v386
    %v497 = vsel %vm493, %v492, %v387
    %vm498 = vcmask 1042432
    %v499 = vsel %vm498, %v494, %v392
    %v500 = vsel %vm498, %v495, %v393
    %v501 = vsel %vm498, %v496, %v394
    %v502 = vsel %vm498, %v497, %v395
    %vm503 = vcmask 1043456
    %v504 = vsel %vm503, %v499, %v400
    %v505 = vsel %vm503, %v500, %v401
    %v506 = vsel %vm503, %v501, %v402
    %v507 = vsel %vm503, %v502, %v403
    %v508 = vsel %vm143, %v504, %v408
    %v509 = vsel %vm143, %v505, %v409
    %v510 = vsel %vm143, %v506, %v410
    %v511 = vsel %vm143, %v507, %v411
    %vm512 = vcmask 1045504
    %v513 = vsel %vm512, %v508, %v416
    %v514 = vsel %vm512, %v509, %v417
    %v515 = vsel %vm512, %v510, %v418
    %v516 = vsel %vm512, %v511, %v419
    %vm517 = vcmask 1046528
    %v518 = vsel %vm517, %v513, %v424
    %v519 = vsel %vm517, %v514, %v425
    %v520 = vsel %vm517, %v515, %v426
    %v521 = vsel %vm517, %v516, %v427
    %v522 = vsel %vm488, %v432, %v440
    %v523 = vsel %vm488, %v433, %v441
    %v524 = vsel %vm488, %v434, %v442
    %v525 = vsel %vm488, %v435, %v443
    %v526 = vsel %vm493, %v522, %v448
    %v527 = vsel %vm493, %v523, %v449
    %v528 = vsel %vm493, %v524, %v450
    %v529 = vsel %vm493, %v525, %v451
    %v530 = vsel %vm498, %v526, %v456
    %v531 = vsel %vm498, %v527, %v457
    %v532 = vsel %vm498, %v528, %v458
    %v533 = vsel %vm498, %v529, %v459
    %v534 = vsel %vm503, %v530, %v464
    %v535 = vsel %vm503, %v531, %v465
    %v536 = vsel %vm503, %v532, %v466
    %v537 = vsel %vm503, %v533, %v467
    %v538 = vsel %vm143, %v534, %v472
    %v539 = vsel %vm143, %v535, %v473
    %v540 = vsel %vm143, %v536, %v474
    %v541 = vsel %vm143, %v537, %v475
    %v542 = vsel %vm512, %v538, %v480
    %v543 = vsel %vm512, %v539, %v481
    %v544 = vsel %vm512, %v540, %v482
    %v545 = vsel %vm512, %v541, %v483
    %v546 = vsel %vm517, %v542, %v229
    %v547 = vsel %vm517, %v543, %v231
    %v548 = vsel %vm517, %v544, %v306
    %v549 = vsel %vm517, %v545, %v308
    %v550 = vsel %vm488, %v384, %v392
    %v551 = vsel %vm488, %v385, %v393
    %v552 = vsel %vm488, %v386, %v394
    %v553 = vsel %vm488, %v387, %v395
    %v554 = vsel %vm493, %v550, %v432
    %v555 = vsel %vm493, %v551, %v433
    %v556 = vsel %vm493, %v552, %v434
    %v557 = vsel %vm493, %v553, %v435
    %v558 = vsel %vm498, %v554, %v440
    %v559 = vsel %vm498, %v555, %v441
    %v560 = vsel %vm498, %v556, %v442
    %v561 = vsel %vm498, %v557, %v443
    %v562 = vsel %vm503, %v558, %v480
    %v563 = vsel %vm503, %v559, %v481
    %v564 = vsel %vm503, %v560, %v482
    %v565 = vsel %vm503, %v561, %v483
    %v566 = vsel %vm143, %v562, %v229
    %v567 = vsel %vm143, %v563, %v231
    %v568 = vsel %vm143, %v564, %v306
    %v569 = vsel %vm143, %v565, %v308
    %v570 = vsel %vm512, %v566, %v400
    %v571 = vsel %vm512, %v567, %v401
    %v572 = vsel %vm512, %v568, %v402
    %v573 = vsel %vm512, %v569, %v403
    %v574 = vsel %vm517, %v570, %v408
    %v575 = vsel %vm517, %v571, %v409
    %v576 = vsel %vm517, %v572, %v410
    %v577 = vsel %vm517, %v573, %v411
    %v578 = vsel %vm488, %v448, %v456
    %v579 = vsel %vm488, %v449, %v457
    %v580 = vsel %vm488, %v450, %v458
    %v581 = vsel %vm488, %v451, %v459
    %v582 = vsel %vm493, %v578, %v223
    %v583 = vsel %vm493, %v579, %v225
    %v584 = vsel %vm493, %v580, %v300
    %v585 = vsel %vm493, %v581, %v302
    %v586 = vsel %vm498, %v582, %v372
    %v587 = vsel %vm498, %v583, %v373
    %v588 = vsel %vm498, %v584, %v374
    %v589 = vsel %vm498, %v585, %v375
    %v590 = vsel %vm503, %v586, %v416
    %v591 = vsel %vm503, %v587, %v417
    %v592 = vsel %vm503, %v588, %v418
    %v593 = vsel %vm503, %v589, %v419
    %v594 = vsel %vm143, %v590, %v424
    %v595 = vsel %vm143, %v591, %v425
    %v596 = vsel %vm143, %v592, %v426
    %v597 = vsel %vm143, %v593, %v427
    %v598 = vsel %vm512, %v594, %v464
    %v599 = vsel %vm512, %v595, %v465
    %v600 = vsel %vm512, %v596, %v466
    %v601 = vsel %vm512, %v597, %v467
    %v602 = vsel %vm517, %v598, %v472
    %v603 = vsel %vm517, %v599, %v473
    %v604 = vsel %vm517, %v600, %v474
    %v605 = vsel %vm517, %v601, %v475
    %v606 = vsel %vm363, 1, 0
    %v607 = vsel %vm364, 1, 0
    %v608 = vsel %vm365, 1, 0
    %v609 = vsel %vm366, 1, 0
    %vm610 = vcmp.eq.s32.totalorder %v606, 1
    %vm611 = vcmp.eq.s32.totalorder %v607, 1
    %vm612 = vcmp.eq.s32.totalorder %v608, 1
    %vm613 = vcmp.eq.s32.totalorder %v609, 1
    %v614 = vsel %vm610, %v518, %v574
    %v615 = vsel %vm611, %v519, %v575
    %v616 = vsel %vm612, %v520, %v576
    %v617 = vsel %vm613, %v521, %v577
    %v618 = vsel %vm610, %v546, %v602
    %v619 = vsel %vm611, %v547, %v603
    %v620 = vsel %vm612, %v548, %v604
    %v621 = vsel %vm613, %v549, %v605
    %v622 = vld [vmem:[#allocation7] sm:$0xff]
    %v623 = vld [vmem:[#allocation7 + $0x8] sm:$0xff]
    %v624 = vld [vmem:[#allocation7 + $0x10] sm:$0xff]
    %v625 = vld [vmem:[#allocation7 + $0x18] sm:$0xff]
    %v626 = vld [vmem:[#allocation7 + $0x20] sm:$0xff]
    %v627 = vld [vmem:[#allocation7 + $0x28] sm:$0xff]
    %v628 = vld [vmem:[#allocation7 + $0x30] sm:$0xff]
    %v629 = vld [vmem:[#allocation7 + $0x38] sm:$0xff]
    %v630 = vld [vmem:[#allocation7 + $0x40] sm:$0xff]
    %v631 = vld [vmem:[#allocation7 + $0x48] sm:$0xff]
    %v632 = vld [vmem:[#allocation7 + $0x50] sm:$0xff]
    %v633 = vld [vmem:[#allocation7 + $0x58] sm:$0xff]
    %v634 = vld [vmem:[#allocation7 + $0x60] sm:$0xff]
    %v635 = vld [vmem:[#allocation7 + $0x68] sm:$0xff]
    %v636 = vld [vmem:[#allocation7 + $0x70] sm:$0xff]
    %v637 = vld [vmem:[#allocation7 + $0x78] sm:$0xff]
    %v638 = vld [vmem:[#allocation7 + $0x80] sm:$0xff]
    %v639 = vld [vmem:[#allocation7 + $0x88] sm:$0xff]
    %v640 = vld [vmem:[#allocation7 + $0x90] sm:$0xff]
    %v641 = vld [vmem:[#allocation7 + $0x98] sm:$0xff]
    %v642 = vld [vmem:[#allocation7 + $0xa0] sm:$0xff]
    %v643 = vld [vmem:[#allocation7 + $0xa8] sm:$0xff]
    %v644 = vld [vmem:[#allocation7 + $0xb0] sm:$0xff]
    %v645 = vld [vmem:[#allocation7 + $0xb8] sm:$0xff]
    %v646 = vld [vmem:[#allocation7 + $0xc0] sm:$0xff]
    %v647 = vld [vmem:[#allocation7 + $0xc8] sm:$0xff]
    %v648 = vld [vmem:[#allocation7 + $0xd0] sm:$0xff]
    %v649 = vld [vmem:[#allocation7 + $0xd8] sm:$0xff]
    %v650 = vld [vmem:[#allocation7 + $0xe0] sm:$0xff]
    %v651 = vld [vmem:[#allocation7 + $0xe8] sm:$0xff]
    %v652 = vld [vmem:[#allocation7 + $0xf0] sm:$0xff]
    %v653 = vld [vmem:[#allocation7 + $0xf8] sm:$0xff]
    %v654 = vld [vmem:[#allocation7 + $0x100] sm:$0xff]
    %v655 = vld [vmem:[#allocation7 + $0x108] sm:$0xff]
    %v656 = vld [vmem:[#allocation7 + $0x110] sm:$0xff]
    %v657 = vld [vmem:[#allocation7 + $0x118] sm:$0xff]
    %v658 = vld [vmem:[#allocation7 + $0x120] sm:$0xff]
    %v659 = vld [vmem:[#allocation7 + $0x128] sm:$0xff]
    %v660 = vld [vmem:[#allocation7 + $0x130] sm:$0xff]
    %v661 = vld [vmem:[#allocation7 + $0x138] sm:$0xff]
    %v662 = vld [vmem:[#allocation7 + $0x140] sm:$0xff]
    %v663 = vld [vmem:[#allocation7 + $0x148] sm:$0xff]
    %v664 = vld [vmem:[#allocation7 + $0x150] sm:$0xff]
    %v665 = vld [vmem:[#allocation7 + $0x158] sm:$0xff]
    %v666 = vld [vmem:[#allocation7 + $0x160] sm:$0xff]
    %v667 = vld [vmem:[#allocation7 + $0x168] sm:$0xff]
    %v668 = vld [vmem:[#allocation7 + $0x170] sm:$0xff]
    %v669 = vld [vmem:[#allocation7 + $0x178] sm:$0xff]
    %v670 = vld [vmem:[#allocation7 + $0x180] sm:$0xff]
    %v671 = vld [vmem:[#allocation7 + $0x188] sm:$0xff]
    %v672 = vld [vmem:[#allocation7 + $0x190] sm:$0xff]
    %v673 = vld [vmem:[#allocation7 + $0x198] sm:$0xff]
    %v674 = vld [vmem:[#allocation7 + $0x1a0] sm:$0xff]
    %v675 = vld [vmem:[#allocation7 + $0x1a8] sm:$0xff]
    %v676 = vld [vmem:[#allocation7 + $0x1b0] sm:$0xff]
    %v677 = vld [vmem:[#allocation7 + $0x1b8] sm:$0xff]
    %v678 = vld [vmem:[#allocation7 + $0x1c0] sm:$0xff]
    %v679 = vld [vmem:[#allocation7 + $0x1c8] sm:$0xff]
    %v680 = vld [vmem:[#allocation7 + $0x1d0] sm:$0xff]
    %v681 = vld [vmem:[#allocation7 + $0x1d8] sm:$0xff]
    %v682 = vld [vmem:[#allocation7 + $0x1e0] sm:$0xff]
    %v683 = vld [vmem:[#allocation7 + $0x1e8] sm:$0xff]
    %v684 = vld [vmem:[#allocation7 + $0x1f0] sm:$0xff]
    %v685 = vld [vmem:[#allocation7 + $0x1f8] sm:$0xff]
    %686 = vmatprep.subr.mxu0 %v623
    %687 = vmatpush1.msra.mxu0 %v622
    %688 = vmatprep.subr.mxu0 %v627
    %689 = vmatpush1.msra.mxu0 %v626
    %690 = vmatprep.subr.mxu0 %v631
    %691 = vmatpush1.msra.mxu0 %v630
    %692 = vmatprep.subr.mxu0 %v635
    %693 = vmatpush1.msra.mxu0 %v634
    %694 = vmatprep.subr.mxu0 %v639
    %695 = vmatpush1.msra.mxu0 %v638
    %696 = vmatprep.subr.mxu0 %v643
    %697 = vmatpush1.msra.mxu0 %v642
    %698 = vmatprep.subr.mxu0 %v647
    %699 = vmatpush1.msra.mxu0 %v646
    %700 = vmatprep.subr.mxu0 %v651
    %701 = vmatpush1.msra.mxu0 %v650
    %702 = vmatprep.subr.mxu0 %v655
    %703 = vmatpush1.msra.mxu0 %v654
    %704 = vmatprep.subr.mxu0 %v659
    %705 = vmatpush1.msra.mxu0 %v658
    %706 = vmatprep.subr.mxu0 %v663
    %707 = vmatpush1.msra.mxu0 %v662
    %708 = vmatprep.subr.mxu0 %v667
    %709 = vmatpush1.msra.mxu0 %v666
    %710 = vmatprep.subr.mxu0 %v671
    %711 = vmatpush1.msra.mxu0 %v670
    %712 = vmatprep.subr.mxu0 %v675
    %713 = vmatpush1.msra.mxu0 %v674
    %714 = vmatprep.subr.mxu0 %v679
    %715 = vmatpush1.msra.mxu0 %v678
    %716 = vmatprep.subr.mxu0 %v683
    %717 = vmatpush1.msra.mxu0 %v682
    %718 = vmatprep.subr.mxu0 0.0
    %719 = vmatpush1.msra.mxu0 0.0
    %720 = vmatprep.subr.mxu0 0.0
    %721 = vmatpush1.msra.mxu0 0.0
    %722 = vmatprep.subr.mxu0 0.0
    %723 = vmatpush1.msra.mxu0 0.0
    %724 = vmatprep.subr.mxu0 0.0
    %725 = vmatpush1.msra.mxu0 0.0
    %726 = vmatprep.subr.mxu0 0.0
    %727 = vmatpush1.msra.mxu0 0.0
    %728 = vmatprep.subr.mxu0 0.0
    %729 = vmatpush1.msra.mxu0 0.0
    %730 = vmatprep.subr.mxu0 0.0
    %731 = vmatpush1.msra.mxu0 0.0
    %732 = vmatprep.subr.mxu0 0.0
    %733 = vmatpush1.msra.mxu0 0.0
    %734 = vmatprep.subr.mxu0 0.0
    %735 = vmatpush1.msra.mxu0 0.0
    %736 = vmatprep.subr.mxu0 0.0
    %737 = vmatpush1.msra.mxu0 0.0
    %738 = vmatprep.subr.mxu0 0.0
    %739 = vmatpush1.msra.mxu0 0.0
    %740 = vmatprep.subr.mxu0 0.0
    %741 = vmatpush1.msra.mxu0 0.0
    %742 = vmatprep.subr.mxu0 0.0
    %743 = vmatpush1.msra.mxu0 0.0
    %744 = vmatprep.subr.mxu0 0.0
    %745 = vmatpush1.msra.mxu0 0.0
    %746 = vmatprep.subr.mxu0 0.0
    %747 = vmatpush1.msra.mxu0 0.0
    %748 = vmatprep.subr.mxu0 0.0
    %749 = vmatpush1.msra.mxu0 0.0
    %750 = vmatprep.mubr.f32.mxu0 0.0
    %751 = vmatmul.mubr.f32.gmra.mrb[0].mxu0 0.0
    %v752 = vpop.f32.mrb[0].mxu0
    %v753 = vadd.f32 0.0, %v752
    %v754 = vpop.f32.mrb[0].mxu0
    %v755 = vadd.f32 0.0, %v754
    %756 = vdwg.mxu0
    %757 = vmatprep.subr.mxu0 %v625
    %758 = vmatpush1.msra.mxu0 %v624
    %759 = vmatprep.subr.mxu0 %v629
    %760 = vmatpush1.msra.mxu0 %v628
    %761 = vmatprep.subr.mxu0 %v633
    %762 = vmatpush1.msra.mxu0 %v632
    %763 = vmatprep.subr.mxu0 %v637
    %764 = vmatpush1.msra.mxu0 %v636
    %765 = vmatprep.subr.mxu0 %v641
    %766 = vmatpush1.msra.mxu0 %v640
    %767 = vmatprep.subr.mxu0 %v645
    %768 = vmatpush1.msra.mxu0 %v644
    %769 = vmatprep.subr.mxu0 %v649
    %770 = vmatpush1.msra.mxu0 %v648
    %771 = vmatprep.subr.mxu0 %v653
    %772 = vmatpush1.msra.mxu0 %v652
    %773 = vmatprep.subr.mxu0 %v657
    %774 = vmatpush1.msra.mxu0 %v656
    %775 = vmatprep.subr.mxu0 %v661
    %776 = vmatpush1.msra.mxu0 %v660
    %777 = vmatprep.subr.mxu0 %v665
    %778 = vmatpush1.msra.mxu0 %v664
    %779 = vmatprep.subr.mxu0 %v669
    %780 = vmatpush1.msra.mxu0 %v668
    %781 = vmatprep.subr.mxu0 %v673
    %782 = vmatpush1.msra.mxu0 %v672
    %783 = vmatprep.subr.mxu0 %v677
    %784 = vmatpush1.msra.mxu0 %v676
    %785 = vmatprep.subr.mxu0 %v681
    %786 = vmatpush1.msra.mxu0 %v680
    %787 = vmatprep.subr.mxu0 %v685
    %788 = vmatpush1.msra.mxu0 %v684
    %789 = vmatprep.subr.mxu0 0.0
    %790 = vmatpush1.msra.mxu0 0.0
    %791 = vmatprep.subr.mxu0 0.0
    %792 = vmatpush1.msra.mxu0 0.0
    %793 = vmatprep.subr.mxu0 0.0
    %794 = vmatpush1.msra.mxu0 0.0
    %795 = vmatprep.subr.mxu0 0.0
    %796 = vmatpush1.msra.mxu0 0.0
    %797 = vmatprep.subr.mxu0 0.0
    %798 = vmatpush1.msra.mxu0 0.0
    %799 = vmatprep.subr.mxu0 0.0
    %800 = vmatpush1.msra.mxu0 0.0
    %801 = vmatprep.subr.mxu0 0.0
    %802 = vmatpush1.msra.mxu0 0.0
    %803 = vmatprep.subr.mxu0 0.0
    %804 = vmatpush1.msra.mxu0 0.0
    %805 = vmatprep.subr.mxu0 0.0
    %806 = vmatpush1.msra.mxu0 0.0
    %807 = vmatprep.subr.mxu0 0.0
    %808 = vmatpush1.msra.mxu0 0.0
    %809 = vmatprep.subr.mxu0 0.0
    %810 = vmatpush1.msra.mxu0 0.0
    %811 = vmatprep.subr.mxu0 0.0
    %812 = vmatpush1.msra.mxu0 0.0
    %813 = vmatprep.subr.mxu0 0.0
    %814 = vmatpush1.msra.mxu0 0.0
    %815 = vmatprep.subr.mxu0 0.0
    %816 = vmatpush1.msra.mxu0 0.0
    %817 = vmatprep.subr.mxu0 0.0
    %818 = vmatpush1.msra.mxu0 0.0
    %819 = vmatprep.subr.mxu0 0.0
    %820 = vmatpush1.msra.mxu0 0.0
    %821 = vmatprep.mubr.f32.mxu0 0.0
    %822 = vmatmul.mubr.f32.gmra.mrb[0].mxu0 0.0
    %v823 = vpop.f32.mrb[0].mxu0
    %v824 = vadd.f32 0.0, %v823
    %v825 = vpop.f32.mrb[0].mxu0
    %v826 = vadd.f32 0.0, %v825
    %827 = vdwg.mxu0
    %v828 = vadd.f32 %v614, %v753
    %v829 = vadd.f32 %v615, %v755
    %v830 = vadd.f32 %v616, %v824
    %v831 = vadd.f32 %v617, %v826
    %v832 = vxor.u32 %v828, 2147483648
    %v833 = vxor.u32 %v829, 2147483648
    %v834 = vxor.u32 %v830, 2147483648
    %v835 = vmul.f32 %v832, 1.442695
    %v836 = vpow.pop %v835
    %v837 = vmul.f32 %v833, 1.442695
    %v838 = vpow.pop %v837
    %v839 = vmul.f32 %v834, 1.442695
    %v840 = vpow.pop %v839
    %v841 = vadd.f32 %v836, 1.0
    %v842 = vadd.f32 %v838, 1.0
    %v843 = vadd.f32 %v840, 1.0
    %v844 = vrcp.pop %v841
    %v845 = vmul.f32 1.0, %v844
    %v846 = vrcp.pop %v842
    %v847 = vmul.f32 1.0, %v846
    %v848 = vrcp.pop %v843
    %v849 = vmul.f32 1.0, %v848
    %v850 = vtanh.pop %v831
    %v851 = vmul.f32 %v847, 0.0
    %v852 = vmul.f32 %v845, %v850
    %v853 = vadd.f32 %v851, %v852
    %v854 = vtanh.pop %v853
    %v855 = vmul.f32 %v849, %v854
    %856 = vmatprep.subr.mxu0 %v623
    %857 = vmatpush1.msra.mxu0 %v622
    %858 = vmatprep.subr.mxu0 %v627
    %859 = vmatpush1.msra.mxu0 %v626
    %860 = vmatprep.subr.mxu0 %v631
    %861 = vmatpush1.msra.mxu0 %v630
    %862 = vmatprep.subr.mxu0 %v635
    %863 = vmatpush1.msra.mxu0 %v634
    %864 = vmatprep.subr.mxu0 %v639
    %865 = vmatpush1.msra.mxu0 %v638
    %866 = vmatprep.subr.mxu0 %v643
    %867 = vmatpush1.msra.mxu0 %v642
    %868 = vmatprep.subr.mxu0 %v647
    %869 = vmatpush1.msra.mxu0 %v646
    %870 = vmatprep.subr.mxu0 %v651
    %871 = vmatpush1.msra.mxu0 %v650
    %872 = vmatprep.subr.mxu0 %v655
    %873 = vmatpush1.msra.mxu0 %v654
    %874 = vmatprep.subr.mxu0 %v659
    %875 = vmatpush1.msra.mxu0 %v658
    %876 = vmatprep.subr.mxu0 %v663
    %877 = vmatpush1.msra.mxu0 %v662
    %878 = vmatprep.subr.mxu0 %v667
    %879 = vmatpush1.msra.mxu0 %v666
    %880 = vmatprep.subr.mxu0 %v671
    %881 = vmatpush1.msra.mxu0 %v670
    %882 = vmatprep.subr.mxu0 %v675
    %883 = vmatpush1.msra.mxu0 %v674
    %884 = vmatprep.subr.mxu0 %v679
    %885 = vmatpush1.msra.mxu0 %v678
    %886 = vmatprep.subr.mxu0 %v683
    %887 = vmatpush1.msra.mxu0 %v682
    %888 = vmatprep.subr.mxu0 0.0
    %889 = vmatpush1.msra.mxu0 0.0
    %890 = vmatprep.subr.mxu0 0.0
    %891 = vmatpush1.msra.mxu0 0.0
    %892 = vmatprep.subr.mxu0 0.0
    %893 = vmatpush1.msra.mxu0 0.0
    %894 = vmatprep.subr.mxu0 0.0
    %895 = vmatpush1.msra.mxu0 0.0
    %896 = vmatprep.subr.mxu0 0.0
    %897 = vmatpush1.msra.mxu0 0.0
    %898 = vmatprep.subr.mxu0 0.0
    %899 = vmatpush1.msra.mxu0 0.0
    %900 = vmatprep.subr.mxu0 0.0
    %901 = vmatpush1.msra.mxu0 0.0
    %902 = vmatprep.subr.mxu0 0.0
    %903 = vmatpush1.msra.mxu0 0.0
    %904 = vmatprep.subr.mxu0 0.0
    %905 = vmatpush1.msra.mxu0 0.0
    %906 = vmatprep.subr.mxu0 0.0
    %907 = vmatpush1.msra.mxu0 0.0
    %908 = vmatprep.subr.mxu0 0.0
    %909 = vmatpush1.msra.mxu0 0.0
    %910 = vmatprep.subr.mxu0 0.0
    %911 = vmatpush1.msra.mxu0 0.0
    %912 = vmatprep.subr.mxu0 0.0
    %913 = vmatpush1.msra.mxu0 0.0
    %914 = vmatprep.subr.mxu0 0.0
    %915 = vmatpush1.msra.mxu0 0.0
    %916 = vmatprep.subr.mxu0 0.0
    %917 = vmatpush1.msra.mxu0 0.0
    %918 = vmatprep.subr.mxu0 0.0
    %919 = vmatpush1.msra.mxu0 0.0
    %920 = vmatprep.mubr.f32.mxu0 0.0
    %921 = vmatmul.mubr.f32.gmra.mrb[0].mxu0 %v855
    %v922 = vpop.f32.mrb[0].mxu0
    %v923 = vadd.f32 0.0, %v922
    %v924 = vpop.f32.mrb[0].mxu0
    %v925 = vadd.f32 0.0, %v924
    %926 = vdwg.mxu0
    %927 = vmatprep.subr.mxu0 %v625
    %928 = vmatpush1.msra.mxu0 %v624
    %929 = vmatprep.subr.mxu0 %v629
    %930 = vmatpush1.msra.mxu0 %v628
    %931 = vmatprep.subr.mxu0 %v633
    %932 = vmatpush1.msra.mxu0 %v632
    %933 = vmatprep.subr.mxu0 %v637
    %934 = vmatpush1.msra.mxu0 %v636
    %935 = vmatprep.subr.mxu0 %v641
    %936 = vmatpush1.msra.mxu0 %v640
    %937 = vmatprep.subr.mxu0 %v645
    %938 = vmatpush1.msra.mxu0 %v644
    %939 = vmatprep.subr.mxu0 %v649
    %940 = vmatpush1.msra.mxu0 %v648
    %941 = vmatprep.subr.mxu0 %v653
    %942 = vmatpush1.msra.mxu0 %v652
    %943 = vmatprep.subr.mxu0 %v657
    %944 = vmatpush1.msra.mxu0 %v656
    %945 = vmatprep.subr.mxu0 %v661
    %946 = vmatpush1.msra.mxu0 %v660
    %947 = vmatprep.subr.mxu0 %v665
    %948 = vmatpush1.msra.mxu0 %v664
    %949 = vmatprep.subr.mxu0 %v669
    %950 = vmatpush1.msra.mxu0 %v668
    %951 = vmatprep.subr.mxu0 %v673
    %952 = vmatpush1.msra.mxu0 %v672
    %953 = vmatprep.subr.mxu0 %v677
    %954 = vmatpush1.msra.mxu0 %v676
    %955 = vmatprep.subr.mxu0 %v681
    %956 = vmatpush1.msra.mxu0 %v680
    %957 = vmatprep.subr.mxu0 %v685
    %958 = vmatpush1.msra.mxu0 %v684
    %959 = vmatprep.subr.mxu0 0.0
    %960 = vmatpush1.msra.mxu0 0.0
    %961 = vmatprep.subr.mxu0 0.0
    %962 = vmatpush1.msra.mxu0 0.0
    %963 = vmatprep.subr.mxu0 0.0
    %964 = vmatpush1.msra.mxu0 0.0
    %965 = vmatprep.subr.mxu0 0.0
    %966 = vmatpush1.msra.mxu0 0.0
    %967 = vmatprep.subr.mxu0 0.0
    %968 = vmatpush1.msra.mxu0 0.0
    %969 = vmatprep.subr.mxu0 0.0
    %970 = vmatpush1.msra.mxu0 0.0
    %971 = vmatprep.subr.mxu0 0.0
    %972 = vmatpush1.msra.mxu0 0.0
    %973 = vmatprep.subr.mxu0 0.0
    %974 = vmatpush1.msra.mxu0 0.0
    %975 = vmatprep.subr.mxu0 0.0
    %976 = vmatpush1.msra.mxu0 0.0
    %977 = vmatprep.subr.mxu0 0.0
    %978 = vmatpush1.msra.mxu0 0.0
    %979 = vmatprep.subr.mxu0 0.0
    %980 = vmatpush1.msra.mxu0 0.0
    %981 = vmatprep.subr.mxu0 0.0
    %982 = vmatpush1.msra.mxu0 0.0
    %983 = vmatprep.subr.mxu0 0.0
    %984 = vmatpush1.msra.mxu0 0.0
    %985 = vmatprep.subr.mxu0 0.0
    %986 = vmatpush1.msra.mxu0 0.0
    %987 = vmatprep.subr.mxu0 0.0
    %988 = vmatpush1.msra.mxu0 0.0
    %989 = vmatprep.subr.mxu0 0.0
    %990 = vmatpush1.msra.mxu0 0.0
    %991 = vmatprep.mubr.f32.mxu0 0.0
    %992 = vmatmul.mubr.f32.gmra.mrb[0].mxu0 %v855
    %v993 = vpop.f32.mrb[0].mxu0
    %v994 = vadd.f32 0.0, %v993
    %v995 = vpop.f32.mrb[0].mxu0
    %v996 = vadd.f32 0.0, %v995
    %997 = vdwg.mxu0
    %v1002 = vrot.slane %v923, 6
    %v1003 = vrot.slane %v925, 6
    %v1004 = vrot.slane %v994, 6
    %v1005 = vrot.slane %v996, 6
    %v1010 = vadd.f32 %v614, %v1002
    %v1011 = vadd.f32 %v615, %v1003
    %v1012 = vadd.f32 %v616, %v1004
    %v1013 = vadd.f32 %v617, %v1005
    %v1014 = vxor.u32 %v1010, 2147483648
    %v1015 = vxor.u32 %v1011, 2147483648
    %v1016 = vxor.u32 %v1012, 2147483648
    %v1017 = vmul.f32 %v1014, 1.442695
    %v1018 = vpow.pop %v1017
    %v1019 = vmul.f32 %v1015, 1.442695
    %v1020 = vpow.pop %v1019
    %v1021 = vmul.f32 %v1016, 1.442695
    %v1022 = vpow.pop %v1021
    %v1023 = vadd.f32 %v1018, 1.0
    %v1024 = vadd.f32 %v1020, 1.0
    %v1025 = vadd.f32 %v1022, 1.0
    %v1026 = vrcp.pop %v1023
    %v1027 = vmul.f32 1.0, %v1026
    %v1028 = vrcp.pop %v1024
    %v1029 = vmul.f32 1.0, %v1028
    %v1030 = vrcp.pop %v1025
    %v1031 = vmul.f32 1.0, %v1030
    %v1032 = vtanh.pop %v1013
    %v1034 = vrot.slane %v853, 6
    %v1036 = vmul.f32 %v1029, %v1034
    %v1037 = vmul.f32 %v1027, %v1032
    %v1038 = vadd.f32 %v1036, %v1037
    %v1039 = vtanh.pop %v1038
    %v1040 = vmul.f32 %v1031, %v1039
    %v1042 = vrot.slane %v1040, 2
    %1044 = vmatprep.subr.mxu0 %v623
    %1045 = vmatpush1.msra.mxu0 %v622
    %1046 = vmatprep.subr.mxu0 %v627
    %1047 = vmatpush1.msra.mxu0 %v626
    %1048 = vmatprep.subr.mxu0 %v631
    %1049 = vmatpush1.msra.mxu0 %v630
    %1050 = vmatprep.subr.mxu0 %v635
    %1051 = vmatpush1.msra.mxu0 %v634
    %1052 = vmatprep.subr.mxu0 %v639
    %1053 = vmatpush1.msra.mxu0 %v638
    %1054 = vmatprep.subr.mxu0 %v643
    %1055 = vmatpush1.msra.mxu0 %v642
    %1056 = vmatprep.subr.mxu0 %v647
    %1057 = vmatpush1.msra.mxu0 %v646
    %1058 = vmatprep.subr.mxu0 %v651
    %1059 = vmatpush1.msra.mxu0 %v650
    %1060 = vmatprep.subr.mxu0 %v655
    %1061 = vmatpush1.msra.mxu0 %v654
    %1062 = vmatprep.subr.mxu0 %v659
    %1063 = vmatpush1.msra.mxu0 %v658
    %1064 = vmatprep.subr.mxu0 %v663
    %1065 = vmatpush1.msra.mxu0 %v662
    %1066 = vmatprep.subr.mxu0 %v667
    %1067 = vmatpush1.msra.mxu0 %v666
    %1068 = vmatprep.subr.mxu0 %v671
    %1069 = vmatpush1.msra.mxu0 %v670
    %1070 = vmatprep.subr.mxu0 %v675
    %1071 = vmatpush1.msra.mxu0 %v674
    %1072 = vmatprep.subr.mxu0 %v679
    %1073 = vmatpush1.msra.mxu0 %v678
    %1074 = vmatprep.subr.mxu0 %v683
    %1075 = vmatpush1.msra.mxu0 %v682
    %1076 = vmatprep.subr.mxu0 0.0
    %1077 = vmatpush1.msra.mxu0 0.0
    %1078 = vmatprep.subr.mxu0 0.0
    %1079 = vmatpush1.msra.mxu0 0.0
    %1080 = vmatprep.subr.mxu0 0.0
    %1081 = vmatpush1.msra.mxu0 0.0
    %1082 = vmatprep.subr.mxu0 0.0
    %1083 = vmatpush1.msra.mxu0 0.0
    %1084 = vmatprep.subr.mxu0 0.0
    %1085 = vmatpush1.msra.mxu0 0.0
    %1086 = vmatprep.subr.mxu0 0.0
    %1087 = vmatpush1.msra.mxu0 0.0
    %1088 = vmatprep.subr.mxu0 0.0
    %1089 = vmatpush1.msra.mxu0 0.0
    %1090 = vmatprep.subr.mxu0 0.0
    %1091 = vmatpush1.msra.mxu0 0.0
    %1092 = vmatprep.subr.mxu0 0.0
    %1093 = vmatpush1.msra.mxu0 0.0
    %1094 = vmatprep.subr.mxu0 0.0
    %1095 = vmatpush1.msra.mxu0 0.0
    %1096 = vmatprep.subr.mxu0 0.0
    %1097 = vmatpush1.msra.mxu0 0.0
    %1098 = vmatprep.subr.mxu0 0.0
    %1099 = vmatpush1.msra.mxu0 0.0
    %1100 = vmatprep.subr.mxu0 0.0
    %1101 = vmatpush1.msra.mxu0 0.0
    %1102 = vmatprep.subr.mxu0 0.0
    %1103 = vmatpush1.msra.mxu0 0.0
    %1104 = vmatprep.subr.mxu0 0.0
    %1105 = vmatpush1.msra.mxu0 0.0
    %1106 = vmatprep.subr.mxu0 0.0
    %1107 = vmatpush1.msra.mxu0 0.0
    %1108 = vmatprep.mubr.f32.mxu0 0.0
    %1109 = vmatmul.mubr.f32.gmra.mrb[0].mxu0 %v1042
    %v1110 = vpop.f32.mrb[0].mxu0
    %v1111 = vadd.f32 0.0, %v1110
    %v1112 = vpop.f32.mrb[0].mxu0
    %v1113 = vadd.f32 0.0, %v1112
    %1114 = vdwg.mxu0
    %1115 = vmatprep.subr.mxu0 %v625
    %1116 = vmatpush1.msra.mxu0 %v624
    %1117 = vmatprep.subr.mxu0 %v629
    %1118 = vmatpush1.msra.mxu0 %v628
    %1119 = vmatprep.subr.mxu0 %v633
    %1120 = vmatpush1.msra.mxu0 %v632
    %1121 = vmatprep.subr.mxu0 %v637
    %1122 = vmatpush1.msra.mxu0 %v636
    %1123 = vmatprep.subr.mxu0 %v641
    %1124 = vmatpush1.msra.mxu0 %v640
    %1125 = vmatprep.subr.mxu0 %v645
    %1126 = vmatpush1.msra.mxu0 %v644
    %1127 = vmatprep.subr.mxu0 %v649
    %1128 = vmatpush1.msra.mxu0 %v648
    %1129 = vmatprep.subr.mxu0 %v653
    %1130 = vmatpush1.msra.mxu0 %v652
    %1131 = vmatprep.subr.mxu0 %v657
    %1132 = vmatpush1.msra.mxu0 %v656
    %1133 = vmatprep.subr.mxu0 %v661
    %1134 = vmatpush1.msra.mxu0 %v660
    %1135 = vmatprep.subr.mxu0 %v665
    %1136 = vmatpush1.msra.mxu0 %v664
    %1137 = vmatprep.subr.mxu0 %v669
    %1138 = vmatpush1.msra.mxu0 %v668
    %1139 = vmatprep.subr.mxu0 %v673
    %1140 = vmatpush1.msra.mxu0 %v672
    %1141 = vmatprep.subr.mxu0 %v677
    %1142 = vmatpush1.msra.mxu0 %v676
    %1143 = vmatprep.subr.mxu0 %v681
    %1144 = vmatpush1.msra.mxu0 %v680
    %1145 = vmatprep.subr.mxu0 %v685
    %1146 = vmatpush1.msra.mxu0 %v684
    %1147 = vmatprep.subr.mxu0 0.0
    %1148 = vmatpush1.msra.mxu0 0.0
    %1149 = vmatprep.subr.mxu0 0.0
    %1150 = vmatpush1.msra.mxu0 0.0
    %1151 = vmatprep.subr.mxu0 0.0
    %1152 = vmatpush1.msra.mxu0 0.0
    %1153 = vmatprep.subr.mxu0 0.0
    %1154 = vmatpush1.msra.mxu0 0.0
    %1155 = vmatprep.subr.mxu0 0.0
    %1156 = vmatpush1.msra.mxu0 0.0
    %1157 = vmatprep.subr.mxu0 0.0
    %1158 = vmatpush1.msra.mxu0 0.0
    %1159 = vmatprep.subr.mxu0 0.0
    %1160 = vmatpush1.msra.mxu0 0.0
    %1161 = vmatprep.subr.mxu0 0.0
    %1162 = vmatpush1.msra.mxu0 0.0
    %1163 = vmatprep.subr.mxu0 0.0
    %1164 = vmatpush1.msra.mxu0 0.0
    %1165 = vmatprep.subr.mxu0 0.0
    %1166 = vmatpush1.msra.mxu0 0.0
    %1167 = vmatprep.subr.mxu0 0.0
    %1168 = vmatpush1.msra.mxu0 0.0
    %1169 = vmatprep.subr.mxu0 0.0
    %1170 = vmatpush1.msra.mxu0 0.0
    %1171 = vmatprep.subr.mxu0 0.0
    %1172 = vmatpush1.msra.mxu0 0.0
    %1173 = vmatprep.subr.mxu0 0.0
    %1174 = vmatpush1.msra.mxu0 0.0
    %1175 = vmatprep.subr.mxu0 0.0
    %1176 = vmatpush1.msra.mxu0 0.0
    %1177 = vmatprep.subr.mxu0 0.0
    %1178 = vmatpush1.msra.mxu0 0.0
    %1179 = vmatprep.mubr.f32.mxu0 0.0
    %1180 = vmatmul.mubr.f32.gmra.mrb[0].mxu0 %v1042
    %v1181 = vpop.f32.mrb[0].mxu0
    %v1182 = vadd.f32 0.0, %v1181
    %v1183 = vpop.f32.mrb[0].mxu0
    %v1184 = vadd.f32 0.0, %v1183
    %1185 = vdwg.mxu0
    %v1190 = vrot.slane %v1111, 4
    %v1191 = vrot.slane %v1113, 4
    %v1192 = vrot.slane %v1182, 4
    %v1193 = vrot.slane %v1184, 4
    %v1198 = vadd.f32 %v614, %v1190
    %v1199 = vadd.f32 %v615, %v1191
    %v1200 = vadd.f32 %v616, %v1192
    %v1201 = vadd.f32 %v617, %v1193
    %v1202 = vxor.u32 %v1198, 2147483648
    %v1203 = vxor.u32 %v1199, 2147483648
    %v1204 = vxor.u32 %v1200, 2147483648
    %v1205 = vmul.f32 %v1202, 1.442695
    %v1206 = vpow.pop %v1205
    %v1207 = vmul.f32 %v1203, 1.442695
    %v1208 = vpow.pop %v1207
    %v1209 = vmul.f32 %v1204, 1.442695
    %v1210 = vpow.pop %v1209
    %v1211 = vadd.f32 %v1206, 1.0
    %v1212 = vadd.f32 %v1208, 1.0
    %v1213 = vadd.f32 %v1210, 1.0
    %v1214 = vrcp.pop %v1211
    %v1215 = vmul.f32 1.0, %v1214
    %v1216 = vrcp.pop %v1212
    %v1217 = vmul.f32 1.0, %v1216
    %v1218 = vrcp.pop %v1213
    %v1219 = vmul.f32 1.0, %v1218
    %v1220 = vtanh.pop %v1201
    %v1222 = vrot.slane %v1038, 6
    %v1224 = vmul.f32 %v1217, %v1222
    %v1225 = vmul.f32 %v1215, %v1220
    %v1226 = vadd.f32 %v1224, %v1225
    %v1227 = vtanh.pop %v1226
    %v1228 = vmul.f32 %v1219, %v1227
    %v1230 = vrot.slane %v1228, 4
    %1232 = vmatprep.subr.mxu0 %v623
    %1233 = vmatpush1.msra.mxu0 %v622
    %1234 = vmatprep.subr.mxu0 %v627
    %1235 = vmatpush1.msra.mxu0 %v626
    %1236 = vmatprep.subr.mxu0 %v631
    %1237 = vmatpush1.msra.mxu0 %v630
    %1238 = vmatprep.subr.mxu0 %v635
    %1239 = vmatpush1.msra.mxu0 %v634
    %1240 = vmatprep.subr.mxu0 %v639
    %1241 = vmatpush1.msra.mxu0 %v638
    %1242 = vmatprep.subr.mxu0 %v643
    %1243 = vmatpush1.msra.mxu0 %v642
    %1244 = vmatprep.subr.mxu0 %v647
    %1245 = vmatpush1.msra.mxu0 %v646
    %1246 = vmatprep.subr.mxu0 %v651
    %1247 = vmatpush1.msra.mxu0 %v650
    %1248 = vmatprep.subr.mxu0 %v655
    %1249 = vmatpush1.msra.mxu0 %v654
    %1250 = vmatprep.subr.mxu0 %v659
    %1251 = vmatpush1.msra.mxu0 %v658
    %1252 = vmatprep.subr.mxu0 %v663
    %1253 = vmatpush1.msra.mxu0 %v662
    %1254 = vmatprep.subr.mxu0 %v667
    %1255 = vmatpush1.msra.mxu0 %v666
    %1256 = vmatprep.subr.mxu0 %v671
    %1257 = vmatpush1.msra.mxu0 %v670
    %1258 = vmatprep.subr.mxu0 %v675
    %1259 = vmatpush1.msra.mxu0 %v674
    %1260 = vmatprep.subr.mxu0 %v679
    %1261 = vmatpush1.msra.mxu0 %v678
    %1262 = vmatprep.subr.mxu0 %v683
    %1263 = vmatpush1.msra.mxu0 %v682
    %1264 = vmatprep.subr.mxu0 0.0
    %1265 = vmatpush1.msra.mxu0 0.0
    %1266 = vmatprep.subr.mxu0 0.0
    %1267 = vmatpush1.msra.mxu0 0.0
    %1268 = vmatprep.subr.mxu0 0.0
    %1269 = vmatpush1.msra.mxu0 0.0
    %1270 = vmatprep.subr.mxu0 0.0
    %1271 = vmatpush1.msra.mxu0 0.0
    %1272 = vmatprep.subr.mxu0 0.0
    %1273 = vmatpush1.msra.mxu0 0.0
    %1274 = vmatprep.subr.mxu0 0.0
    %1275 = vmatpush1.msra.mxu0 0.0
    %1276 = vmatprep.subr.mxu0 0.0
    %1277 = vmatpush1.msra.mxu0 0.0
    %1278 = vmatprep.subr.mxu0 0.0
    %1279 = vmatpush1.msra.mxu0 0.0
    %1280 = vmatprep.subr.mxu0 0.0
    %1281 = vmatpush1.msra.mxu0 0.0
    %1282 = vmatprep.subr.mxu0 0.0
    %1283 = vmatpush1.msra.mxu0 0.0
    %1284 = vmatprep.subr.mxu0 0.0
    %1285 = vmatpush1.msra.mxu0 0.0
    %1286 = vmatprep.subr.mxu0 0.0
    %1287 = vmatpush1.msra.mxu0 0.0
    %1288 = vmatprep.subr.mxu0 0.0
    %1289 = vmatpush1.msra.mxu0 0.0
    %1290 = vmatprep.subr.mxu0 0.0
    %1291 = vmatpush1.msra.mxu0 0.0
    %1292 = vmatprep.subr.mxu0 0.0
    %1293 = vmatpush1.msra.mxu0 0.0
    %1294 = vmatprep.subr.mxu0 0.0
    %1295 = vmatpush1.msra.mxu0 0.0
    %1296 = vmatprep.mubr.f32.mxu0 0.0
    %1297 = vmatmul.mubr.f32.gmra.mrb[0].mxu0 %v1230
    %v1298 = vpop.f32.mrb[0].mxu0
    %v1299 = vadd.f32 0.0, %v1298
    %v1300 = vpop.f32.mrb[0].mxu0
    %v1301 = vadd.f32 0.0, %v1300
    %1302 = vdwg.mxu0
    %1303 = vmatprep.subr.mxu0 %v625
    %1304 = vmatpush1.msra.mxu0 %v624
    %1305 = vmatprep.subr.mxu0 %v629
    %1306 = vmatpush1.msra.mxu0 %v628
    %1307 = vmatprep.subr.mxu0 %v633
    %1308 = vmatpush1.msra.mxu0 %v632
    %1309 = vmatprep.subr.mxu0 %v637
    %1310 = vmatpush1.msra.mxu0 %v636
    %1311 = vmatprep.subr.mxu0 %v641
    %1312 = vmatpush1.msra.mxu0 %v640
    %1313 = vmatprep.subr.mxu0 %v645
    %1314 = vmatpush1.msra.mxu0 %v644
    %1315 = vmatprep.subr.mxu0 %v649
    %1316 = vmatpush1.msra.mxu0 %v648
    %1317 = vmatprep.subr.mxu0 %v653
    %1318 = vmatpush1.msra.mxu0 %v652
    %1319 = vmatprep.subr.mxu0 %v657
    %1320 = vmatpush1.msra.mxu0 %v656
    %1321 = vmatprep.subr.mxu0 %v661
    %1322 = vmatpush1.msra.mxu0 %v660
    %1323 = vmatprep.subr.mxu0 %v665
    %1324 = vmatpush1.msra.mxu0 %v664
    %1325 = vmatprep.subr.mxu0 %v669
    %1326 = vmatpush1.msra.mxu0 %v668
    %1327 = vmatprep.subr.mxu0 %v673
    %1328 = vmatpush1.msra.mxu0 %v672
    %1329 = vmatprep.subr.mxu0 %v677
    %1330 = vmatpush1.msra.mxu0 %v676
    %1331 = vmatprep.subr.mxu0 %v681
    %1332 = vmatpush1.msra.mxu0 %v680
    %1333 = vmatprep.subr.mxu0 %v685
    %1334 = vmatpush1.msra.mxu0 %v684
    %1335 = vmatprep.subr.mxu0 0.0
    %1336 = vmatpush1.msra.mxu0 0.0
    %1337 = vmatprep.subr.mxu0 0.0
    %1338 = vmatpush1.msra.mxu0 0.0
    %1339 = vmatprep.subr.mxu0 0.0
    %1340 = vmatpush1.msra.mxu0 0.0
    %1341 = vmatprep.subr.mxu0 0.0
    %1342 = vmatpush1.msra.mxu0 0.0
    %1343 = vmatprep.subr.mxu0 0.0
    %1344 = vmatpush1.msra.mxu0 0.0
    %1345 = vmatprep.subr.mxu0 0.0
    %1346 = vmatpush1.msra.mxu0 0.0
    %1347 = vmatprep.subr.mxu0 0.0
    %1348 = vmatpush1.msra.mxu0 0.0
    %1349 = vmatprep.subr.mxu0 0.0
    %1350 = vmatpush1.msra.mxu0 0.0
    %1351 = vmatprep.subr.mxu0 0.0
    %1352 = vmatpush1.msra.mxu0 0.0
    %1353 = vmatprep.subr.mxu0 0.0
    %1354 = vmatpush1.msra.mxu0 0.0
    %1355 = vmatprep.subr.mxu0 0.0
    %1356 = vmatpush1.msra.mxu0 0.0
    %1357 = vmatprep.subr.mxu0 0.0
    %1358 = vmatpush1.msra.mxu0 0.0
    %1359 = vmatprep.subr.mxu0 0.0
    %1360 = vmatpush1.msra.mxu0 0.0
    %1361 = vmatprep.subr.mxu0 0.0
    %1362 = vmatpush1.msra.mxu0 0.0
    %1363 = vmatprep.subr.mxu0 0.0
    %1364 = vmatpush1.msra.mxu0 0.0
    %1365 = vmatprep.subr.mxu0 0.0
    %1366 = vmatpush1.msra.mxu0 0.0
    %1367 = vmatprep.mubr.f32.mxu0 0.0
    %1368 = vmatmul.mubr.f32.gmra.mrb[0].mxu0 %v1230
    %v1369 = vpop.f32.mrb[0].mxu0
    %v1370 = vadd.f32 0.0, %v1369
    %v1371 = vpop.f32.mrb[0].mxu0
    %v1372 = vadd.f32 0.0, %v1371
    %1373 = vdwg.mxu0
    %v1378 = vrot.slane %v1299, 2
    %v1379 = vrot.slane %v1301, 2
    %v1380 = vrot.slane %v1370, 2
    %v1381 = vrot.slane %v1372, 2
    %v1386 = vadd.f32 %v614, %v1378
    %v1387 = vadd.f32 %v615, %v1379
    %v1388 = vadd.f32 %v616, %v1380
    %v1389 = vadd.f32 %v617, %v1381
    %v1390 = vxor.u32 %v1386, 2147483648
    %v1391 = vxor.u32 %v1387, 2147483648
    %v1392 = vxor.u32 %v1388, 2147483648
    %v1393 = vmul.f32 %v1390, 1.442695
    %v1394 = vpow.pop %v1393
    %v1395 = vmul.f32 %v1391, 1.442695
    %v1396 = vpow.pop %v1395
    %v1397 = vmul.f32 %v1392, 1.442695
    %v1398 = vpow.pop %v1397
    %v1399 = vadd.f32 %v1394, 1.0
    %v1400 = vadd.f32 %v1396, 1.0
    %v1401 = vadd.f32 %v1398, 1.0
    %v1402 = vrcp.pop %v1399
    %v1403 = vmul.f32 1.0, %v1402
    %v1404 = vrcp.pop %v1400
    %v1405 = vmul.f32 1.0, %v1404
    %v1406 = vrcp.pop %v1401
    %v1407 = vmul.f32 1.0, %v1406
    %v1408 = vtanh.pop %v1389
    %v1410 = vrot.slane %v1226, 6
    %v1412 = vmul.f32 %v1405, %v1410
    %v1413 = vmul.f32 %v1403, %v1408
    %v1414 = vadd.f32 %v1412, %v1413
    %v1415 = vtanh.pop %v1414
    %v1416 = vmul.f32 %v1407, %v1415
    %v1418 = vrot.slane %v1416, 6
    %1420 = vmatprep.subr.mxu0 %v623
    %1421 = vmatpush1.msra.mxu0 %v622
    %1422 = vmatprep.subr.mxu0 %v627
    %1423 = vmatpush1.msra.mxu0 %v626
    %1424 = vmatprep.subr.mxu0 %v631
    %1425 = vmatpush1.msra.mxu0 %v630
    %1426 = vmatprep.subr.mxu0 %v635
    %1427 = vmatpush1.msra.mxu0 %v634
    %1428 = vmatprep.subr.mxu0 %v639
    %1429 = vmatpush1.msra.mxu0 %v638
    %1430 = vmatprep.subr.mxu0 %v643
    %1431 = vmatpush1.msra.mxu0 %v642
    %1432 = vmatprep.subr.mxu0 %v647
    %1433 = vmatpush1.msra.mxu0 %v646
    %1434 = vmatprep.subr.mxu0 %v651
    %1435 = vmatpush1.msra.mxu0 %v650
    %1436 = vmatprep.subr.mxu0 %v655
    %1437 = vmatpush1.msra.mxu0 %v654
    %1438 = vmatprep.subr.mxu0 %v659
    %1439 = vmatpush1.msra.mxu0 %v658
    %1440 = vmatprep.subr.mxu0 %v663
    %1441 = vmatpush1.msra.mxu0 %v662
    %1442 = vmatprep.subr.mxu0 %v667
    %1443 = vmatpush1.msra.mxu0 %v666
    %1444 = vmatprep.subr.mxu0 %v671
    %1445 = vmatpush1.msra.mxu0 %v670
    %1446 = vmatprep.subr.mxu0 %v675
    %1447 = vmatpush1.msra.mxu0 %v674
    %1448 = vmatprep.subr.mxu0 %v679
    %1449 = vmatpush1.msra.mxu0 %v678
    %1450 = vmatprep.subr.mxu0 %v683
    %1451 = vmatpush1.msra.mxu0 %v682
    %1452 = vmatprep.subr.mxu0 0.0
    %1453 = vmatpush1.msra.mxu0 0.0
    %1454 = vmatprep.subr.mxu0 0.0
    %1455 = vmatpush1.msra.mxu0 0.0
    %1456 = vmatprep.subr.mxu0 0.0
    %1457 = vmatpush1.msra.mxu0 0.0
    %1458 = vmatprep.subr.mxu0 0.0
    %1459 = vmatpush1.msra.mxu0 0.0
    %1460 = vmatprep.subr.mxu0 0.0
    %1461 = vmatpush1.msra.mxu0 0.0
    %1462 = vmatprep.subr.mxu0 0.0
    %1463 = vmatpush1.msra.mxu0 0.0
    %1464 = vmatprep.subr.mxu0 0.0
    %1465 = vmatpush1.msra.mxu0 0.0
    %1466 = vmatprep.subr.mxu0 0.0
    %1467 = vmatpush1.msra.mxu0 0.0
    %1468 = vmatprep.subr.mxu0 0.0
    %1469 = vmatpush1.msra.mxu0 0.0
    %1470 = vmatprep.subr.mxu0 0.0
    %1471 = vmatpush1.msra.mxu0 0.0
    %1472 = vmatprep.subr.mxu0 0.0
    %1473 = vmatpush1.msra.mxu0 0.0
    %1474 = vmatprep.subr.mxu0 0.0
    %1475 = vmatpush1.msra.mxu0 0.0
    %1476 = vmatprep.subr.mxu0 0.0
    %1477 = vmatpush1.msra.mxu0 0.0
    %1478 = vmatprep.subr.mxu0 0.0
    %1479 = vmatpush1.msra.mxu0 0.0
    %1480 = vmatprep.subr.mxu0 0.0
    %1481 = vmatpush1.msra.mxu0 0.0
    %1482 = vmatprep.subr.mxu0 0.0
    %1483 = vmatpush1.msra.mxu0 0.0
    %1484 = vmatprep.mubr.f32.mxu0 0.0
    %1485 = vmatmul.mubr.f32.gmra.mrb[0].mxu0 %v1418
    %v1486 = vpop.f32.mrb[0].mxu0
    %v1487 = vadd.f32 0.0, %v1486
    %v1488 = vpop.f32.mrb[0].mxu0
    %v1489 = vadd.f32 0.0, %v1488
    %1490 = vdwg.mxu0
    %1491 = vmatprep.subr.mxu0 %v625
    %1492 = vmatpush1.msra.mxu0 %v624
    %1493 = vmatprep.subr.mxu0 %v629
    %1494 = vmatpush1.msra.mxu0 %v628
    %1495 = vmatprep.subr.mxu0 %v633
    %1496 = vmatpush1.msra.mxu0 %v632
    %1497 = vmatprep.subr.mxu0 %v637
    %1498 = vmatpush1.msra.mxu0 %v636
    %1499 = vmatprep.subr.mxu0 %v641
    %1500 = vmatpush1.msra.mxu0 %v640
    %1501 = vmatprep.subr.mxu0 %v645
    %1502 = vmatpush1.msra.mxu0 %v644
    %1503 = vmatprep.subr.mxu0 %v649
    %1504 = vmatpush1.msra.mxu0 %v648
    %1505 = vmatprep.subr.mxu0 %v653
    %1506 = vmatpush1.msra.mxu0 %v652
    %1507 = vmatprep.subr.mxu0 %v657
    %1508 = vmatpush1.msra.mxu0 %v656
    %1509 = vmatprep.subr.mxu0 %v661
    %1510 = vmatpush1.msra.mxu0 %v660
    %1511 = vmatprep.subr.mxu0 %v665
    %1512 = vmatpush1.msra.mxu0 %v664
    %1513 = vmatprep.subr.mxu0 %v669
    %1514 = vmatpush1.msra.mxu0 %v668
    %1515 = vmatprep.subr.mxu0 %v673
    %1516 = vmatpush1.msra.mxu0 %v672
    %1517 = vmatprep.subr.mxu0 %v677
    %1518 = vmatpush1.msra.mxu0 %v676
    %1519 = vmatprep.subr.mxu0 %v681
    %1520 = vmatpush1.msra.mxu0 %v680
    %1521 = vmatprep.subr.mxu0 %v685
    %1522 = vmatpush1.msra.mxu0 %v684
    %1523 = vmatprep.subr.mxu0 0.0
    %1524 = vmatpush1.msra.mxu0 0.0
    %1525 = vmatprep.subr.mxu0 0.0
    %1526 = vmatpush1.msra.mxu0 0.0
    %1527 = vmatprep.subr.mxu0 0.0
    %1528 = vmatpush1.msra.mxu0 0.0
    %1529 = vmatprep.subr.mxu0 0.0
    %1530 = vmatpush1.msra.mxu0 0.0
    %1531 = vmatprep.subr.mxu0 0.0
    %1532 = vmatpush1.msra.mxu0 0.0
    %1533 = vmatprep.subr.mxu0 0.0
    %1534 = vmatpush1.msra.mxu0 0.0
    %1535 = vmatprep.subr.mxu0 0.0
    %1536 = vmatpush1.msra.mxu0 0.0
    %1537 = vmatprep.subr.mxu0 0.0
    %1538 = vmatpush1.msra.mxu0 0.0
    %1539 = vmatprep.subr.mxu0 0.0
    %1540 = vmatpush1.msra.mxu0 0.0
    %1541 = vmatprep.subr.mxu0 0.0
    %1542 = vmatpush1.msra.mxu0 0.0
    %1543 = vmatprep.subr.mxu0 0.0
    %1544 = vmatpush1.msra.mxu0 0.0
    %1545 = vmatprep.subr.mxu0 0.0
    %1546 = vmatpush1.msra.mxu0 0.0
    %1547 = vmatprep.subr.mxu0 0.0
    %1548 = vmatpush1.msra.mxu0 0.0
    %1549 = vmatprep.subr.mxu0 0.0
    %1550 = vmatpush1.msra.mxu0 0.0
    %1551 = vmatprep.subr.mxu0 0.0
    %1552 = vmatpush1.msra.mxu0 0.0
    %1553 = vmatprep.subr.mxu0 0.0
    %1554 = vmatpush1.msra.mxu0 0.0
    %1555 = vmatprep.mubr.f32.mxu0 0.0
    %1556 = vmatmul.mubr.f32.gmra.mrb[0].mxu0 %v1418
    %v1557 = vpop.f32.mrb[0].mxu0
    %v1558 = vadd.f32 0.0, %v1557
    %v1559 = vpop.f32.mrb[0].mxu0
    %v1560 = vadd.f32 0.0, %v1559
    %1561 = vdwg.mxu0
    %v1562 = vadd.f32 %v618, %v1487
    %v1563 = vadd.f32 %v619, %v1489
    %v1564 = vadd.f32 %v620, %v1558
    %v1565 = vadd.f32 %v621, %v1560
    %v1566 = vxor.u32 %v1562, 2147483648
    %v1567 = vxor.u32 %v1563, 2147483648
    %v1568 = vxor.u32 %v1564, 2147483648
    %v1569 = vmul.f32 %v1566, 1.442695
    %v1570 = vpow.pop %v1569
    %v1571 = vmul.f32 %v1567, 1.442695
    %v1572 = vpow.pop %v1571
    %v1573 = vmul.f32 %v1568, 1.442695
    %v1574 = vpow.pop %v1573
    %v1575 = vadd.f32 %v1570, 1.0
    %v1576 = vadd.f32 %v1572, 1.0
    %v1577 = vadd.f32 %v1574, 1.0
    %v1578 = vrcp.pop %v1575
    %v1579 = vmul.f32 1.0, %v1578
    %v1580 = vrcp.pop %v1576
    %v1581 = vmul.f32 1.0, %v1580
    %v1582 = vrcp.pop %v1577
    %v1583 = vmul.f32 1.0, %v1582
    %v1584 = vtanh.pop %v1565
    %v1586 = vrot.slane %v1414, 6
    %v1588 = vmul.f32 %v1581, %v1586
    %v1589 = vmul.f32 %v1579, %v1584
    %v1590 = vadd.f32 %v1588, %v1589
    %v1591 = vtanh.pop %v1590
    %v1592 = vmul.f32 %v1583, %v1591
    %1593 = vmatprep.subr.mxu0 %v623
    %1594 = vmatpush1.msra.mxu0 %v622
    %1595 = vmatprep.subr.mxu0 %v627
    %1596 = vmatpush1.msra.mxu0 %v626
    %1597 = vmatprep.subr.mxu0 %v631
    %1598 = vmatpush1.msra.mxu0 %v630
    %1599 = vmatprep.subr.mxu0 %v635
    %1600 = vmatpush1.msra.mxu0 %v634
    %1601 = vmatprep.subr.mxu0 %v639
    %1602 = vmatpush1.msra.mxu0 %v638
    %1603 = vmatprep.subr.mxu0 %v643
    %1604 = vmatpush1.msra.mxu0 %v642
    %1605 = vmatprep.subr.mxu0 %v647
    %1606 = vmatpush1.msra.mxu0 %v646
    %1607 = vmatprep.subr.mxu0 %v651
    %1608 = vmatpush1.msra.mxu0 %v650
    %1609 = vmatprep.subr.mxu0 %v655
    %1610 = vmatpush1.msra.mxu0 %v654
    %1611 = vmatprep.subr.mxu0 %v659
    %1612 = vmatpush1.msra.mxu0 %v658
    %1613 = vmatprep.subr.mxu0 %v663
    %1614 = vmatpush1.msra.mxu0 %v662
    %1615 = vmatprep.subr.mxu0 %v667
    %1616 = vmatpush1.msra.mxu0 %v666
    %1617 = vmatprep.subr.mxu0 %v671
    %1618 = vmatpush1.msra.mxu0 %v670
    %1619 = vmatprep.subr.mxu0 %v675
    %1620 = vmatpush1.msra.mxu0 %v674
    %1621 = vmatprep.subr.mxu0 %v679
    %1622 = vmatpush1.msra.mxu0 %v678
    %1623 = vmatprep.subr.mxu0 %v683
    %1624 = vmatpush1.msra.mxu0 %v682
    %1625 = vmatprep.subr.mxu0 0.0
    %1626 = vmatpush1.msra.mxu0 0.0
    %1627 = vmatprep.subr.mxu0 0.0
    %1628 = vmatpush1.msra.mxu0 0.0
    %1629 = vmatprep.subr.mxu0 0.0
    %1630 = vmatpush1.msra.mxu0 0.0
    %1631 = vmatprep.subr.mxu0 0.0
    %1632 = vmatpush1.msra.mxu0 0.0
    %1633 = vmatprep.subr.mxu0 0.0
    %1634 = vmatpush1.msra.mxu0 0.0
    %1635 = vmatprep.subr.mxu0 0.0
    %1636 = vmatpush1.msra.mxu0 0.0
    %1637 = vmatprep.subr.mxu0 0.0
    %1638 = vmatpush1.msra.mxu0 0.0
    %1639 = vmatprep.subr.mxu0 0.0
    %1640 = vmatpush1.msra.mxu0 0.0
    %1641 = vmatprep.subr.mxu0 0.0
    %1642 = vmatpush1.msra.mxu0 0.0
    %1643 = vmatprep.subr.mxu0 0.0
    %1644 = vmatpush1.msra.mxu0 0.0
    %1645 = vmatprep.subr.mxu0 0.0
    %1646 = vmatpush1.msra.mxu0 0.0
    %1647 = vmatprep.subr.mxu0 0.0
    %1648 = vmatpush1.msra.mxu0 0.0
    %1649 = vmatprep.subr.mxu0 0.0
    %1650 = vmatpush1.msra.mxu0 0.0
    %1651 = vmatprep.subr.mxu0 0.0
    %1652 = vmatpush1.msra.mxu0 0.0
    %1653 = vmatprep.subr.mxu0 0.0
    %1654 = vmatpush1.msra.mxu0 0.0
    %1655 = vmatprep.subr.mxu0 0.0
    %1656 = vmatpush1.msra.mxu0 0.0
    %1657 = vmatprep.mubr.f32.mxu0 0.0
    %1658 = vmatmul.mubr.f32.gmra.mrb[0].mxu0 %v1592
    %v1659 = vpop.f32.mrb[0].mxu0
    %v1660 = vadd.f32 0.0, %v1659
    %v1661 = vpop.f32.mrb[0].mxu0
    %v1662 = vadd.f32 0.0, %v1661
    %1663 = vdwg.mxu0
    %1664 = vmatprep.subr.mxu0 %v625
    %1665 = vmatpush1.msra.mxu0 %v624
    %1666 = vmatprep.subr.mxu0 %v629
    %1667 = vmatpush1.msra.mxu0 %v628
    %1668 = vmatprep.subr.mxu0 %v633
    %1669 = vmatpush1.msra.mxu0 %v632
    %1670 = vmatprep.subr.mxu0 %v637
    %1671 = vmatpush1.msra.mxu0 %v636
    %1672 = vmatprep.subr.mxu0 %v641
    %1673 = vmatpush1.msra.mxu0 %v640
    %1674 = vmatprep.subr.mxu0 %v645
    %1675 = vmatpush1.msra.mxu0 %v644
    %1676 = vmatprep.subr.mxu0 %v649
    %1677 = vmatpush1.msra.mxu0 %v648
    %1678 = vmatprep.subr.mxu0 %v653
    %1679 = vmatpush1.msra.mxu0 %v652
    %1680 = vmatprep.subr.mxu0 %v657
    %1681 = vmatpush1.msra.mxu0 %v656
    %1682 = vmatprep.subr.mxu0 %v661
    %1683 = vmatpush1.msra.mxu0 %v660
    %1684 = vmatprep.subr.mxu0 %v665
    %1685 = vmatpush1.msra.mxu0 %v664
    %1686 = vmatprep.subr.mxu0 %v669
    %1687 = vmatpush1.msra.mxu0 %v668
    %1688 = vmatprep.subr.mxu0 %v673
    %1689 = vmatpush1.msra.mxu0 %v672
    %1690 = vmatprep.subr.mxu0 %v677
    %1691 = vmatpush1.msra.mxu0 %v676
    %1692 = vmatprep.subr.mxu0 %v681
    %1693 = vmatpush1.msra.mxu0 %v680
    %1694 = vmatprep.subr.mxu0 %v685
    %1695 = vmatpush1.msra.mxu0 %v684
    %1696 = vmatprep.subr.mxu0 0.0
    %1697 = vmatpush1.msra.mxu0 0.0
    %1698 = vmatprep.subr.mxu0 0.0
    %1699 = vmatpush1.msra.mxu0 0.0
    %1700 = vmatprep.subr.mxu0 0.0
    %1701 = vmatpush1.msra.mxu0 0.0
    %1702 = vmatprep.subr.mxu0 0.0
    %1703 = vmatpush1.msra.mxu0 0.0
    %1704 = vmatprep.subr.mxu0 0.0
    %1705 = vmatpush1.msra.mxu0 0.0
    %1706 = vmatprep.subr.mxu0 0.0
    %1707 = vmatpush1.msra.mxu0 0.0
    %1708 = vmatprep.subr.mxu0 0.0
    %1709 = vmatpush1.msra.mxu0 0.0
    %1710 = vmatprep.subr.mxu0 0.0
    %1711 = vmatpush1.msra.mxu0 0.0
    %1712 = vmatprep.subr.mxu0 0.0
    %1713 = vmatpush1.msra.mxu0 0.0
    %1714 = vmatprep.subr.mxu0 0.0
    %1715 = vmatpush1.msra.mxu0 0.0
    %1716 = vmatprep.subr.mxu0 0.0
    %1717 = vmatpush1.msra.mxu0 0.0
    %1718 = vmatprep.subr.mxu0 0.0
    %1719 = vmatpush1.msra.mxu0 0.0
    %1720 = vmatprep.subr.mxu0 0.0
    %1721 = vmatpush1.msra.mxu0 0.0
    %1722 = vmatprep.subr.mxu0 0.0
    %1723 = vmatpush1.msra.mxu0 0.0
    %1724 = vmatprep.subr.mxu0 0.0
    %1725 = vmatpush1.msra.mxu0 0.0
    %1726 = vmatprep.subr.mxu0 0.0
    %1727 = vmatpush1.msra.mxu0 0.0
    %1728 = vmatprep.mubr.f32.mxu0 0.0
    %1729 = vmatmul.mubr.f32.gmra.mrb[0].mxu0 %v1592
    %v1730 = vpop.f32.mrb[0].mxu0
    %v1731 = vadd.f32 0.0, %v1730
    %v1732 = vpop.f32.mrb[0].mxu0
    %v1733 = vadd.f32 0.0, %v1732
    %1734 = vdwg.mxu0
    %v1739 = vrot.slane %v1660, 6
    %v1740 = vrot.slane %v1662, 6
    %v1741 = vrot.slane %v1731, 6
    %v1742 = vrot.slane %v1733, 6
    %v1747 = vadd.f32 %v618, %v1739
    %v1748 = vadd.f32 %v619, %v1740
    %v1749 = vadd.f32 %v620, %v1741
    %v1750 = vadd.f32 %v621, %v1742
    %v1751 = vxor.u32 %v1747, 2147483648
    %v1752 = vxor.u32 %v1748, 2147483648
    %v1753 = vxor.u32 %v1749, 2147483648
    %v1754 = vmul.f32 %v1751, 1.442695
    %v1755 = vpow.pop %v1754
    %v1756 = vmul.f32 %v1752, 1.442695
    %v1757 = vpow.pop %v1756
    %v1758 = vmul.f32 %v1753, 1.442695
    %v1759 = vpow.pop %v1758
    %v1760 = vadd.f32 %v1755, 1.0
    %v1761 = vadd.f32 %v1757, 1.0
    %v1762 = vadd.f32 %v1759, 1.0
    %v1763 = vrcp.pop %v1760
    %v1764 = vmul.f32 1.0, %v1763
    %v1765 = vrcp.pop %v1761
    %v1766 = vmul.f32 1.0, %v1765
    %v1767 = vrcp.pop %v1762
    %v1768 = vmul.f32 1.0, %v1767
    %v1769 = vtanh.pop %v1750
    %v1771 = vrot.slane %v1590, 6
    %v1773 = vmul.f32 %v1766, %v1771
    %v1774 = vmul.f32 %v1764, %v1769
    %v1775 = vadd.f32 %v1773, %v1774
    %v1776 = vtanh.pop %v1775
    %v1777 = vmul.f32 %v1768, %v1776
    %v1779 = vrot.slane %v1777, 2
    %1781 = vmatprep.subr.mxu0 %v623
    %1782 = vmatpush1.msra.mxu0 %v622
    %1783 = vmatprep.subr.mxu0 %v627
    %1784 = vmatpush1.msra.mxu0 %v626
    %1785 = vmatprep.subr.mxu0 %v631
    %1786 = vmatpush1.msra.mxu0 %v630
    %1787 = vmatprep.subr.mxu0 %v635
    %1788 = vmatpush1.msra.mxu0 %v634
    %1789 = vmatprep.subr.mxu0 %v639
    %1790 = vmatpush1.msra.mxu0 %v638
    %1791 = vmatprep.subr.mxu0 %v643
    %1792 = vmatpush1.msra.mxu0 %v642
    %1793 = vmatprep.subr.mxu0 %v647
    %1794 = vmatpush1.msra.mxu0 %v646
    %1795 = vmatprep.subr.mxu0 %v651
    %1796 = vmatpush1.msra.mxu0 %v650
    %1797 = vmatprep.subr.mxu0 %v655
    %1798 = vmatpush1.msra.mxu0 %v654
    %1799 = vmatprep.subr.mxu0 %v659
    %1800 = vmatpush1.msra.mxu0 %v658
    %1801 = vmatprep.subr.mxu0 %v663
    %1802 = vmatpush1.msra.mxu0 %v662
    %1803 = vmatprep.subr.mxu0 %v667
    %1804 = vmatpush1.msra.mxu0 %v666
    %1805 = vmatprep.subr.mxu0 %v671
    %1806 = vmatpush1.msra.mxu0 %v670
    %1807 = vmatprep.subr.mxu0 %v675
    %1808 = vmatpush1.msra.mxu0 %v674
    %1809 = vmatprep.subr.mxu0 %v679
    %1810 = vmatpush1.msra.mxu0 %v678
    %1811 = vmatprep.subr.mxu0 %v683
    %1812 = vmatpush1.msra.mxu0 %v682
    %1813 = vmatprep.subr.mxu0 0.0
    %1814 = vmatpush1.msra.mxu0 0.0
    %1815 = vmatprep.subr.mxu0 0.0
    %1816 = vmatpush1.msra.mxu0 0.0
    %1817 = vmatprep.subr.mxu0 0.0
    %1818 = vmatpush1.msra.mxu0 0.0
    %1819 = vmatprep.subr.mxu0 0.0
    %1820 = vmatpush1.msra.mxu0 0.0
    %1821 = vmatprep.subr.mxu0 0.0
    %1822 = vmatpush1.msra.mxu0 0.0
    %1823 = vmatprep.subr.mxu0 0.0
    %1824 = vmatpush1.msra.mxu0 0.0
    %1825 = vmatprep.subr.mxu0 0.0
    %1826 = vmatpush1.msra.mxu0 0.0
    %1827 = vmatprep.subr.mxu0 0.0
    %1828 = vmatpush1.msra.mxu0 0.0
    %1829 = vmatprep.subr.mxu0 0.0
    %1830 = vmatpush1.msra.mxu0 0.0
    %1831 = vmatprep.subr.mxu0 0.0
    %1832 = vmatpush1.msra.mxu0 0.0
    %1833 = vmatprep.subr.mxu0 0.0
    %1834 = vmatpush1.msra.mxu0 0.0
    %1835 = vmatprep.subr.mxu0 0.0
    %1836 = vmatpush1.msra.mxu0 0.0
    %1837 = vmatprep.subr.mxu0 0.0
    %1838 = vmatpush1.msra.mxu0 0.0
    %1839 = vmatprep.subr.mxu0 0.0
    %1840 = vmatpush1.msra.mxu0 0.0
    %1841 = vmatprep.subr.mxu0 0.0
    %1842 = vmatpush1.msra.mxu0 0.0
    %1843 = vmatprep.subr.mxu0 0.0
    %1844 = vmatpush1.msra.mxu0 0.0
    %1845 = vmatprep.mubr.f32.mxu0 0.0
    %1846 = vmatmul.mubr.f32.gmra.mrb[0].mxu0 %v1779
    %v1847 = vpop.f32.mrb[0].mxu0
    %v1848 = vadd.f32 0.0, %v1847
    %v1849 = vpop.f32.mrb[0].mxu0
    %v1850 = vadd.f32 0.0, %v1849
    %1851 = vdwg.mxu0
    %1852 = vmatprep.subr.mxu0 %v625
    %1853 = vmatpush1.msra.mxu0 %v624
    %1854 = vmatprep.subr.mxu0 %v629
    %1855 = vmatpush1.msra.mxu0 %v628
    %1856 = vmatprep.subr.mxu0 %v633
    %1857 = vmatpush1.msra.mxu0 %v632
    %1858 = vmatprep.subr.mxu0 %v637
    %1859 = vmatpush1.msra.mxu0 %v636
    %1860 = vmatprep.subr.mxu0 %v641
    %1861 = vmatpush1.msra.mxu0 %v640
    %1862 = vmatprep.subr.mxu0 %v645
    %1863 = vmatpush1.msra.mxu0 %v644
    %1864 = vmatprep.subr.mxu0 %v649
    %1865 = vmatpush1.msra.mxu0 %v648
    %1866 = vmatprep.subr.mxu0 %v653
    %1867 = vmatpush1.msra.mxu0 %v652
    %1868 = vmatprep.subr.mxu0 %v657
    %1869 = vmatpush1.msra.mxu0 %v656
    %1870 = vmatprep.subr.mxu0 %v661
    %1871 = vmatpush1.msra.mxu0 %v660
    %1872 = vmatprep.subr.mxu0 %v665
    %1873 = vmatpush1.msra.mxu0 %v664
    %1874 = vmatprep.subr.mxu0 %v669
    %1875 = vmatpush1.msra.mxu0 %v668
    %1876 = vmatprep.subr.mxu0 %v673
    %1877 = vmatpush1.msra.mxu0 %v672
    %1878 = vmatprep.subr.mxu0 %v677
    %1879 = vmatpush1.msra.mxu0 %v676
    %1880 = vmatprep.subr.mxu0 %v681
    %1881 = vmatpush1.msra.mxu0 %v680
    %1882 = vmatprep.subr.mxu0 %v685
    %1883 = vmatpush1.msra.mxu0 %v684
    %1884 = vmatprep.subr.mxu0 0.0
    %1885 = vmatpush1.msra.mxu0 0.0
    %1886 = vmatprep.subr.mxu0 0.0
    %1887 = vmatpush1.msra.mxu0 0.0
    %1888 = vmatprep.subr.mxu0 0.0
    %1889 = vmatpush1.msra.mxu0 0.0
    %1890 = vmatprep.subr.mxu0 0.0
    %1891 = vmatpush1.msra.mxu0 0.0
    %1892 = vmatprep.subr.mxu0 0.0
    %1893 = vmatpush1.msra.mxu0 0.0
    %1894 = vmatprep.subr.mxu0 0.0
    %1895 = vmatpush1.msra.mxu0 0.0
    %1896 = vmatprep.subr.mxu0 0.0
    %1897 = vmatpush1.msra.mxu0 0.0
    %1898 = vmatprep.subr.mxu0 0.0
    %1899 = vmatpush1.msra.mxu0 0.0
    %1900 = vmatprep.subr.mxu0 0.0
    %1901 = vmatpush1.msra.mxu0 0.0
    %1902 = vmatprep.subr.mxu0 0.0
    %1903 = vmatpush1.msra.mxu0 0.0
    %1904 = vmatprep.subr.mxu0 0.0
    %1905 = vmatpush1.msra.mxu0 0.0
    %1906 = vmatprep.subr.mxu0 0.0
    %1907 = vmatpush1.msra.mxu0 0.0
    %1908 = vmatprep.subr.mxu0 0.0
    %1909 = vmatpush1.msra.mxu0 0.0
    %1910 = vmatprep.subr.mxu0 0.0
    %1911 = vmatpush1.msra.mxu0 0.0
    %1912 = vmatprep.subr.mxu0 0.0
    %1913 = vmatpush1.msra.mxu0 0.0
    %1914 = vmatprep.subr.mxu0 0.0
    %1915 = vmatpush1.msra.mxu0 0.0
    %1916 = vmatprep.mubr.f32.mxu0 0.0
    %1917 = vmatmul.mubr.f32.gmra.mrb[0].mxu0 %v1779
    %v1918 = vpop.f32.mrb[0].mxu0
    %v1919 = vadd.f32 0.0, %v1918
    %v1920 = vpop.f32.mrb[0].mxu0
    %v1921 = vadd.f32 0.0, %v1920
    %1922 = vdwg.mxu0
    %v1927 = vrot.slane %v1848, 4
    %v1928 = vrot.slane %v1850, 4
    %v1929 = vrot.slane %v1919, 4
    %v1930 = vrot.slane %v1921, 4
    %v1935 = vadd.f32 %v618, %v1927
    %v1936 = vadd.f32 %v619, %v1928
    %v1937 = vadd.f32 %v620, %v1929
    %v1938 = vadd.f32 %v621, %v1930
    %v1939 = vxor.u32 %v1935, 2147483648
    %v1940 = vxor.u32 %v1936, 2147483648
    %v1941 = vxor.u32 %v1937, 2147483648
    %v1942 = vmul.f32 %v1939, 1.442695
    %v1943 = vpow.pop %v1942
    %v1944 = vmul.f32 %v1940, 1.442695
    %v1945 = vpow.pop %v1944
    %v1946 = vmul.f32 %v1941, 1.442695
    %v1947 = vpow.pop %v1946
    %v1948 = vadd.f32 %v1943, 1.0
    %v1949 = vadd.f32 %v1945, 1.0
    %v1950 = vadd.f32 %v1947, 1.0
    %v1951 = vrcp.pop %v1948
    %v1952 = vmul.f32 1.0, %v1951
    %v1953 = vrcp.pop %v1949
    %v1954 = vmul.f32 1.0, %v1953
    %v1955 = vrcp.pop %v1950
    %v1956 = vmul.f32 1.0, %v1955
    %v1957 = vtanh.pop %v1938
    %v1959 = vrot.slane %v1775, 6
    %v1961 = vmul.f32 %v1954, %v1959
    %v1962 = vmul.f32 %v1952, %v1957
    %v1963 = vadd.f32 %v1961, %v1962
    %v1964 = vtanh.pop %v1963
    %v1965 = vmul.f32 %v1956, %v1964
    %v1967 = vrot.slane %v1965, 4
    %1969 = vmatprep.subr.mxu0 %v623
    %1970 = vmatpush1.msra.mxu0 %v622
    %1971 = vmatprep.subr.mxu0 %v627
    %1972 = vmatpush1.msra.mxu0 %v626
    %1973 = vmatprep.subr.mxu0 %v631
    %1974 = vmatpush1.msra.mxu0 %v630
    %1975 = vmatprep.subr.mxu0 %v635
    %1976 = vmatpush1.msra.mxu0 %v634
    %1977 = vmatprep.subr.mxu0 %v639
    %1978 = vmatpush1.msra.mxu0 %v638
    %1979 = vmatprep.subr.mxu0 %v643
    %1980 = vmatpush1.msra.mxu0 %v642
    %1981 = vmatprep.subr.mxu0 %v647
    %1982 = vmatpush1.msra.mxu0 %v646
    %1983 = vmatprep.subr.mxu0 %v651
    %1984 = vmatpush1.msra.mxu0 %v650
    %1985 = vmatprep.subr.mxu0 %v655
    %1986 = vmatpush1.msra.mxu0 %v654
    %1987 = vmatprep.subr.mxu0 %v659
    %1988 = vmatpush1.msra.mxu0 %v658
    %1989 = vmatprep.subr.mxu0 %v663
    %1990 = vmatpush1.msra.mxu0 %v662
    %1991 = vmatprep.subr.mxu0 %v667
    %1992 = vmatpush1.msra.mxu0 %v666
    %1993 = vmatprep.subr.mxu0 %v671
    %1994 = vmatpush1.msra.mxu0 %v670
    %1995 = vmatprep.subr.mxu0 %v675
    %1996 = vmatpush1.msra.mxu0 %v674
    %1997 = vmatprep.subr.mxu0 %v679
    %1998 = vmatpush1.msra.mxu0 %v678
    %1999 = vmatprep.subr.mxu0 %v683
    %2000 = vmatpush1.msra.mxu0 %v682
    %2001 = vmatprep.subr.mxu0 0.0
    %2002 = vmatpush1.msra.mxu0 0.0
    %2003 = vmatprep.subr.mxu0 0.0
    %2004 = vmatpush1.msra.mxu0 0.0
    %2005 = vmatprep.subr.mxu0 0.0
    %2006 = vmatpush1.msra.mxu0 0.0
    %2007 = vmatprep.subr.mxu0 0.0
    %2008 = vmatpush1.msra.mxu0 0.0
    %2009 = vmatprep.subr.mxu0 0.0
    %2010 = vmatpush1.msra.mxu0 0.0
    %2011 = vmatprep.subr.mxu0 0.0
    %2012 = vmatpush1.msra.mxu0 0.0
    %2013 = vmatprep.subr.mxu0 0.0
    %2014 = vmatpush1.msra.mxu0 0.0
    %2015 = vmatprep.subr.mxu0 0.0
    %2016 = vmatpush1.msra.mxu0 0.0
    %2017 = vmatprep.subr.mxu0 0.0
    %2018 = vmatpush1.msra.mxu0 0.0
    %2019 = vmatprep.subr.mxu0 0.0
    %2020 = vmatpush1.msra.mxu0 0.0
    %2021 = vmatprep.subr.mxu0 0.0
    %2022 = vmatpush1.msra.mxu0 0.0
    %2023 = vmatprep.subr.mxu0 0.0
    %2024 = vmatpush1.msra.mxu0 0.0
    %2025 = vmatprep.subr.mxu0 0.0
    %2026 = vmatpush1.msra.mxu0 0.0
    %2027 = vmatprep.subr.mxu0 0.0
    %2028 = vmatpush1.msra.mxu0 0.0
    %2029 = vmatprep.subr.mxu0 0.0
    %2030 = vmatpush1.msra.mxu0 0.0
    %2031 = vmatprep.subr.mxu0 0.0
    %2032 = vmatpush1.msra.mxu0 0.0
    %2033 = vmatprep.mubr.f32.mxu0 0.0
    %2034 = vmatmul.mubr.f32.gmra.mrb[0].mxu0 %v1967
    %v2035 = vpop.f32.mrb[0].mxu0
    %v2036 = vadd.f32 0.0, %v2035
    %v2037 = vpop.f32.mrb[0].mxu0
    %v2038 = vadd.f32 0.0, %v2037
    %2039 = vdwg.mxu0
    %2040 = vmatprep.subr.mxu0 %v625
    %2041 = vmatpush1.msra.mxu0 %v624
    %2042 = vmatprep.subr.mxu0 %v629
    %2043 = vmatpush1.msra.mxu0 %v628
    %2044 = vmatprep.subr.mxu0 %v633
    %2045 = vmatpush1.msra.mxu0 %v632
    %2046 = vmatprep.subr.mxu0 %v637
    %2047 = vmatpush1.msra.mxu0 %v636
    %2048 = vmatprep.subr.mxu0 %v641
    %2049 = vmatpush1.msra.mxu0 %v640
    %2050 = vmatprep.subr.mxu0 %v645
    %2051 = vmatpush1.msra.mxu0 %v644
    %2052 = vmatprep.subr.mxu0 %v649
    %2053 = vmatpush1.msra.mxu0 %v648
    %2054 = vmatprep.subr.mxu0 %v653
    %2055 = vmatpush1.msra.mxu0 %v652
    %2056 = vmatprep.subr.mxu0 %v657
    %2057 = vmatpush1.msra.mxu0 %v656
    %2058 = vmatprep.subr.mxu0 %v661
    %2059 = vmatpush1.msra.mxu0 %v660
    %2060 = vmatprep.subr.mxu0 %v665
    %2061 = vmatpush1.msra.mxu0 %v664
    %2062 = vmatprep.subr.mxu0 %v669
    %2063 = vmatpush1.msra.mxu0 %v668
    %2064 = vmatprep.subr.mxu0 %v673
    %2065 = vmatpush1.msra.mxu0 %v672
    %2066 = vmatprep.subr.mxu0 %v677
    %2067 = vmatpush1.msra.mxu0 %v676
    %2068 = vmatprep.subr.mxu0 %v681
    %2069 = vmatpush1.msra.mxu0 %v680
    %2070 = vmatprep.subr.mxu0 %v685
    %2071 = vmatpush1.msra.mxu0 %v684
    %2072 = vmatprep.subr.mxu0 0.0
    %2073 = vmatpush1.msra.mxu0 0.0
    %2074 = vmatprep.subr.mxu0 0.0
    %2075 = vmatpush1.msra.mxu0 0.0
    %2076 = vmatprep.subr.mxu0 0.0
    %2077 = vmatpush1.msra.mxu0 0.0
    %2078 = vmatprep.subr.mxu0 0.0
    %2079 = vmatpush1.msra.mxu0 0.0
    %2080 = vmatprep.subr.mxu0 0.0
    %2081 = vmatpush1.msra.mxu0 0.0
    %2082 = vmatprep.subr.mxu0 0.0
    %2083 = vmatpush1.msra.mxu0 0.0
    %2084 = vmatprep.subr.mxu0 0.0
    %2085 = vmatpush1.msra.mxu0 0.0
    %2086 = vmatprep.subr.mxu0 0.0
    %2087 = vmatpush1.msra.mxu0 0.0
    %2088 = vmatprep.subr.mxu0 0.0
    %2089 = vmatpush1.msra.mxu0 0.0
    %2090 = vmatprep.subr.mxu0 0.0
    %2091 = vmatpush1.msra.mxu0 0.0
    %2092 = vmatprep.subr.mxu0 0.0
    %2093 = vmatpush1.msra.mxu0 0.0
    %2094 = vmatprep.subr.mxu0 0.0
    %2095 = vmatpush1.msra.mxu0 0.0
    %2096 = vmatprep.subr.mxu0 0.0
    %2097 = vmatpush1.msra.mxu0 0.0
    %2098 = vmatprep.subr.mxu0 0.0
    %2099 = vmatpush1.msra.mxu0 0.0
    %2100 = vmatprep.subr.mxu0 0.0
    %2101 = vmatpush1.msra.mxu0 0.0
    %2102 = vmatprep.subr.mxu0 0.0
    %2103 = vmatpush1.msra.mxu0 0.0
    %2104 = vmatprep.mubr.f32.mxu0 0.0
    %2105 = vmatmul.mubr.f32.gmra.mrb[0].mxu0 %v1967
    %v2106 = vpop.f32.mrb[0].mxu0
    %v2107 = vadd.f32 0.0, %v2106
    %v2108 = vpop.f32.mrb[0].mxu0
    %v2109 = vadd.f32 0.0, %v2108
    %2110 = vdwg.mxu0
    %v2115 = vrot.slane %v2036, 2
    %v2116 = vrot.slane %v2038, 2
    %v2117 = vrot.slane %v2107, 2
    %v2118 = vrot.slane %v2109, 2
    %v2123 = vadd.f32 %v618, %v2115
    %v2124 = vadd.f32 %v619, %v2116
    %v2125 = vadd.f32 %v620, %v2117
    %v2126 = vadd.f32 %v621, %v2118
    %v2127 = vxor.u32 %v2123, 2147483648
    %v2128 = vxor.u32 %v2124, 2147483648
    %v2129 = vxor.u32 %v2125, 2147483648
    %v2130 = vmul.f32 %v2127, 1.442695
    %v2131 = vpow.pop %v2130
    %v2132 = vmul.f32 %v2128, 1.442695
    %v2133 = vpow.pop %v2132
    %v2134 = vmul.f32 %v2129, 1.442695
    %v2135 = vpow.pop %v2134
    %v2136 = vadd.f32 %v2131, 1.0
    %v2137 = vadd.f32 %v2133, 1.0
    %v2138 = vadd.f32 %v2135, 1.0
    %v2139 = vrcp.pop %v2136
    %v2140 = vmul.f32 1.0, %v2139
    %v2141 = vrcp.pop %v2137
    %v2142 = vmul.f32 1.0, %v2141
    %v2143 = vrcp.pop %v2138
    %v2144 = vmul.f32 1.0, %v2143
    %v2145 = vtanh.pop %v2126
    %v2147 = vrot.slane %v1963, 6
    %v2149 = vmul.f32 %v2142, %v2147
    %v2150 = vmul.f32 %v2140, %v2145
    %v2151 = vadd.f32 %v2149, %v2150
    %v2152 = vtanh.pop %v2151
    %v2153 = vmul.f32 %v2144, %v2152
    %v2154 = vsel %vm493, %v855, %v1040
    %v2155 = vsel %vm503, %v2154, %v1228
    %v2156 = vsel %vm512, %v2155, %v1416
    %v2157 = vsel %vm493, %v1592, %v1777
    %v2158 = vsel %vm503, %v2157, %v1965
    %v2159 = vsel %vm512, %v2158, %v2153
    %v2161 = vrot.slane %v2153, 6
    %v2163 = vrot.slane %v1965, 2
    %v2165 = vrot.slane %v1777, 6
    %v2168 = vrot.slane %v1592, 2
    %v2170 = vrot.slane %v1228, 2
    %v2172 = vrot.slane %v1040, 6
    %v2175 = vrot.slane %v855, 2
    %v2177 = vsel %vm493, %v2161, %v2163
    %v2178 = vsel %vm503, %v2177, %v2165
    %v2179 = vsel %vm512, %v2178, %v2168
    %v2180 = vsel %vm493, %v1418, %v2170
    %v2181 = vsel %vm503, %v2180, %v2172
    %v2182 = vsel %vm512, %v2181, %v2175
    %v2183 = vsel %vm367, 1, 0
    %vm2184 = vcmp.eq.s32.totalorder %v2183, 1
    %v2185 = vsel %vm2184, %v2156, %v2179
    %v2186 = vsel %vm2184, %v2159, %v2182
    %v2188 = vrot.slane %v2185, 1
    %v2190 = vrot.slane %v2185, 2
    %v2192 = vrot.slane %v2185, 3
    %v2195 = vrot.slane %v2186, 4
    %v2197 = vrot.slane %v2186, 5
    %v2199 = vrot.slane %v2186, 6
    %v2201 = vrot.slane %v2186, 7
    %v2203 = vrot.slane %v2185, 4
    %v2205 = vsel %vm488, %v2185, %v2188
    %v2206 = vsel %vm493, %v2205, %v2190
    %v2207 = vsel %vm498, %v2206, %v2192
    %v2208 = vsel %vm503, %v2207, %v2195
    %v2209 = vsel %vm143, %v2208, %v2197
    %v2210 = vsel %vm512, %v2209, %v2199
    %v2211 = vsel %vm517, %v2210, %v2201
    %v2212 = vsel %vm488, %v2188, %v2190
    %v2213 = vsel %vm493, %v2212, %v2192
    %v2214 = vsel %vm498, %v2213, %v2203
    %v2215 = vsel %vm503, %v2214, %v2197
    %v2216 = vsel %vm143, %v2215, %v2199
    %v2217 = vsel %vm512, %v2216, %v2201
    %v2218 = vsel %vm517, %v2217, %v2186
    %2219 = vst [vmem:[#allocation11] sm:$0xff] %v2211
    %2220 = vst [vmem:[#allocation11 + $0x8] sm:$0xff] %v2218
    %v2221 = vld [vmem:[#allocation8] sm:$0xff]
    %v2222 = vld [vmem:[#allocation8 + $0x8] sm:$0xff]
    %v2223 = vld [vmem:[#allocation8 + $0x10] sm:$0xff]
    %v2224 = vld [vmem:[#allocation8 + $0x18] sm:$0xff]
    %v2225 = vld [vmem:[#allocation8 + $0x20] sm:$0xff]
    %v2226 = vld [vmem:[#allocation8 + $0x28] sm:$0xff]
    %v2227 = vld [vmem:[#allocation8 + $0x30] sm:$0xff]
    %v2228 = vld [vmem:[#allocation8 + $0x38] sm:$0xff]
    %v2229 = vld [vmem:[#allocation8 + $0x40] sm:$0xff]
    %v2230 = vld [vmem:[#allocation8 + $0x48] sm:$0xff]
    %v2231 = vld [vmem:[#allocation8 + $0x50] sm:$0xff]
    %v2232 = vld [vmem:[#allocation8 + $0x58] sm:$0xff]
    %v2233 = vld [vmem:[#allocation8 + $0x60] sm:$0xff]
    %v2234 = vld [vmem:[#allocation8 + $0x68] sm:$0xff]
    %v2235 = vld [vmem:[#allocation8 + $0x70] sm:$0xff]
    %v2236 = vld [vmem:[#allocation8 + $0x78] sm:$0xff]
    %v2237 = vld [vmem:[#allocation8 + $0x80] sm:$0xff]
    %v2238 = vld [vmem:[#allocation8 + $0x88] sm:$0xff]
    %v2239 = vld [vmem:[#allocation8 + $0x90] sm:$0xff]
    %v2240 = vld [vmem:[#allocation8 + $0x98] sm:$0xff]
    %v2241 = vld [vmem:[#allocation8 + $0xa0] sm:$0xff]
    %v2242 = vld [vmem:[#allocation8 + $0xa8] sm:$0xff]
    %v2243 = vld [vmem:[#allocation8 + $0xb0] sm:$0xff]
    %v2244 = vld [vmem:[#allocation8 + $0xb8] sm:$0xff]
    %v2245 = vld [vmem:[#allocation8 + $0xc0] sm:$0xff]
    %v2246 = vld [vmem:[#allocation8 + $0xc8] sm:$0xff]
    %v2247 = vld [vmem:[#allocation8 + $0xd0] sm:$0xff]
    %v2248 = vld [vmem:[#allocation8 + $0xd8] sm:$0xff]
    %v2249 = vld [vmem:[#allocation8 + $0xe0] sm:$0xff]
    %v2250 = vld [vmem:[#allocation8 + $0xe8] sm:$0xff]
    %v2251 = vld [vmem:[#allocation8 + $0xf0] sm:$0xff]
    %v2252 = vld [vmem:[#allocation8 + $0xf8] sm:$0xff]
    %v2253 = vld [vmem:[#allocation8 + $0x100] sm:$0xff]
    %v2254 = vld [vmem:[#allocation8 + $0x108] sm:$0xff]
    %v2255 = vld [vmem:[#allocation8 + $0x110] sm:$0xff]
    %v2256 = vld [vmem:[#allocation8 + $0x118] sm:$0xff]
    %v2257 = vld [vmem:[#allocation8 + $0x120] sm:$0xff]
    %v2258 = vld [vmem:[#allocation8 + $0x128] sm:$0xff]
    %v2259 = vld [vmem:[#allocation8 + $0x130] sm:$0xff]
    %v2260 = vld [vmem:[#allocation8 + $0x138] sm:$0xff]
    %v2261 = vld [vmem:[#allocation8 + $0x140] sm:$0xff]
    %v2262 = vld [vmem:[#allocation8 + $0x148] sm:$0xff]
    %v2263 = vld [vmem:[#allocation8 + $0x150] sm:$0xff]
    %v2264 = vld [vmem:[#allocation8 + $0x158] sm:$0xff]
    %v2265 = vld [vmem:[#allocation8 + $0x160] sm:$0xff]
    %v2266 = vld [vmem:[#allocation8 + $0x168] sm:$0xff]
    %v2267 = vld [vmem:[#allocation8 + $0x170] sm:$0xff]
    %v2268 = vld [vmem:[#allocation8 + $0x178] sm:$0xff]
    %v2269 = vld [vmem:[%s5] sm:$0x7]
    %v2271 = vlaneseq
    %v2272 = vshrl.u32 %v2271, 7
    %v2273 = vsub.s32 0, %v2272
    %v2274 = vrot.slane %v2269, %v2273
    %v2275 = vlaneseq
    %v2276 = vshrl.u32 %v2275, 7
    %v2277 = vsub.s32 1, %v2276
    %v2278 = vrot.slane %v2269, %v2277
    %v2279 = vlaneseq
    %v2280 = vshrl.u32 %v2279, 7
    %v2281 = vsub.s32 2, %v2280
    %v2282 = vrot.slane %v2269, %v2281
    %2286 = vmatprep.subr.mxu0 %v2222
    %2287 = vmatpush1.msra.mxu0 %v2221
    %2288 = vmatprep.subr.mxu0 %v2225
    %2289 = vmatpush1.msra.mxu0 %v2224
    %2290 = vmatprep.subr.mxu0 %v2228
    %2291 = vmatpush1.msra.mxu0 %v2227
    %2292 = vmatprep.subr.mxu0 %v2231
    %2293 = vmatpush1.msra.mxu0 %v2230
    %2294 = vmatprep.subr.mxu0 %v2234
    %2295 = vmatpush1.msra.mxu0 %v2233
    %2296 = vmatprep.subr.mxu0 %v2237
    %2297 = vmatpush1.msra.mxu0 %v2236
    %2298 = vmatprep.subr.mxu0 %v2240
    %2299 = vmatpush1.msra.mxu0 %v2239
    %2300 = vmatprep.subr.mxu0 %v2243
    %2301 = vmatpush1.msra.mxu0 %v2242
    %2302 = vmatprep.subr.mxu0 %v2246
    %2303 = vmatpush1.msra.mxu0 %v2245
    %2304 = vmatprep.subr.mxu0 %v2249
    %2305 = vmatpush1.msra.mxu0 %v2248
    %2306 = vmatprep.subr.mxu0 %v2252
    %2307 = vmatpush1.msra.mxu0 %v2251
    %2308 = vmatprep.subr.mxu0 %v2255
    %2309 = vmatpush1.msra.mxu0 %v2254
    %2310 = vmatprep.subr.mxu0 %v2258
    %2311 = vmatpush1.msra.mxu0 %v2257
    %2312 = vmatprep.subr.mxu0 %v2261
    %2313 = vmatpush1.msra.mxu0 %v2260
    %2314 = vmatprep.subr.mxu0 %v2264
    %2315 = vmatpush1.msra.mxu0 %v2263
    %2316 = vmatprep.subr.mxu0 %v2267
    %2317 = vmatpush1.msra.mxu0 %v2266
    %2318 = vmatprep.subr.mxu0 0.0
    %2319 = vmatpush1.msra.mxu0 0.0
    %2320 = vmatprep.subr.mxu0 0.0
    %2321 = vmatpush1.msra.mxu0 0.0
    %2322 = vmatprep.subr.mxu0 0.0
    %2323 = vmatpush1.msra.mxu0 0.0
    %2324 = vmatprep.subr.mxu0 0.0
    %2325 = vmatpush1.msra.mxu0 0.0
    %2326 = vmatprep.subr.mxu0 0.0
    %2327 = vmatpush1.msra.mxu0 0.0
    %2328 = vmatprep.subr.mxu0 0.0
    %2329 = vmatpush1.msra.mxu0 0.0
    %2330 = vmatprep.subr.mxu0 0.0
    %2331 = vmatpush1.msra.mxu0 0.0
    %2332 = vmatprep.subr.mxu0 0.0
    %2333 = vmatpush1.msra.mxu0 0.0
    %2334 = vmatprep.subr.mxu0 0.0
    %2335 = vmatpush1.msra.mxu0 0.0
    %2336 = vmatprep.subr.mxu0 0.0
    %2337 = vmatpush1.msra.mxu0 0.0
    %2338 = vmatprep.subr.mxu0 0.0
    %2339 = vmatpush1.msra.mxu0 0.0
    %2340 = vmatprep.subr.mxu0 0.0
    %2341 = vmatpush1.msra.mxu0 0.0
    %2342 = vmatprep.subr.mxu0 0.0
    %2343 = vmatpush1.msra.mxu0 0.0
    %2344 = vmatprep.subr.mxu0 0.0
    %2345 = vmatpush1.msra.mxu0 0.0
    %2346 = vmatprep.subr.mxu0 0.0
    %2347 = vmatpush1.msra.mxu0 0.0
    %2348 = vmatprep.subr.mxu0 0.0
    %2349 = vmatpush1.msra.mxu0 0.0
    %2350 = vmatprep.mubr.f32.mxu0 0.0
    %2351 = vmatmul.mubr.f32.gmra.mrb[0].mxu0 %v2211
    %v2352 = vpop.f32.mrb[0].mxu0
    %v2353 = vadd.f32 %v2274, %v2352
    %v2354 = vpop.f32.mrb[0].mxu0
    %v2355 = vadd.f32 %v2278, %v2354
    %2356 = vmatprep.mubr.f32.mxu0 0.0
    %2357 = vmatmul.mubr.f32.gmra.mrb[0].mxu0 %v2218
    %v2358 = vpop.f32.mrb[0].mxu0
    %v2359 = vadd.f32 %v2274, %v2358
    %v2360 = vpop.f32.mrb[0].mxu0
    %v2361 = vadd.f32 %v2278, %v2360
    %2362 = vdwg.mxu0
    %2363 = vmatprep.subr.mxu0 0.0
    %2364 = vmatpush1.msra.mxu0 %v2223
    %2365 = vmatprep.subr.mxu0 0.0
    %2366 = vmatpush1.msra.mxu0 %v2226
    %2367 = vmatprep.subr.mxu0 0.0
    %2368 = vmatpush1.msra.mxu0 %v2229
    %2369 = vmatprep.subr.mxu0 0.0
    %2370 = vmatpush1.msra.mxu0 %v2232
    %2371 = vmatprep.subr.mxu0 0.0
    %2372 = vmatpush1.msra.mxu0 %v2235
    %2373 = vmatprep.subr.mxu0 0.0
    %2374 = vmatpush1.msra.mxu0 %v2238
    %2375 = vmatprep.subr.mxu0 0.0
    %2376 = vmatpush1.msra.mxu0 %v2241
    %2377 = vmatprep.subr.mxu0 0.0
    %2378 = vmatpush1.msra.mxu0 %v2244
    %2379 = vmatprep.subr.mxu0 0.0
    %2380 = vmatpush1.msra.mxu0 %v2247
    %2381 = vmatprep.subr.mxu0 0.0
    %2382 = vmatpush1.msra.mxu0 %v2250
    %2383 = vmatprep.subr.mxu0 0.0
    %2384 = vmatpush1.msra.mxu0 %v2253
    %2385 = vmatprep.subr.mxu0 0.0
    %2386 = vmatpush1.msra.mxu0 %v2256
    %2387 = vmatprep.subr.mxu0 0.0
    %2388 = vmatpush1.msra.mxu0 %v2259
    %2389 = vmatprep.subr.mxu0 0.0
    %2390 = vmatpush1.msra.mxu0 %v2262
    %2391 = vmatprep.subr.mxu0 0.0
    %2392 = vmatpush1.msra.mxu0 %v2265
    %2393 = vmatprep.subr.mxu0 0.0
    %2394 = vmatpush1.msra.mxu0 %v2268
    %2395 = vmatprep.subr.mxu0 0.0
    %2396 = vmatpush1.msra.mxu0 0.0
    %2397 = vmatprep.subr.mxu0 0.0
    %2398 = vmatpush1.msra.mxu0 0.0
    %2399 = vmatprep.subr.mxu0 0.0
    %2400 = vmatpush1.msra.mxu0 0.0
    %2401 = vmatprep.subr.mxu0 0.0
    %2402 = vmatpush1.msra.mxu0 0.0
    %2403 = vmatprep.subr.mxu0 0.0
    %2404 = vmatpush1.msra.mxu0 0.0
    %2405 = vmatprep.subr.mxu0 0.0
    %2406 = vmatpush1.msra.mxu0 0.0
    %2407 = vmatprep.subr.mxu0 0.0
    %2408 = vmatpush1.msra.mxu0 0.0
    %2409 = vmatprep.subr.mxu0 0.0
    %2410 = vmatpush1.msra.mxu0 0.0
    %2411 = vmatprep.subr.mxu0 0.0
    %2412 = vmatpush1.msra.mxu0 0.0
    %2413 = vmatprep.subr.mxu0 0.0
    %2414 = vmatpush1.msra.mxu0 0.0
    %2415 = vmatprep.subr.mxu0 0.0
    %2416 = vmatpush1.msra.mxu0 0.0
    %2417 = vmatprep.subr.mxu0 0.0
    %2418 = vmatpush1.msra.mxu0 0.0
    %2419 = vmatprep.subr.mxu0 0.0
    %2420 = vmatpush1.msra.mxu0 0.0
    %2421 = vmatprep.subr.mxu0 0.0
    %2422 = vmatpush1.msra.mxu0 0.0
    %2423 = vmatprep.subr.mxu0 0.0
    %2424 = vmatpush1.msra.mxu0 0.0
    %2425 = vmatprep.subr.mxu0 0.0
    %2426 = vmatpush1.msra.mxu0 0.0
    %2427 = vmatprep.mubr.f32.mxu0 0.0
    %2428 = vmatmul.mubr.f32.gmra.mrb[0].mxu0 %v2211
    %v2429 = vpop.f32.mrb[0].mxu0
    %v2430 = vadd.f32 %v2282, %v2429
    %v2431 = vpop.f32.mrb[0].mxu0
    %2432 = vmatprep.mubr.f32.mxu0 0.0
    %2433 = vmatmul.mubr.f32.gmra.mrb[0].mxu0 %v2218
    %v2434 = vpop.f32.mrb[0].mxu0
    %v2435 = vadd.f32 %v2282, %v2434
    %v2436 = vpop.f32.mrb[0].mxu0
    %2437 = vdwg.mxu0
    %vm2438 = vcmask 130048
    %v2440 = vsel %vm2438, %v2353, 0
    %v2443 = vsel %vm2438, %v2355, 0
    %2445 = vmatprep.subr.mxu0 0.0
    %2446 = vmatpush1.xpose.msra.mxu0 %v2443
    %2447 = vmatprep.subr.mxu0 0.0
    %2448 = vmatpush1.xpose.msra.mxu0 0.0
    %2449 = vmatprep.subr.mxu0 0.0
    %2450 = vmatpush1.xpose.msra.mxu0 0.0
    %2451 = vmatprep.subr.mxu0 0.0
    %2452 = vmatpush1.xpose.msra.mxu0 0.0
    %2453 = vmatprep.subr.mxu0 0.0
    %2454 = vmatpush1.xpose.msra.mxu0 0.0
    %2455 = vmatprep.subr.mxu0 0.0
    %2456 = vmatpush1.xpose.msra.mxu0 0.0
    %2457 = vmatprep.subr.mxu0 0.0
    %2458 = vmatpush1.xpose.msra.mxu0 0.0
    %2459 = vmatprep.subr.mxu0 0.0
    %2460 = vmatpush1.xpose.msra.mxu0 0.0
    %2461 = vmatprep.subr.mxu0 0.0
    %2462 = vmatpush1.xpose.msra.mxu0 0.0
    %2463 = vmatprep.subr.mxu0 0.0
    %2464 = vmatpush1.xpose.msra.mxu0 0.0
    %2465 = vmatprep.subr.mxu0 0.0
    %2466 = vmatpush1.xpose.msra.mxu0 0.0
    %2467 = vmatprep.subr.mxu0 0.0
    %2468 = vmatpush1.xpose.msra.mxu0 0.0
    %2469 = vmatprep.subr.mxu0 0.0
    %2470 = vmatpush1.xpose.msra.mxu0 0.0
    %2471 = vmatprep.subr.mxu0 0.0
    %2472 = vmatpush1.xpose.msra.mxu0 0.0
    %2473 = vmatprep.subr.mxu0 0.0
    %2474 = vmatpush1.xpose.msra.mxu0 0.0
    %2475 = vmatprep.subr.mxu0 0.0
    %2476 = vmatpush1.xpose.msra.mxu0 0.0
    %2477 = vmatprep.subr.mxu0 0.0
    %2478 = vmatpush1.xpose.msra.mxu0 0.0
    %2479 = vmatprep.subr.mxu0 0.0
    %2480 = vmatpush1.xpose.msra.mxu0 0.0
    %2481 = vmatprep.subr.mxu0 0.0
    %2482 = vmatpush1.xpose.msra.mxu0 0.0
    %2483 = vmatprep.subr.mxu0 0.0
    %2484 = vmatpush1.xpose.msra.mxu0 0.0
    %2485 = vmatprep.subr.mxu0 0.0
    %2486 = vmatpush1.xpose.msra.mxu0 0.0
    %2487 = vmatprep.subr.mxu0 0.0
    %2488 = vmatpush1.xpose.msra.mxu0 0.0
    %2489 = vmatprep.subr.mxu0 0.0
    %2490 = vmatpush1.xpose.msra.mxu0 0.0
    %2491 = vmatprep.subr.mxu0 0.0
    %2492 = vmatpush1.xpose.msra.mxu0 0.0
    %2493 = vmatprep.subr.mxu0 0.0
    %2494 = vmatpush1.xpose.msra.mxu0 0.0
    %2495 = vmatprep.subr.mxu0 0.0
    %2496 = vmatpush1.xpose.msra.mxu0 0.0
    %2497 = vmatprep.subr.mxu0 0.0
    %2498 = vmatpush1.xpose.msra.mxu0 0.0
    %2499 = vmatprep.subr.mxu0 0.0
    %2500 = vmatpush1.xpose.msra.mxu0 0.0
    %2501 = vmatprep.subr.mxu0 0.0
    %2502 = vmatpush1.xpose.msra.mxu0 0.0
    %2503 = vmatprep.subr.mxu0 0.0
    %2504 = vmatpush1.xpose.msra.mxu0 0.0
    %2505 = vmatprep.subr.mxu0 0.0
    %2506 = vmatpush1.xpose.msra.mxu0 0.0
    %2507 = vmatprep.subr.mxu0 0.0
    %2508 = vmatpush1.xpose.msra.mxu0 0.0
    %2509 = vmatprep.mubr.f32.mxu0 0.0
    %2510 = vmatmul.mubr.f32.gmra.mrb[0].mxu0 %v2440
    %v2511 = vpop.f32.mrb[0].mxu0
    %v2512 = vadd.f32 0.0, %v2511
    %v2513 = vpop.f32.mrb[0].mxu0
    %2514 = vdwg.mxu0
    %2515 = vrot.lane.b32.xlu0 %v2353, 112
    %v2516 = vpop.permute.xlu0 %2515
    %2517 = vrot.lane.b32.xlu0 %v2355, 112
    %v2518 = vpop.permute.xlu0 %2517
    %v2519 = vsel %vm2438, %v2516, 0
    %v2521 = vsel %vm2438, %v2518, 0
    %2523 = vmatprep.subr.mxu0 0.0
    %2524 = vmatpush1.xpose.msra.mxu0 %v2521
    %2525 = vmatprep.subr.mxu0 0.0
    %2526 = vmatpush1.xpose.msra.mxu0 0.0
    %2527 = vmatprep.subr.mxu0 0.0
    %2528 = vmatpush1.xpose.msra.mxu0 0.0
    %2529 = vmatprep.subr.mxu0 0.0
    %2530 = vmatpush1.xpose.msra.mxu0 0.0
    %2531 = vmatprep.subr.mxu0 0.0
    %2532 = vmatpush1.xpose.msra.mxu0 0.0
    %2533 = vmatprep.subr.mxu0 0.0
    %2534 = vmatpush1.xpose.msra.mxu0 0.0
    %2535 = vmatprep.subr.mxu0 0.0
    %2536 = vmatpush1.xpose.msra.mxu0 0.0
    %2537 = vmatprep.subr.mxu0 0.0
    %2538 = vmatpush1.xpose.msra.mxu0 0.0
    %2539 = vmatprep.subr.mxu0 0.0
    %2540 = vmatpush1.xpose.msra.mxu0 0.0
    %2541 = vmatprep.subr.mxu0 0.0
    %2542 = vmatpush1.xpose.msra.mxu0 0.0
    %2543 = vmatprep.subr.mxu0 0.0
    %2544 = vmatpush1.xpose.msra.mxu0 0.0
    %2545 = vmatprep.subr.mxu0 0.0
    %2546 = vmatpush1.xpose.msra.mxu0 0.0
    %2547 = vmatprep.subr.mxu0 0.0
    %2548 = vmatpush1.xpose.msra.mxu0 0.0
    %2549 = vmatprep.subr.mxu0 0.0
    %2550 = vmatpush1.xpose.msra.mxu0 0.0
    %2551 = vmatprep.subr.mxu0 0.0
    %2552 = vmatpush1.xpose.msra.mxu0 0.0
    %2553 = vmatprep.subr.mxu0 0.0
    %2554 = vmatpush1.xpose.msra.mxu0 0.0
    %2555 = vmatprep.subr.mxu0 0.0
    %2556 = vmatpush1.xpose.msra.mxu0 0.0
    %2557 = vmatprep.subr.mxu0 0.0
    %2558 = vmatpush1.xpose.msra.mxu0 0.0
    %2559 = vmatprep.subr.mxu0 0.0
    %2560 = vmatpush1.xpose.msra.mxu0 0.0
    %2561 = vmatprep.subr.mxu0 0.0
    %2562 = vmatpush1.xpose.msra.mxu0 0.0
    %2563 = vmatprep.subr.mxu0 0.0
    %2564 = vmatpush1.xpose.msra.mxu0 0.0
    %2565 = vmatprep.subr.mxu0 0.0
    %2566 = vmatpush1.xpose.msra.mxu0 0.0
    %2567 = vmatprep.subr.mxu0 0.0
    %2568 = vmatpush1.xpose.msra.mxu0 0.0
    %2569 = vmatprep.subr.mxu0 0.0
    %2570 = vmatpush1.xpose.msra.mxu0 0.0
    %2571 = vmatprep.subr.mxu0 0.0
    %2572 = vmatpush1.xpose.msra.mxu0 0.0
    %2573 = vmatprep.subr.mxu0 0.0
    %2574 = vmatpush1.xpose.msra.mxu0 0.0
    %2575 = vmatprep.subr.mxu0 0.0
    %2576 = vmatpush1.xpose.msra.mxu0 0.0
    %2577 = vmatprep.subr.mxu0 0.0
    %2578 = vmatpush1.xpose.msra.mxu0 0.0
    %2579 = vmatprep.subr.mxu0 0.0
    %2580 = vmatpush1.xpose.msra.mxu0 0.0
    %2581 = vmatprep.subr.mxu0 0.0
    %2582 = vmatpush1.xpose.msra.mxu0 0.0
    %2583 = vmatprep.subr.mxu0 0.0
    %2584 = vmatpush1.xpose.msra.mxu0 0.0
    %2585 = vmatprep.subr.mxu0 0.0
    %2586 = vmatpush1.xpose.msra.mxu0 0.0
    %2587 = vmatprep.mubr.f32.mxu0 0.0
    %2588 = vmatmul.mubr.f32.gmra.mrb[0].mxu0 %v2519
    %v2589 = vpop.f32.mrb[0].mxu0
    %v2590 = vadd.f32 0.0, %v2589
    %v2591 = vpop.f32.mrb[0].mxu0
    %2592 = vdwg.mxu0
    %2593 = vrot.lane.b32.xlu0 %v2353, 96
    %v2594 = vpop.permute.xlu0 %2593
    %2595 = vrot.lane.b32.xlu0 %v2355, 96
    %v2596 = vpop.permute.xlu0 %2595
    %v2597 = vsel %vm2438, %v2594, 0
    %v2599 = vsel %vm2438, %v2596, 0
    %2601 = vmatprep.subr.mxu0 0.0
    %2602 = vmatpush1.xpose.msra.mxu0 %v2599
    %2603 = vmatprep.subr.mxu0 0.0
    %2604 = vmatpush1.xpose.msra.mxu0 0.0
    %2605 = vmatprep.subr.mxu0 0.0
    %2606 = vmatpush1.xpose.msra.mxu0 0.0
    %2607 = vmatprep.subr.mxu0 0.0
    %2608 = vmatpush1.xpose.msra.mxu0 0.0
    %2609 = vmatprep.subr.mxu0 0.0
    %2610 = vmatpush1.xpose.msra.mxu0 0.0
    %2611 = vmatprep.subr.mxu0 0.0
    %2612 = vmatpush1.xpose.msra.mxu0 0.0
    %2613 = vmatprep.subr.mxu0 0.0
    %2614 = vmatpush1.xpose.msra.mxu0 0.0
    %2615 = vmatprep.subr.mxu0 0.0
    %2616 = vmatpush1.xpose.msra.mxu0 0.0
    %2617 = vmatprep.subr.mxu0 0.0
    %2618 = vmatpush1.xpose.msra.mxu0 0.0
    %2619 = vmatprep.subr.mxu0 0.0
    %2620 = vmatpush1.xpose.msra.mxu0 0.0
    %2621 = vmatprep.subr.mxu0 0.0
    %2622 = vmatpush1.xpose.msra.mxu0 0.0
    %2623 = vmatprep.subr.mxu0 0.0
    %2624 = vmatpush1.xpose.msra.mxu0 0.0
    %2625 = vmatprep.subr.mxu0 0.0
    %2626 = vmatpush1.xpose.msra.mxu0 0.0
    %2627 = vmatprep.subr.mxu0 0.0
    %2628 = vmatpush1.xpose.msra.mxu0 0.0
    %2629 = vmatprep.subr.mxu0 0.0
    %2630 = vmatpush1.xpose.msra.mxu0 0.0
    %2631 = vmatprep.subr.mxu0 0.0
    %2632 = vmatpush1.xpose.msra.mxu0 0.0
    %2633 = vmatprep.subr.mxu0 0.0
    %2634 = vmatpush1.xpose.msra.mxu0 0.0
    %2635 = vmatprep.subr.mxu0 0.0
    %2636 = vmatpush1.xpose.msra.mxu0 0.0
    %2637 = vmatprep.subr.mxu0 0.0
    %2638 = vmatpush1.xpose.msra.mxu0 0.0
    %2639 = vmatprep.subr.mxu0 0.0
    %2640 = vmatpush1.xpose.msra.mxu0 0.0
    %2641 = vmatprep.subr.mxu0 0.0
    %2642 = vmatpush1.xpose.msra.mxu0 0.0
    %2643 = vmatprep.subr.mxu0 0.0
    %2644 = vmatpush1.xpose.msra.mxu0 0.0
    %2645 = vmatprep.subr.mxu0 0.0
    %2646 = vmatpush1.xpose.msra.mxu0 0.0
    %2647 = vmatprep.subr.mxu0 0.0
    %2648 = vmatpush1.xpose.msra.mxu0 0.0
    %2649 = vmatprep.subr.mxu0 0.0
    %2650 = vmatpush1.xpose.msra.mxu0 0.0
    %2651 = vmatprep.subr.mxu0 0.0
    %2652 = vmatpush1.xpose.msra.mxu0 0.0
    %2653 = vmatprep.subr.mxu0 0.0
    %2654 = vmatpush1.xpose.msra.mxu0 0.0
    %2655 = vmatprep.subr.mxu0 0.0
    %2656 = vmatpush1.xpose.msra.mxu0 0.0
    %2657 = vmatprep.subr.mxu0 0.0
    %2658 = vmatpush1.xpose.msra.mxu0 0.0
    %2659 = vmatprep.subr.mxu0 0.0
    %2660 = vmatpush1.xpose.msra.mxu0 0.0
    %2661 = vmatprep.subr.mxu0 0.0
    %2662 = vmatpush1.xpose.msra.mxu0 0.0
    %2663 = vmatprep.subr.mxu0 0.0
    %2664 = vmatpush1.xpose.msra.mxu0 0.0
    %2665 = vmatprep.mubr.f32.mxu0 0.0
    %2666 = vmatmul.mubr.f32.gmra.mrb[0].mxu0 %v2597
    %v2667 = vpop.f32.mrb[0].mxu0
    %v2668 = vadd.f32 0.0, %v2667
    %v2669 = vpop.f32.mrb[0].mxu0
    %2670 = vdwg.mxu0
    %2671 = vrot.lane.b32.xlu0 %v2353, 80
    %v2672 = vpop.permute.xlu0 %2671
    %2673 = vrot.lane.b32.xlu0 %v2355, 80
    %v2674 = vpop.permute.xlu0 %2673
    %v2675 = vsel %vm2438, %v2672, 0
    %v2677 = vsel %vm2438, %v2674, 0
    %2679 = vmatprep.subr.mxu0 0.0
    %2680 = vmatpush1.xpose.msra.mxu0 %v2677
    %2681 = vmatprep.subr.mxu0 0.0
    %2682 = vmatpush1.xpose.msra.mxu0 0.0
    %2683 = vmatprep.subr.mxu0 0.0
    %2684 = vmatpush1.xpose.msra.mxu0 0.0
    %2685 = vmatprep.subr.mxu0 0.0
    %2686 = vmatpush1.xpose.msra.mxu0 0.0
    %2687 = vmatprep.subr.mxu0 0.0
    %2688 = vmatpush1.xpose.msra.mxu0 0.0
    %2689 = vmatprep.subr.mxu0 0.0
    %2690 = vmatpush1.xpose.msra.mxu0 0.0
    %2691 = vmatprep.subr.mxu0 0.0
    %2692 = vmatpush1.xpose.msra.mxu0 0.0
    %2693 = vmatprep.subr.mxu0 0.0
    %2694 = vmatpush1.xpose.msra.mxu0 0.0
    %2695 = vmatprep.subr.mxu0 0.0
    %2696 = vmatpush1.xpose.msra.mxu0 0.0
    %2697 = vmatprep.subr.mxu0 0.0
    %2698 = vmatpush1.xpose.msra.mxu0 0.0
    %2699 = vmatprep.subr.mxu0 0.0
    %2700 = vmatpush1.xpose.msra.mxu0 0.0
    %2701 = vmatprep.subr.mxu0 0.0
    %2702 = vmatpush1.xpose.msra.mxu0 0.0
    %2703 = vmatprep.subr.mxu0 0.0
    %2704 = vmatpush1.xpose.msra.mxu0 0.0
    %2705 = vmatprep.subr.mxu0 0.0
    %2706 = vmatpush1.xpose.msra.mxu0 0.0
    %2707 = vmatprep.subr.mxu0 0.0
    %2708 = vmatpush1.xpose.msra.mxu0 0.0
    %2709 = vmatprep.subr.mxu0 0.0
    %2710 = vmatpush1.xpose.msra.mxu0 0.0
    %2711 = vmatprep.subr.mxu0 0.0
    %2712 = vmatpush1.xpose.msra.mxu0 0.0
    %2713 = vmatprep.subr.mxu0 0.0
    %2714 = vmatpush1.xpose.msra.mxu0 0.0
    %2715 = vmatprep.subr.mxu0 0.0
    %2716 = vmatpush1.xpose.msra.mxu0 0.0
    %2717 = vmatprep.subr.mxu0 0.0
    %2718 = vmatpush1.xpose.msra.mxu0 0.0
    %2719 = vmatprep.subr.mxu0 0.0
    %2720 = vmatpush1.xpose.msra.mxu0 0.0
    %2721 = vmatprep.subr.mxu0 0.0
    %2722 = vmatpush1.xpose.msra.mxu0 0.0
    %2723 = vmatprep.subr.mxu0 0.0
    %2724 = vmatpush1.xpose.msra.mxu0 0.0
    %2725 = vmatprep.subr.mxu0 0.0
    %2726 = vmatpush1.xpose.msra.mxu0 0.0
    %2727 = vmatprep.subr.mxu0 0.0
    %2728 = vmatpush1.xpose.msra.mxu0 0.0
    %2729 = vmatprep.subr.mxu0 0.0
    %2730 = vmatpush1.xpose.msra.mxu0 0.0
    %2731 = vmatprep.subr.mxu0 0.0
    %2732 = vmatpush1.xpose.msra.mxu0 0.0
    %2733 = vmatprep.subr.mxu0 0.0
    %2734 = vmatpush1.xpose.msra.mxu0 0.0
    %2735 = vmatprep.subr.mxu0 0.0
    %2736 = vmatpush1.xpose.msra.mxu0 0.0
    %2737 = vmatprep.subr.mxu0 0.0
    %2738 = vmatpush1.xpose.msra.mxu0 0.0
    %2739 = vmatprep.subr.mxu0 0.0
    %2740 = vmatpush1.xpose.msra.mxu0 0.0
    %2741 = vmatprep.subr.mxu0 0.0
    %2742 = vmatpush1.xpose.msra.mxu0 0.0
    %2743 = vmatprep.mubr.f32.mxu0 0.0
    %2744 = vmatmul.mubr.f32.gmra.mrb[0].mxu0 %v2675
    %v2745 = vpop.f32.mrb[0].mxu0
    %v2746 = vadd.f32 0.0, %v2745
    %v2747 = vpop.f32.mrb[0].mxu0
    %2748 = vdwg.mxu0
    %2749 = vrot.lane.b32.xlu0 %v2353, 64
    %v2750 = vpop.permute.xlu0 %2749
    %2751 = vrot.lane.b32.xlu0 %v2355, 64
    %v2752 = vpop.permute.xlu0 %2751
    %v2753 = vsel %vm2438, %v2750, 0
    %v2755 = vsel %vm2438, %v2752, 0
    %2757 = vmatprep.subr.mxu0 0.0
    %2758 = vmatpush1.xpose.msra.mxu0 %v2755
    %2759 = vmatprep.subr.mxu0 0.0
    %2760 = vmatpush1.xpose.msra.mxu0 0.0
    %2761 = vmatprep.subr.mxu0 0.0
    %2762 = vmatpush1.xpose.msra.mxu0 0.0
    %2763 = vmatprep.subr.mxu0 0.0
    %2764 = vmatpush1.xpose.msra.mxu0 0.0
    %2765 = vmatprep.subr.mxu0 0.0
    %2766 = vmatpush1.xpose.msra.mxu0 0.0
    %2767 = vmatprep.subr.mxu0 0.0
    %2768 = vmatpush1.xpose.msra.mxu0 0.0
    %2769 = vmatprep.subr.mxu0 0.0
    %2770 = vmatpush1.xpose.msra.mxu0 0.0
    %2771 = vmatprep.subr.mxu0 0.0
    %2772 = vmatpush1.xpose.msra.mxu0 0.0
    %2773 = vmatprep.subr.mxu0 0.0
    %2774 = vmatpush1.xpose.msra.mxu0 0.0
    %2775 = vmatprep.subr.mxu0 0.0
    %2776 = vmatpush1.xpose.msra.mxu0 0.0
    %2777 = vmatprep.subr.mxu0 0.0
    %2778 = vmatpush1.xpose.msra.mxu0 0.0
    %2779 = vmatprep.subr.mxu0 0.0
    %2780 = vmatpush1.xpose.msra.mxu0 0.0
    %2781 = vmatprep.subr.mxu0 0.0
    %2782 = vmatpush1.xpose.msra.mxu0 0.0
    %2783 = vmatprep.subr.mxu0 0.0
    %2784 = vmatpush1.xpose.msra.mxu0 0.0
    %2785 = vmatprep.subr.mxu0 0.0
    %2786 = vmatpush1.xpose.msra.mxu0 0.0
    %2787 = vmatprep.subr.mxu0 0.0
    %2788 = vmatpush1.xpose.msra.mxu0 0.0
    %2789 = vmatprep.subr.mxu0 0.0
    %2790 = vmatpush1.xpose.msra.mxu0 0.0
    %2791 = vmatprep.subr.mxu0 0.0
    %2792 = vmatpush1.xpose.msra.mxu0 0.0
    %2793 = vmatprep.subr.mxu0 0.0
    %2794 = vmatpush1.xpose.msra.mxu0 0.0
    %2795 = vmatprep.subr.mxu0 0.0
    %2796 = vmatpush1.xpose.msra.mxu0 0.0
    %2797 = vmatprep.subr.mxu0 0.0
    %2798 = vmatpush1.xpose.msra.mxu0 0.0
    %2799 = vmatprep.subr.mxu0 0.0
    %2800 = vmatpush1.xpose.msra.mxu0 0.0
    %2801 = vmatprep.subr.mxu0 0.0
    %2802 = vmatpush1.xpose.msra.mxu0 0.0
    %2803 = vmatprep.subr.mxu0 0.0
    %2804 = vmatpush1.xpose.msra.mxu0 0.0
    %2805 = vmatprep.subr.mxu0 0.0
    %2806 = vmatpush1.xpose.msra.mxu0 0.0
    %2807 = vmatprep.subr.mxu0 0.0
    %2808 = vmatpush1.xpose.msra.mxu0 0.0
    %2809 = vmatprep.subr.mxu0 0.0
    %2810 = vmatpush1.xpose.msra.mxu0 0.0
    %2811 = vmatprep.subr.mxu0 0.0
    %2812 = vmatpush1.xpose.msra.mxu0 0.0
    %2813 = vmatprep.subr.mxu0 0.0
    %2814 = vmatpush1.xpose.msra.mxu0 0.0
    %2815 = vmatprep.subr.mxu0 0.0
    %2816 = vmatpush1.xpose.msra.mxu0 0.0
    %2817 = vmatprep.subr.mxu0 0.0
    %2818 = vmatpush1.xpose.msra.mxu0 0.0
    %2819 = vmatprep.subr.mxu0 0.0
    %2820 = vmatpush1.xpose.msra.mxu0 0.0
    %2821 = vmatprep.mubr.f32.mxu0 0.0
    %2822 = vmatmul.mubr.f32.gmra.mrb[0].mxu0 %v2753
    %v2823 = vpop.f32.mrb[0].mxu0
    %v2824 = vadd.f32 0.0, %v2823
    %v2825 = vpop.f32.mrb[0].mxu0
    %2826 = vdwg.mxu0
    %2827 = vrot.lane.b32.xlu0 %v2353, 48
    %v2828 = vpop.permute.xlu0 %2827
    %2829 = vrot.lane.b32.xlu0 %v2355, 48
    %v2830 = vpop.permute.xlu0 %2829
    %v2831 = vsel %vm2438, %v2828, 0
    %v2833 = vsel %vm2438, %v2830, 0
    %2835 = vmatprep.subr.mxu0 0.0
    %2836 = vmatpush1.xpose.msra.mxu0 %v2833
    %2837 = vmatprep.subr.mxu0 0.0
    %2838 = vmatpush1.xpose.msra.mxu0 0.0
    %2839 = vmatprep.subr.mxu0 0.0
    %2840 = vmatpush1.xpose.msra.mxu0 0.0
    %2841 = vmatprep.subr.mxu0 0.0
    %2842 = vmatpush1.xpose.msra.mxu0 0.0
    %2843 = vmatprep.subr.mxu0 0.0
    %2844 = vmatpush1.xpose.msra.mxu0 0.0
    %2845 = vmatprep.subr.mxu0 0.0
    %2846 = vmatpush1.xpose.msra.mxu0 0.0
    %2847 = vmatprep.subr.mxu0 0.0
    %2848 = vmatpush1.xpose.msra.mxu0 0.0
    %2849 = vmatprep.subr.mxu0 0.0
    %2850 = vmatpush1.xpose.msra.mxu0 0.0
    %2851 = vmatprep.subr.mxu0 0.0
    %2852 = vmatpush1.xpose.msra.mxu0 0.0
    %2853 = vmatprep.subr.mxu0 0.0
    %2854 = vmatpush1.xpose.msra.mxu0 0.0
    %2855 = vmatprep.subr.mxu0 0.0
    %2856 = vmatpush1.xpose.msra.mxu0 0.0
    %2857 = vmatprep.subr.mxu0 0.0
    %2858 = vmatpush1.xpose.msra.mxu0 0.0
    %2859 = vmatprep.subr.mxu0 0.0
    %2860 = vmatpush1.xpose.msra.mxu0 0.0
    %2861 = vmatprep.subr.mxu0 0.0
    %2862 = vmatpush1.xpose.msra.mxu0 0.0
    %2863 = vmatprep.subr.mxu0 0.0
    %2864 = vmatpush1.xpose.msra.mxu0 0.0
    %2865 = vmatprep.subr.mxu0 0.0
    %2866 = vmatpush1.xpose.msra.mxu0 0.0
    %2867 = vmatprep.subr.mxu0 0.0
    %2868 = vmatpush1.xpose.msra.mxu0 0.0
    %2869 = vmatprep.subr.mxu0 0.0
    %2870 = vmatpush1.xpose.msra.mxu0 0.0
    %2871 = vmatprep.subr.mxu0 0.0
    %2872 = vmatpush1.xpose.msra.mxu0 0.0
    %2873 = vmatprep.subr.mxu0 0.0
    %2874 = vmatpush1.xpose.msra.mxu0 0.0
    %2875 = vmatprep.subr.mxu0 0.0
    %2876 = vmatpush1.xpose.msra.mxu0 0.0
    %2877 = vmatprep.subr.mxu0 0.0
    %2878 = vmatpush1.xpose.msra.mxu0 0.0
    %2879 = vmatprep.subr.mxu0 0.0
    %2880 = vmatpush1.xpose.msra.mxu0 0.0
    %2881 = vmatprep.subr.mxu0 0.0
    %2882 = vmatpush1.xpose.msra.mxu0 0.0
    %2883 = vmatprep.subr.mxu0 0.0
    %2884 = vmatpush1.xpose.msra.mxu0 0.0
    %2885 = vmatprep.subr.mxu0 0.0
    %2886 = vmatpush1.xpose.msra.mxu0 0.0
    %2887 = vmatprep.subr.mxu0 0.0
    %2888 = vmatpush1.xpose.msra.mxu0 0.0
    %2889 = vmatprep.subr.mxu0 0.0
    %2890 = vmatpush1.xpose.msra.mxu0 0.0
    %2891 = vmatprep.subr.mxu0 0.0
    %2892 = vmatpush1.xpose.msra.mxu0 0.0
    %2893 = vmatprep.subr.mxu0 0.0
    %2894 = vmatpush1.xpose.msra.mxu0 0.0
    %2895 = vmatprep.subr.mxu0 0.0
    %2896 = vmatpush1.xpose.msra.mxu0 0.0
    %2897 = vmatprep.subr.mxu0 0.0
    %2898 = vmatpush1.xpose.msra.mxu0 0.0
    %2899 = vmatprep.mubr.f32.mxu0 0.0
    %2900 = vmatmul.mubr.f32.gmra.mrb[0].mxu0 %v2831
    %v2901 = vpop.f32.mrb[0].mxu0
    %v2902 = vadd.f32 0.0, %v2901
    %v2903 = vpop.f32.mrb[0].mxu0
    %2904 = vdwg.mxu0
    %2905 = vrot.lane.b32.xlu0 %v2353, 32
    %v2906 = vpop.permute.xlu0 %2905
    %2907 = vrot.lane.b32.xlu0 %v2355, 32
    %v2908 = vpop.permute.xlu0 %2907
    %v2909 = vsel %vm2438, %v2906, 0
    %v2911 = vsel %vm2438, %v2908, 0
    %2913 = vmatprep.subr.mxu0 0.0
    %2914 = vmatpush1.xpose.msra.mxu0 %v2911
    %2915 = vmatprep.subr.mxu0 0.0
    %2916 = vmatpush1.xpose.msra.mxu0 0.0
    %2917 = vmatprep.subr.mxu0 0.0
    %2918 = vmatpush1.xpose.msra.mxu0 0.0
    %2919 = vmatprep.subr.mxu0 0.0
    %2920 = vmatpush1.xpose.msra.mxu0 0.0
    %2921 = vmatprep.subr.mxu0 0.0
    %2922 = vmatpush1.xpose.msra.mxu0 0.0
    %2923 = vmatprep.subr.mxu0 0.0
    %2924 = vmatpush1.xpose.msra.mxu0 0.0
    %2925 = vmatprep.subr.mxu0 0.0
    %2926 = vmatpush1.xpose.msra.mxu0 0.0
    %2927 = vmatprep.subr.mxu0 0.0
    %2928 = vmatpush1.xpose.msra.mxu0 0.0
    %2929 = vmatprep.subr.mxu0 0.0
    %2930 = vmatpush1.xpose.msra.mxu0 0.0
    %2931 = vmatprep.subr.mxu0 0.0
    %2932 = vmatpush1.xpose.msra.mxu0 0.0
    %2933 = vmatprep.subr.mxu0 0.0
    %2934 = vmatpush1.xpose.msra.mxu0 0.0
    %2935 = vmatprep.subr.mxu0 0.0
    %2936 = vmatpush1.xpose.msra.mxu0 0.0
    %2937 = vmatprep.subr.mxu0 0.0
    %2938 = vmatpush1.xpose.msra.mxu0 0.0
    %2939 = vmatprep.subr.mxu0 0.0
    %2940 = vmatpush1.xpose.msra.mxu0 0.0
    %2941 = vmatprep.subr.mxu0 0.0
    %2942 = vmatpush1.xpose.msra.mxu0 0.0
    %2943 = vmatprep.subr.mxu0 0.0
    %2944 = vmatpush1.xpose.msra.mxu0 0.0
    %2945 = vmatprep.subr.mxu0 0.0
    %2946 = vmatpush1.xpose.msra.mxu0 0.0
    %2947 = vmatprep.subr.mxu0 0.0
    %2948 = vmatpush1.xpose.msra.mxu0 0.0
    %2949 = vmatprep.subr.mxu0 0.0
    %2950 = vmatpush1.xpose.msra.mxu0 0.0
    %2951 = vmatprep.subr.mxu0 0.0
    %2952 = vmatpush1.xpose.msra.mxu0 0.0
    %2953 = vmatprep.subr.mxu0 0.0
    %2954 = vmatpush1.xpose.msra.mxu0 0.0
    %2955 = vmatprep.subr.mxu0 0.0
    %2956 = vmatpush1.xpose.msra.mxu0 0.0
    %2957 = vmatprep.subr.mxu0 0.0
    %2958 = vmatpush1.xpose.msra.mxu0 0.0
    %2959 = vmatprep.subr.mxu0 0.0
    %2960 = vmatpush1.xpose.msra.mxu0 0.0
    %2961 = vmatprep.subr.mxu0 0.0
    %2962 = vmatpush1.xpose.msra.mxu0 0.0
    %2963 = vmatprep.subr.mxu0 0.0
    %2964 = vmatpush1.xpose.msra.mxu0 0.0
    %2965 = vmatprep.subr.mxu0 0.0
    %2966 = vmatpush1.xpose.msra.mxu0 0.0
    %2967 = vmatprep.subr.mxu0 0.0
    %2968 = vmatpush1.xpose.msra.mxu0 0.0
    %2969 = vmatprep.subr.mxu0 0.0
    %2970 = vmatpush1.xpose.msra.mxu0 0.0
    %2971 = vmatprep.subr.mxu0 0.0
    %2972 = vmatpush1.xpose.msra.mxu0 0.0
    %2973 = vmatprep.subr.mxu0 0.0
    %2974 = vmatpush1.xpose.msra.mxu0 0.0
    %2975 = vmatprep.subr.mxu0 0.0
    %2976 = vmatpush1.xpose.msra.mxu0 0.0
    %2977 = vmatprep.mubr.f32.mxu0 0.0
    %2978 = vmatmul.mubr.f32.gmra.mrb[0].mxu0 %v2909
    %v2979 = vpop.f32.mrb[0].mxu0
    %v2980 = vadd.f32 0.0, %v2979
    %v2981 = vpop.f32.mrb[0].mxu0
    %2982 = vdwg.mxu0
    %2983 = vrot.lane.b32.xlu0 %v2353, 16
    %v2984 = vpop.permute.xlu0 %2983
    %2985 = vrot.lane.b32.xlu0 %v2355, 16
    %v2986 = vpop.permute.xlu0 %2985
    %v2987 = vsel %vm2438, %v2984, 0
    %v2989 = vsel %vm2438, %v2986, 0
    %2991 = vmatprep.subr.mxu0 0.0
    %2992 = vmatpush1.xpose.msra.mxu0 %v2989
    %2993 = vmatprep.subr.mxu0 0.0
    %2994 = vmatpush1.xpose.msra.mxu0 0.0
    %2995 = vmatprep.subr.mxu0 0.0
    %2996 = vmatpush1.xpose.msra.mxu0 0.0
    %2997 = vmatprep.subr.mxu0 0.0
    %2998 = vmatpush1.xpose.msra.mxu0 0.0
    %2999 = vmatprep.subr.mxu0 0.0
    %3000 = vmatpush1.xpose.msra.mxu0 0.0
    %3001 = vmatprep.subr.mxu0 0.0
    %3002 = vmatpush1.xpose.msra.mxu0 0.0
    %3003 = vmatprep.subr.mxu0 0.0
    %3004 = vmatpush1.xpose.msra.mxu0 0.0
    %3005 = vmatprep.subr.mxu0 0.0
    %3006 = vmatpush1.xpose.msra.mxu0 0.0
    %3007 = vmatprep.subr.mxu0 0.0
    %3008 = vmatpush1.xpose.msra.mxu0 0.0
    %3009 = vmatprep.subr.mxu0 0.0
    %3010 = vmatpush1.xpose.msra.mxu0 0.0
    %3011 = vmatprep.subr.mxu0 0.0
    %3012 = vmatpush1.xpose.msra.mxu0 0.0
    %3013 = vmatprep.subr.mxu0 0.0
    %3014 = vmatpush1.xpose.msra.mxu0 0.0
    %3015 = vmatprep.subr.mxu0 0.0
    %3016 = vmatpush1.xpose.msra.mxu0 0.0
    %3017 = vmatprep.subr.mxu0 0.0
    %3018 = vmatpush1.xpose.msra.mxu0 0.0
    %3019 = vmatprep.subr.mxu0 0.0
    %3020 = vmatpush1.xpose.msra.mxu0 0.0
    %3021 = vmatprep.subr.mxu0 0.0
    %3022 = vmatpush1.xpose.msra.mxu0 0.0
    %3023 = vmatprep.subr.mxu0 0.0
    %3024 = vmatpush1.xpose.msra.mxu0 0.0
    %3025 = vmatprep.subr.mxu0 0.0
    %3026 = vmatpush1.xpose.msra.mxu0 0.0
    %3027 = vmatprep.subr.mxu0 0.0
    %3028 = vmatpush1.xpose.msra.mxu0 0.0
    %3029 = vmatprep.subr.mxu0 0.0
    %3030 = vmatpush1.xpose.msra.mxu0 0.0
    %3031 = vmatprep.subr.mxu0 0.0
    %3032 = vmatpush1.xpose.msra.mxu0 0.0
    %3033 = vmatprep.subr.mxu0 0.0
    %3034 = vmatpush1.xpose.msra.mxu0 0.0
    %3035 = vmatprep.subr.mxu0 0.0
    %3036 = vmatpush1.xpose.msra.mxu0 0.0
    %3037 = vmatprep.subr.mxu0 0.0
    %3038 = vmatpush1.xpose.msra.mxu0 0.0
    %3039 = vmatprep.subr.mxu0 0.0
    %3040 = vmatpush1.xpose.msra.mxu0 0.0
    %3041 = vmatprep.subr.mxu0 0.0
    %3042 = vmatpush1.xpose.msra.mxu0 0.0
    %3043 = vmatprep.subr.mxu0 0.0
    %3044 = vmatpush1.xpose.msra.mxu0 0.0
    %3045 = vmatprep.subr.mxu0 0.0
    %3046 = vmatpush1.xpose.msra.mxu0 0.0
    %3047 = vmatprep.subr.mxu0 0.0
    %3048 = vmatpush1.xpose.msra.mxu0 0.0
    %3049 = vmatprep.subr.mxu0 0.0
    %3050 = vmatpush1.xpose.msra.mxu0 0.0
    %3051 = vmatprep.subr.mxu0 0.0
    %3052 = vmatpush1.xpose.msra.mxu0 0.0
    %3053 = vmatprep.subr.mxu0 0.0
    %3054 = vmatpush1.xpose.msra.mxu0 0.0
    %3055 = vmatprep.mubr.f32.mxu0 0.0
    %3056 = vmatmul.mubr.f32.gmra.mrb[0].mxu0 %v2987
    %v3057 = vpop.f32.mrb[0].mxu0
    %v3058 = vadd.f32 0.0, %v3057
    %v3059 = vpop.f32.mrb[0].mxu0
    %3060 = vdwg.mxu0
    %v3062 = vsel %vm2438, %v2359, 0
    %v3065 = vsel %vm2438, %v2361, 0
    %3067 = vmatprep.subr.mxu0 0.0
    %3068 = vmatpush1.xpose.msra.mxu0 %v3065
    %3069 = vmatprep.subr.mxu0 0.0
    %3070 = vmatpush1.xpose.msra.mxu0 0.0
    %3071 = vmatprep.subr.mxu0 0.0
    %3072 = vmatpush1.xpose.msra.mxu0 0.0
    %3073 = vmatprep.subr.mxu0 0.0
    %3074 = vmatpush1.xpose.msra.mxu0 0.0
    %3075 = vmatprep.subr.mxu0 0.0
    %3076 = vmatpush1.xpose.msra.mxu0 0.0
    %3077 = vmatprep.subr.mxu0 0.0
    %3078 = vmatpush1.xpose.msra.mxu0 0.0
    %3079 = vmatprep.subr.mxu0 0.0
    %3080 = vmatpush1.xpose.msra.mxu0 0.0
    %3081 = vmatprep.subr.mxu0 0.0
    %3082 = vmatpush1.xpose.msra.mxu0 0.0
    %3083 = vmatprep.subr.mxu0 0.0
    %3084 = vmatpush1.xpose.msra.mxu0 0.0
    %3085 = vmatprep.subr.mxu0 0.0
    %3086 = vmatpush1.xpose.msra.mxu0 0.0
    %3087 = vmatprep.subr.mxu0 0.0
    %3088 = vmatpush1.xpose.msra.mxu0 0.0
    %3089 = vmatprep.subr.mxu0 0.0
    %3090 = vmatpush1.xpose.msra.mxu0 0.0
    %3091 = vmatprep.subr.mxu0 0.0
    %3092 = vmatpush1.xpose.msra.mxu0 0.0
    %3093 = vmatprep.subr.mxu0 0.0
    %3094 = vmatpush1.xpose.msra.mxu0 0.0
    %3095 = vmatprep.subr.mxu0 0.0
    %3096 = vmatpush1.xpose.msra.mxu0 0.0
    %3097 = vmatprep.subr.mxu0 0.0
    %3098 = vmatpush1.xpose.msra.mxu0 0.0
    %3099 = vmatprep.subr.mxu0 0.0
    %3100 = vmatpush1.xpose.msra.mxu0 0.0
    %3101 = vmatprep.subr.mxu0 0.0
    %3102 = vmatpush1.xpose.msra.mxu0 0.0
    %3103 = vmatprep.subr.mxu0 0.0
    %3104 = vmatpush1.xpose.msra.mxu0 0.0
    %3105 = vmatprep.subr.mxu0 0.0
    %3106 = vmatpush1.xpose.msra.mxu0 0.0
    %3107 = vmatprep.subr.mxu0 0.0
    %3108 = vmatpush1.xpose.msra.mxu0 0.0
    %3109 = vmatprep.subr.mxu0 0.0
    %3110 = vmatpush1.xpose.msra.mxu0 0.0
    %3111 = vmatprep.subr.mxu0 0.0
    %3112 = vmatpush1.xpose.msra.mxu0 0.0
    %3113 = vmatprep.subr.mxu0 0.0
    %3114 = vmatpush1.xpose.msra.mxu0 0.0
    %3115 = vmatprep.subr.mxu0 0.0
    %3116 = vmatpush1.xpose.msra.mxu0 0.0
    %3117 = vmatprep.subr.mxu0 0.0
    %3118 = vmatpush1.xpose.msra.mxu0 0.0
    %3119 = vmatprep.subr.mxu0 0.0
    %3120 = vmatpush1.xpose.msra.mxu0 0.0
    %3121 = vmatprep.subr.mxu0 0.0
    %3122 = vmatpush1.xpose.msra.mxu0 0.0
    %3123 = vmatprep.subr.mxu0 0.0
    %3124 = vmatpush1.xpose.msra.mxu0 0.0
    %3125 = vmatprep.subr.mxu0 0.0
    %3126 = vmatpush1.xpose.msra.mxu0 0.0
    %3127 = vmatprep.subr.mxu0 0.0
    %3128 = vmatpush1.xpose.msra.mxu0 0.0
    %3129 = vmatprep.subr.mxu0 0.0
    %3130 = vmatpush1.xpose.msra.mxu0 0.0
    %3131 = vmatprep.mubr.f32.mxu0 0.0
    %3132 = vmatmul.mubr.f32.gmra.mrb[0].mxu0 %v3062
    %v3133 = vpop.f32.mrb[0].mxu0
    %v3134 = vadd.f32 0.0, %v3133
    %v3135 = vpop.f32.mrb[0].mxu0
    %3136 = vdwg.mxu0
    %3137 = vrot.lane.b32.xlu0 %v2359, 112
    %v3138 = vpop.permute.xlu0 %3137
    %3139 = vrot.lane.b32.xlu0 %v2361, 112
    %v3140 = vpop.permute.xlu0 %3139
    %v3141 = vsel %vm2438, %v3138, 0
    %v3143 = vsel %vm2438, %v3140, 0
    %3145 = vmatprep.subr.mxu0 0.0
    %3146 = vmatpush1.xpose.msra.mxu0 %v3143
    %3147 = vmatprep.subr.mxu0 0.0
    %3148 = vmatpush1.xpose.msra.mxu0 0.0
    %3149 = vmatprep.subr.mxu0 0.0
    %3150 = vmatpush1.xpose.msra.mxu0 0.0
    %3151 = vmatprep.subr.mxu0 0.0
    %3152 = vmatpush1.xpose.msra.mxu0 0.0
    %3153 = vmatprep.subr.mxu0 0.0
    %3154 = vmatpush1.xpose.msra.mxu0 0.0
    %3155 = vmatprep.subr.mxu0 0.0
    %3156 = vmatpush1.xpose.msra.mxu0 0.0
    %3157 = vmatprep.subr.mxu0 0.0
    %3158 = vmatpush1.xpose.msra.mxu0 0.0
    %3159 = vmatprep.subr.mxu0 0.0
    %3160 = vmatpush1.xpose.msra.mxu0 0.0
    %3161 = vmatprep.subr.mxu0 0.0
    %3162 = vmatpush1.xpose.msra.mxu0 0.0
    %3163 = vmatprep.subr.mxu0 0.0
    %3164 = vmatpush1.xpose.msra.mxu0 0.0
    %3165 = vmatprep.subr.mxu0 0.0
    %3166 = vmatpush1.xpose.msra.mxu0 0.0
    %3167 = vmatprep.subr.mxu0 0.0
    %3168 = vmatpush1.xpose.msra.mxu0 0.0
    %3169 = vmatprep.subr.mxu0 0.0
    %3170 = vmatpush1.xpose.msra.mxu0 0.0
    %3171 = vmatprep.subr.mxu0 0.0
    %3172 = vmatpush1.xpose.msra.mxu0 0.0
    %3173 = vmatprep.subr.mxu0 0.0
    %3174 = vmatpush1.xpose.msra.mxu0 0.0
    %3175 = vmatprep.subr.mxu0 0.0
    %3176 = vmatpush1.xpose.msra.mxu0 0.0
    %3177 = vmatprep.subr.mxu0 0.0
    %3178 = vmatpush1.xpose.msra.mxu0 0.0
    %3179 = vmatprep.subr.mxu0 0.0
    %3180 = vmatpush1.xpose.msra.mxu0 0.0
    %3181 = vmatprep.subr.mxu0 0.0
    %3182 = vmatpush1.xpose.msra.mxu0 0.0
    %3183 = vmatprep.subr.mxu0 0.0
    %3184 = vmatpush1.xpose.msra.mxu0 0.0
    %3185 = vmatprep.subr.mxu0 0.0
    %3186 = vmatpush1.xpose.msra.mxu0 0.0
    %3187 = vmatprep.subr.mxu0 0.0
    %3188 = vmatpush1.xpose.msra.mxu0 0.0
    %3189 = vmatprep.subr.mxu0 0.0
    %3190 = vmatpush1.xpose.msra.mxu0 0.0
    %3191 = vmatprep.subr.mxu0 0.0
    %3192 = vmatpush1.xpose.msra.mxu0 0.0
    %3193 = vmatprep.subr.mxu0 0.0
    %3194 = vmatpush1.xpose.msra.mxu0 0.0
    %3195 = vmatprep.subr.mxu0 0.0
    %3196 = vmatpush1.xpose.msra.mxu0 0.0
    %3197 = vmatprep.subr.mxu0 0.0
    %3198 = vmatpush1.xpose.msra.mxu0 0.0
    %3199 = vmatprep.subr.mxu0 0.0
    %3200 = vmatpush1.xpose.msra.mxu0 0.0
    %3201 = vmatprep.subr.mxu0 0.0
    %3202 = vmatpush1.xpose.msra.mxu0 0.0
    %3203 = vmatprep.subr.mxu0 0.0
    %3204 = vmatpush1.xpose.msra.mxu0 0.0
    %3205 = vmatprep.subr.mxu0 0.0
    %3206 = vmatpush1.xpose.msra.mxu0 0.0
    %3207 = vmatprep.subr.mxu0 0.0
    %3208 = vmatpush1.xpose.msra.mxu0 0.0
    %3209 = vmatprep.mubr.f32.mxu0 0.0
    %3210 = vmatmul.mubr.f32.gmra.mrb[0].mxu0 %v3141
    %v3211 = vpop.f32.mrb[0].mxu0
    %v3212 = vadd.f32 0.0, %v3211
    %v3213 = vpop.f32.mrb[0].mxu0
    %3214 = vdwg.mxu0
    %3215 = vrot.lane.b32.xlu0 %v2359, 96
    %v3216 = vpop.permute.xlu0 %3215
    %3217 = vrot.lane.b32.xlu0 %v2361, 96
    %v3218 = vpop.permute.xlu0 %3217
    %v3219 = vsel %vm2438, %v3216, 0
    %v3221 = vsel %vm2438, %v3218, 0
    %3223 = vmatprep.subr.mxu0 0.0
    %3224 = vmatpush1.xpose.msra.mxu0 %v3221
    %3225 = vmatprep.subr.mxu0 0.0
    %3226 = vmatpush1.xpose.msra.mxu0 0.0
    %3227 = vmatprep.subr.mxu0 0.0
    %3228 = vmatpush1.xpose.msra.mxu0 0.0
    %3229 = vmatprep.subr.mxu0 0.0
    %3230 = vmatpush1.xpose.msra.mxu0 0.0
    %3231 = vmatprep.subr.mxu0 0.0
    %3232 = vmatpush1.xpose.msra.mxu0 0.0
    %3233 = vmatprep.subr.mxu0 0.0
    %3234 = vmatpush1.xpose.msra.mxu0 0.0
    %3235 = vmatprep.subr.mxu0 0.0
    %3236 = vmatpush1.xpose.msra.mxu0 0.0
    %3237 = vmatprep.subr.mxu0 0.0
    %3238 = vmatpush1.xpose.msra.mxu0 0.0
    %3239 = vmatprep.subr.mxu0 0.0
    %3240 = vmatpush1.xpose.msra.mxu0 0.0
    %3241 = vmatprep.subr.mxu0 0.0
    %3242 = vmatpush1.xpose.msra.mxu0 0.0
    %3243 = vmatprep.subr.mxu0 0.0
    %3244 = vmatpush1.xpose.msra.mxu0 0.0
    %3245 = vmatprep.subr.mxu0 0.0
    %3246 = vmatpush1.xpose.msra.mxu0 0.0
    %3247 = vmatprep.subr.mxu0 0.0
    %3248 = vmatpush1.xpose.msra.mxu0 0.0
    %3249 = vmatprep.subr.mxu0 0.0
    %3250 = vmatpush1.xpose.msra.mxu0 0.0
    %3251 = vmatprep.subr.mxu0 0.0
    %3252 = vmatpush1.xpose.msra.mxu0 0.0
    %3253 = vmatprep.subr.mxu0 0.0
    %3254 = vmatpush1.xpose.msra.mxu0 0.0
    %3255 = vmatprep.subr.mxu0 0.0
    %3256 = vmatpush1.xpose.msra.mxu0 0.0
    %3257 = vmatprep.subr.mxu0 0.0
    %3258 = vmatpush1.xpose.msra.mxu0 0.0
    %3259 = vmatprep.subr.mxu0 0.0
    %3260 = vmatpush1.xpose.msra.mxu0 0.0
    %3261 = vmatprep.subr.mxu0 0.0
    %3262 = vmatpush1.xpose.msra.mxu0 0.0
    %3263 = vmatprep.subr.mxu0 0.0
    %3264 = vmatpush1.xpose.msra.mxu0 0.0
    %3265 = vmatprep.subr.mxu0 0.0
    %3266 = vmatpush1.xpose.msra.mxu0 0.0
    %3267 = vmatprep.subr.mxu0 0.0
    %3268 = vmatpush1.xpose.msra.mxu0 0.0
    %3269 = vmatprep.subr.mxu0 0.0
    %3270 = vmatpush1.xpose.msra.mxu0 0.0
    %3271 = vmatprep.subr.mxu0 0.0
    %3272 = vmatpush1.xpose.msra.mxu0 0.0
    %3273 = vmatprep.subr.mxu0 0.0
    %3274 = vmatpush1.xpose.msra.mxu0 0.0
    %3275 = vmatprep.subr.mxu0 0.0
    %3276 = vmatpush1.xpose.msra.mxu0 0.0
    %3277 = vmatprep.subr.mxu0 0.0
    %3278 = vmatpush1.xpose.msra.mxu0 0.0
    %3279 = vmatprep.subr.mxu0 0.0
    %3280 = vmatpush1.xpose.msra.mxu0 0.0
    %3281 = vmatprep.subr.mxu0 0.0
    %3282 = vmatpush1.xpose.msra.mxu0 0.0
    %3283 = vmatprep.subr.mxu0 0.0
    %3284 = vmatpush1.xpose.msra.mxu0 0.0
    %3285 = vmatprep.subr.mxu0 0.0
    %3286 = vmatpush1.xpose.msra.mxu0 0.0
    %3287 = vmatprep.mubr.f32.mxu0 0.0
    %3288 = vmatmul.mubr.f32.gmra.mrb[0].mxu0 %v3219
    %v3289 = vpop.f32.mrb[0].mxu0
    %v3290 = vadd.f32 0.0, %v3289
    %v3291 = vpop.f32.mrb[0].mxu0
    %3292 = vdwg.mxu0
    %3293 = vrot.lane.b32.xlu0 %v2359, 80
    %v3294 = vpop.permute.xlu0 %3293
    %3295 = vrot.lane.b32.xlu0 %v2361, 80
    %v3296 = vpop.permute.xlu0 %3295
    %v3297 = vsel %vm2438, %v3294, 0
    %v3299 = vsel %vm2438, %v3296, 0
    %3301 = vmatprep.subr.mxu0 0.0
    %3302 = vmatpush1.xpose.msra.mxu0 %v3299
    %3303 = vmatprep.subr.mxu0 0.0
    %3304 = vmatpush1.xpose.msra.mxu0 0.0
    %3305 = vmatprep.subr.mxu0 0.0
    %3306 = vmatpush1.xpose.msra.mxu0 0.0
    %3307 = vmatprep.subr.mxu0 0.0
    %3308 = vmatpush1.xpose.msra.mxu0 0.0
    %3309 = vmatprep.subr.mxu0 0.0
    %3310 = vmatpush1.xpose.msra.mxu0 0.0
    %3311 = vmatprep.subr.mxu0 0.0
    %3312 = vmatpush1.xpose.msra.mxu0 0.0
    %3313 = vmatprep.subr.mxu0 0.0
    %3314 = vmatpush1.xpose.msra.mxu0 0.0
    %3315 = vmatprep.subr.mxu0 0.0
    %3316 = vmatpush1.xpose.msra.mxu0 0.0
    %3317 = vmatprep.subr.mxu0 0.0
    %3318 = vmatpush1.xpose.msra.mxu0 0.0
    %3319 = vmatprep.subr.mxu0 0.0
    %3320 = vmatpush1.xpose.msra.mxu0 0.0
    %3321 = vmatprep.subr.mxu0 0.0
    %3322 = vmatpush1.xpose.msra.mxu0 0.0
    %3323 = vmatprep.subr.mxu0 0.0
    %3324 = vmatpush1.xpose.msra.mxu0 0.0
    %3325 = vmatprep.subr.mxu0 0.0
    %3326 = vmatpush1.xpose.msra.mxu0 0.0
    %3327 = vmatprep.subr.mxu0 0.0
    %3328 = vmatpush1.xpose.msra.mxu0 0.0
    %3329 = vmatprep.subr.mxu0 0.0
    %3330 = vmatpush1.xpose.msra.mxu0 0.0
    %3331 = vmatprep.subr.mxu0 0.0
    %3332 = vmatpush1.xpose.msra.mxu0 0.0
    %3333 = vmatprep.subr.mxu0 0.0
    %3334 = vmatpush1.xpose.msra.mxu0 0.0
    %3335 = vmatprep.subr.mxu0 0.0
    %3336 = vmatpush1.xpose.msra.mxu0 0.0
    %3337 = vmatprep.subr.mxu0 0.0
    %3338 = vmatpush1.xpose.msra.mxu0 0.0
    %3339 = vmatprep.subr.mxu0 0.0
    %3340 = vmatpush1.xpose.msra.mxu0 0.0
    %3341 = vmatprep.subr.mxu0 0.0
    %3342 = vmatpush1.xpose.msra.mxu0 0.0
    %3343 = vmatprep.subr.mxu0 0.0
    %3344 = vmatpush1.xpose.msra.mxu0 0.0
    %3345 = vmatprep.subr.mxu0 0.0
    %3346 = vmatpush1.xpose.msra.mxu0 0.0
    %3347 = vmatprep.subr.mxu0 0.0
    %3348 = vmatpush1.xpose.msra.mxu0 0.0
    %3349 = vmatprep.subr.mxu0 0.0
    %3350 = vmatpush1.xpose.msra.mxu0 0.0
    %3351 = vmatprep.subr.mxu0 0.0
    %3352 = vmatpush1.xpose.msra.mxu0 0.0
    %3353 = vmatprep.subr.mxu0 0.0
    %3354 = vmatpush1.xpose.msra.mxu0 0.0
    %3355 = vmatprep.subr.mxu0 0.0
    %3356 = vmatpush1.xpose.msra.mxu0 0.0
    %3357 = vmatprep.subr.mxu0 0.0
    %3358 = vmatpush1.xpose.msra.mxu0 0.0
    %3359 = vmatprep.subr.mxu0 0.0
    %3360 = vmatpush1.xpose.msra.mxu0 0.0
    %3361 = vmatprep.subr.mxu0 0.0
    %3362 = vmatpush1.xpose.msra.mxu0 0.0
    %3363 = vmatprep.subr.mxu0 0.0
    %3364 = vmatpush1.xpose.msra.mxu0 0.0
    %3365 = vmatprep.mubr.f32.mxu0 0.0
    %3366 = vmatmul.mubr.f32.gmra.mrb[0].mxu0 %v3297
    %v3367 = vpop.f32.mrb[0].mxu0
    %v3368 = vadd.f32 0.0, %v3367
    %v3369 = vpop.f32.mrb[0].mxu0
    %3370 = vdwg.mxu0
    %3371 = vrot.lane.b32.xlu0 %v2359, 64
    %v3372 = vpop.permute.xlu0 %3371
    %3373 = vrot.lane.b32.xlu0 %v2361, 64
    %v3374 = vpop.permute.xlu0 %3373
    %v3375 = vsel %vm2438, %v3372, 0
    %v3377 = vsel %vm2438, %v3374, 0
    %3379 = vmatprep.subr.mxu0 0.0
    %3380 = vmatpush1.xpose.msra.mxu0 %v3377
    %3381 = vmatprep.subr.mxu0 0.0
    %3382 = vmatpush1.xpose.msra.mxu0 0.0
    %3383 = vmatprep.subr.mxu0 0.0
    %3384 = vmatpush1.xpose.msra.mxu0 0.0
    %3385 = vmatprep.subr.mxu0 0.0
    %3386 = vmatpush1.xpose.msra.mxu0 0.0
    %3387 = vmatprep.subr.mxu0 0.0
    %3388 = vmatpush1.xpose.msra.mxu0 0.0
    %3389 = vmatprep.subr.mxu0 0.0
    %3390 = vmatpush1.xpose.msra.mxu0 0.0
    %3391 = vmatprep.subr.mxu0 0.0
    %3392 = vmatpush1.xpose.msra.mxu0 0.0
    %3393 = vmatprep.subr.mxu0 0.0
    %3394 = vmatpush1.xpose.msra.mxu0 0.0
    %3395 = vmatprep.subr.mxu0 0.0
    %3396 = vmatpush1.xpose.msra.mxu0 0.0
    %3397 = vmatprep.subr.mxu0 0.0
    %3398 = vmatpush1.xpose.msra.mxu0 0.0
    %3399 = vmatprep.subr.mxu0 0.0
    %3400 = vmatpush1.xpose.msra.mxu0 0.0
    %3401 = vmatprep.subr.mxu0 0.0
    %3402 = vmatpush1.xpose.msra.mxu0 0.0
    %3403 = vmatprep.subr.mxu0 0.0
    %3404 = vmatpush1.xpose.msra.mxu0 0.0
    %3405 = vmatprep.subr.mxu0 0.0
    %3406 = vmatpush1.xpose.msra.mxu0 0.0
    %3407 = vmatprep.subr.mxu0 0.0
    %3408 = vmatpush1.xpose.msra.mxu0 0.0
    %3409 = vmatprep.subr.mxu0 0.0
    %3410 = vmatpush1.xpose.msra.mxu0 0.0
    %3411 = vmatprep.subr.mxu0 0.0
    %3412 = vmatpush1.xpose.msra.mxu0 0.0
    %3413 = vmatprep.subr.mxu0 0.0
    %3414 = vmatpush1.xpose.msra.mxu0 0.0
    %3415 = vmatprep.subr.mxu0 0.0
    %3416 = vmatpush1.xpose.msra.mxu0 0.0
    %3417 = vmatprep.subr.mxu0 0.0
    %3418 = vmatpush1.xpose.msra.mxu0 0.0
    %3419 = vmatprep.subr.mxu0 0.0
    %3420 = vmatpush1.xpose.msra.mxu0 0.0
    %3421 = vmatprep.subr.mxu0 0.0
    %3422 = vmatpush1.xpose.msra.mxu0 0.0
    %3423 = vmatprep.subr.mxu0 0.0
    %3424 = vmatpush1.xpose.msra.mxu0 0.0
    %3425 = vmatprep.subr.mxu0 0.0
    %3426 = vmatpush1.xpose.msra.mxu0 0.0
    %3427 = vmatprep.subr.mxu0 0.0
    %3428 = vmatpush1.xpose.msra.mxu0 0.0
    %3429 = vmatprep.subr.mxu0 0.0
    %3430 = vmatpush1.xpose.msra.mxu0 0.0
    %3431 = vmatprep.subr.mxu0 0.0
    %3432 = vmatpush1.xpose.msra.mxu0 0.0
    %3433 = vmatprep.subr.mxu0 0.0
    %3434 = vmatpush1.xpose.msra.mxu0 0.0
    %3435 = vmatprep.subr.mxu0 0.0
    %3436 = vmatpush1.xpose.msra.mxu0 0.0
    %3437 = vmatprep.subr.mxu0 0.0
    %3438 = vmatpush1.xpose.msra.mxu0 0.0
    %3439 = vmatprep.subr.mxu0 0.0
    %3440 = vmatpush1.xpose.msra.mxu0 0.0
    %3441 = vmatprep.subr.mxu0 0.0
    %3442 = vmatpush1.xpose.msra.mxu0 0.0
    %3443 = vmatprep.mubr.f32.mxu0 0.0
    %3444 = vmatmul.mubr.f32.gmra.mrb[0].mxu0 %v3375
    %v3445 = vpop.f32.mrb[0].mxu0
    %v3446 = vadd.f32 0.0, %v3445
    %v3447 = vpop.f32.mrb[0].mxu0
    %3448 = vdwg.mxu0
    %3449 = vrot.lane.b32.xlu0 %v2359, 48
    %v3450 = vpop.permute.xlu0 %3449
    %3451 = vrot.lane.b32.xlu0 %v2361, 48
    %v3452 = vpop.permute.xlu0 %3451
    %v3453 = vsel %vm2438, %v3450, 0
    %v3455 = vsel %vm2438, %v3452, 0
    %3457 = vmatprep.subr.mxu0 0.0
    %3458 = vmatpush1.xpose.msra.mxu0 %v3455
    %3459 = vmatprep.subr.mxu0 0.0
    %3460 = vmatpush1.xpose.msra.mxu0 0.0
    %3461 = vmatprep.subr.mxu0 0.0
    %3462 = vmatpush1.xpose.msra.mxu0 0.0
    %3463 = vmatprep.subr.mxu0 0.0
    %3464 = vmatpush1.xpose.msra.mxu0 0.0
    %3465 = vmatprep.subr.mxu0 0.0
    %3466 = vmatpush1.xpose.msra.mxu0 0.0
    %3467 = vmatprep.subr.mxu0 0.0
    %3468 = vmatpush1.xpose.msra.mxu0 0.0
    %3469 = vmatprep.subr.mxu0 0.0
    %3470 = vmatpush1.xpose.msra.mxu0 0.0
    %3471 = vmatprep.subr.mxu0 0.0
    %3472 = vmatpush1.xpose.msra.mxu0 0.0
    %3473 = vmatprep.subr.mxu0 0.0
    %3474 = vmatpush1.xpose.msra.mxu0 0.0
    %3475 = vmatprep.subr.mxu0 0.0
    %3476 = vmatpush1.xpose.msra.mxu0 0.0
    %3477 = vmatprep.subr.mxu0 0.0
    %3478 = vmatpush1.xpose.msra.mxu0 0.0
    %3479 = vmatprep.subr.mxu0 0.0
    %3480 = vmatpush1.xpose.msra.mxu0 0.0
    %3481 = vmatprep.subr.mxu0 0.0
    %3482 = vmatpush1.xpose.msra.mxu0 0.0
    %3483 = vmatprep.subr.mxu0 0.0
    %3484 = vmatpush1.xpose.msra.mxu0 0.0
    %3485 = vmatprep.subr.mxu0 0.0
    %3486 = vmatpush1.xpose.msra.mxu0 0.0
    %3487 = vmatprep.subr.mxu0 0.0
    %3488 = vmatpush1.xpose.msra.mxu0 0.0
    %3489 = vmatprep.subr.mxu0 0.0
    %3490 = vmatpush1.xpose.msra.mxu0 0.0
    %3491 = vmatprep.subr.mxu0 0.0
    %3492 = vmatpush1.xpose.msra.mxu0 0.0
    %3493 = vmatprep.subr.mxu0 0.0
    %3494 = vmatpush1.xpose.msra.mxu0 0.0
    %3495 = vmatprep.subr.mxu0 0.0
    %3496 = vmatpush1.xpose.msra.mxu0 0.0
    %3497 = vmatprep.subr.mxu0 0.0
    %3498 = vmatpush1.xpose.msra.mxu0 0.0
    %3499 = vmatprep.subr.mxu0 0.0
    %3500 = vmatpush1.xpose.msra.mxu0 0.0
    %3501 = vmatprep.subr.mxu0 0.0
    %3502 = vmatpush1.xpose.msra.mxu0 0.0
    %3503 = vmatprep.subr.mxu0 0.0
    %3504 = vmatpush1.xpose.msra.mxu0 0.0
    %3505 = vmatprep.subr.mxu0 0.0
    %3506 = vmatpush1.xpose.msra.mxu0 0.0
    %3507 = vmatprep.subr.mxu0 0.0
    %3508 = vmatpush1.xpose.msra.mxu0 0.0
    %3509 = vmatprep.subr.mxu0 0.0
    %3510 = vmatpush1.xpose.msra.mxu0 0.0
    %3511 = vmatprep.subr.mxu0 0.0
    %3512 = vmatpush1.xpose.msra.mxu0 0.0
    %3513 = vmatprep.subr.mxu0 0.0
    %3514 = vmatpush1.xpose.msra.mxu0 0.0
    %3515 = vmatprep.subr.mxu0 0.0
    %3516 = vmatpush1.xpose.msra.mxu0 0.0
    %3517 = vmatprep.subr.mxu0 0.0
    %3518 = vmatpush1.xpose.msra.mxu0 0.0
    %3519 = vmatprep.subr.mxu0 0.0
    %3520 = vmatpush1.xpose.msra.mxu0 0.0
    %3521 = vmatprep.mubr.f32.mxu0 0.0
    %3522 = vmatmul.mubr.f32.gmra.mrb[0].mxu0 %v3453
    %v3523 = vpop.f32.mrb[0].mxu0
    %v3524 = vadd.f32 0.0, %v3523
    %v3525 = vpop.f32.mrb[0].mxu0
    %3526 = vdwg.mxu0
    %3527 = vrot.lane.b32.xlu0 %v2359, 32
    %v3528 = vpop.permute.xlu0 %3527
    %3529 = vrot.lane.b32.xlu0 %v2361, 32
    %v3530 = vpop.permute.xlu0 %3529
    %v3531 = vsel %vm2438, %v3528, 0
    %v3533 = vsel %vm2438, %v3530, 0
    %3535 = vmatprep.subr.mxu0 0.0
    %3536 = vmatpush1.xpose.msra.mxu0 %v3533
    %3537 = vmatprep.subr.mxu0 0.0
    %3538 = vmatpush1.xpose.msra.mxu0 0.0
    %3539 = vmatprep.subr.mxu0 0.0
    %3540 = vmatpush1.xpose.msra.mxu0 0.0
    %3541 = vmatprep.subr.mxu0 0.0
    %3542 = vmatpush1.xpose.msra.mxu0 0.0
    %3543 = vmatprep.subr.mxu0 0.0
    %3544 = vmatpush1.xpose.msra.mxu0 0.0
    %3545 = vmatprep.subr.mxu0 0.0
    %3546 = vmatpush1.xpose.msra.mxu0 0.0
    %3547 = vmatprep.subr.mxu0 0.0
    %3548 = vmatpush1.xpose.msra.mxu0 0.0
    %3549 = vmatprep.subr.mxu0 0.0
    %3550 = vmatpush1.xpose.msra.mxu0 0.0
    %3551 = vmatprep.subr.mxu0 0.0
    %3552 = vmatpush1.xpose.msra.mxu0 0.0
    %3553 = vmatprep.subr.mxu0 0.0
    %3554 = vmatpush1.xpose.msra.mxu0 0.0
    %3555 = vmatprep.subr.mxu0 0.0
    %3556 = vmatpush1.xpose.msra.mxu0 0.0
    %3557 = vmatprep.subr.mxu0 0.0
    %3558 = vmatpush1.xpose.msra.mxu0 0.0
    %3559 = vmatprep.subr.mxu0 0.0
    %3560 = vmatpush1.xpose.msra.mxu0 0.0
    %3561 = vmatprep.subr.mxu0 0.0
    %3562 = vmatpush1.xpose.msra.mxu0 0.0
    %3563 = vmatprep.subr.mxu0 0.0
    %3564 = vmatpush1.xpose.msra.mxu0 0.0
    %3565 = vmatprep.subr.mxu0 0.0
    %3566 = vmatpush1.xpose.msra.mxu0 0.0
    %3567 = vmatprep.subr.mxu0 0.0
    %3568 = vmatpush1.xpose.msra.mxu0 0.0
    %3569 = vmatprep.subr.mxu0 0.0
    %3570 = vmatpush1.xpose.msra.mxu0 0.0
    %3571 = vmatprep.subr.mxu0 0.0
    %3572 = vmatpush1.xpose.msra.mxu0 0.0
    %3573 = vmatprep.subr.mxu0 0.0
    %3574 = vmatpush1.xpose.msra.mxu0 0.0
    %3575 = vmatprep.subr.mxu0 0.0
    %3576 = vmatpush1.xpose.msra.mxu0 0.0
    %3577 = vmatprep.subr.mxu0 0.0
    %3578 = vmatpush1.xpose.msra.mxu0 0.0
    %3579 = vmatprep.subr.mxu0 0.0
    %3580 = vmatpush1.xpose.msra.mxu0 0.0
    %3581 = vmatprep.subr.mxu0 0.0
    %3582 = vmatpush1.xpose.msra.mxu0 0.0
    %3583 = vmatprep.subr.mxu0 0.0
    %3584 = vmatpush1.xpose.msra.mxu0 0.0
    %3585 = vmatprep.subr.mxu0 0.0
    %3586 = vmatpush1.xpose.msra.mxu0 0.0
    %3587 = vmatprep.subr.mxu0 0.0
    %3588 = vmatpush1.xpose.msra.mxu0 0.0
    %3589 = vmatprep.subr.mxu0 0.0
    %3590 = vmatpush1.xpose.msra.mxu0 0.0
    %3591 = vmatprep.subr.mxu0 0.0
    %3592 = vmatpush1.xpose.msra.mxu0 0.0
    %3593 = vmatprep.subr.mxu0 0.0
    %3594 = vmatpush1.xpose.msra.mxu0 0.0
    %3595 = vmatprep.subr.mxu0 0.0
    %3596 = vmatpush1.xpose.msra.mxu0 0.0
    %3597 = vmatprep.subr.mxu0 0.0
    %3598 = vmatpush1.xpose.msra.mxu0 0.0
    %3599 = vmatprep.mubr.f32.mxu0 0.0
    %3600 = vmatmul.mubr.f32.gmra.mrb[0].mxu0 %v3531
    %v3601 = vpop.f32.mrb[0].mxu0
    %v3602 = vadd.f32 0.0, %v3601
    %v3603 = vpop.f32.mrb[0].mxu0
    %3604 = vdwg.mxu0
    %3605 = vrot.lane.b32.xlu0 %v2359, 16
    %v3606 = vpop.permute.xlu0 %3605
    %3607 = vrot.lane.b32.xlu0 %v2361, 16
    %v3608 = vpop.permute.xlu0 %3607
    %v3609 = vsel %vm2438, %v3606, 0
    %v3611 = vsel %vm2438, %v3608, 0
    %3613 = vmatprep.subr.mxu0 0.0
    %3614 = vmatpush1.xpose.msra.mxu0 %v3611
    %3615 = vmatprep.subr.mxu0 0.0
    %3616 = vmatpush1.xpose.msra.mxu0 0.0
    %3617 = vmatprep.subr.mxu0 0.0
    %3618 = vmatpush1.xpose.msra.mxu0 0.0
    %3619 = vmatprep.subr.mxu0 0.0
    %3620 = vmatpush1.xpose.msra.mxu0 0.0
    %3621 = vmatprep.subr.mxu0 0.0
    %3622 = vmatpush1.xpose.msra.mxu0 0.0
    %3623 = vmatprep.subr.mxu0 0.0
    %3624 = vmatpush1.xpose.msra.mxu0 0.0
    %3625 = vmatprep.subr.mxu0 0.0
    %3626 = vmatpush1.xpose.msra.mxu0 0.0
    %3627 = vmatprep.subr.mxu0 0.0
    %3628 = vmatpush1.xpose.msra.mxu0 0.0
    %3629 = vmatprep.subr.mxu0 0.0
    %3630 = vmatpush1.xpose.msra.mxu0 0.0
    %3631 = vmatprep.subr.mxu0 0.0
    %3632 = vmatpush1.xpose.msra.mxu0 0.0
    %3633 = vmatprep.subr.mxu0 0.0
    %3634 = vmatpush1.xpose.msra.mxu0 0.0
    %3635 = vmatprep.subr.mxu0 0.0
    %3636 = vmatpush1.xpose.msra.mxu0 0.0
    %3637 = vmatprep.subr.mxu0 0.0
    %3638 = vmatpush1.xpose.msra.mxu0 0.0
    %3639 = vmatprep.subr.mxu0 0.0
    %3640 = vmatpush1.xpose.msra.mxu0 0.0
    %3641 = vmatprep.subr.mxu0 0.0
    %3642 = vmatpush1.xpose.msra.mxu0 0.0
    %3643 = vmatprep.subr.mxu0 0.0
    %3644 = vmatpush1.xpose.msra.mxu0 0.0
    %3645 = vmatprep.subr.mxu0 0.0
    %3646 = vmatpush1.xpose.msra.mxu0 0.0
    %3647 = vmatprep.subr.mxu0 0.0
    %3648 = vmatpush1.xpose.msra.mxu0 0.0
    %3649 = vmatprep.subr.mxu0 0.0
    %3650 = vmatpush1.xpose.msra.mxu0 0.0
    %3651 = vmatprep.subr.mxu0 0.0
    %3652 = vmatpush1.xpose.msra.mxu0 0.0
    %3653 = vmatprep.subr.mxu0 0.0
    %3654 = vmatpush1.xpose.msra.mxu0 0.0
    %3655 = vmatprep.subr.mxu0 0.0
    %3656 = vmatpush1.xpose.msra.mxu0 0.0
    %3657 = vmatprep.subr.mxu0 0.0
    %3658 = vmatpush1.xpose.msra.mxu0 0.0
    %3659 = vmatprep.subr.mxu0 0.0
    %3660 = vmatpush1.xpose.msra.mxu0 0.0
    %3661 = vmatprep.subr.mxu0 0.0
    %3662 = vmatpush1.xpose.msra.mxu0 0.0
    %3663 = vmatprep.subr.mxu0 0.0
    %3664 = vmatpush1.xpose.msra.mxu0 0.0
    %3665 = vmatprep.subr.mxu0 0.0
    %3666 = vmatpush1.xpose.msra.mxu0 0.0
    %3667 = vmatprep.subr.mxu0 0.0
    %3668 = vmatpush1.xpose.msra.mxu0 0.0
    %3669 = vmatprep.subr.mxu0 0.0
    %3670 = vmatpush1.xpose.msra.mxu0 0.0
    %3671 = vmatprep.subr.mxu0 0.0
    %3672 = vmatpush1.xpose.msra.mxu0 0.0
    %3673 = vmatprep.subr.mxu0 0.0
    %3674 = vmatpush1.xpose.msra.mxu0 0.0
    %3675 = vmatprep.subr.mxu0 0.0
    %3676 = vmatpush1.xpose.msra.mxu0 0.0
    %3677 = vmatprep.mubr.f32.mxu0 0.0
    %3678 = vmatmul.mubr.f32.gmra.mrb[0].mxu0 %v3609
    %v3679 = vpop.f32.mrb[0].mxu0
    %v3680 = vadd.f32 0.0, %v3679
    %v3681 = vpop.f32.mrb[0].mxu0
    %3682 = vdwg.mxu0
    %vm3683 = vcmask 64512
    %v3684 = vsel %vm3683, %v2512, -inf
    %3685 = vmax.xlane.f32.xlu0 %v3684
    %v3686 = vpop.xlane.xlu0 %3685
    %v3687 = vsel %vm3683, %v2590, -inf
    %3688 = vmax.xlane.f32.xlu0 %v3687
    %v3689 = vpop.xlane.xlu0 %3688
    %v3690 = vsel %vm3683, %v2668, -inf
    %3691 = vmax.xlane.f32.xlu0 %v3690
    %v3692 = vpop.xlane.xlu0 %3691
    %v3693 = vsel %vm3683, %v2746, -inf
    %3694 = vmax.xlane.f32.xlu0 %v3693
    %v3695 = vpop.xlane.xlu0 %3694
    %v3696 = vsel %vm3683, %v2824, -inf
    %3697 = vmax.xlane.f32.xlu0 %v3696
    %v3698 = vpop.xlane.xlu0 %3697
    %v3699 = vsel %vm3683, %v2902, -inf
    %3700 = vmax.xlane.f32.xlu0 %v3699
    %v3701 = vpop.xlane.xlu0 %3700
    %v3702 = vsel %vm3683, %v2980, -inf
    %3703 = vmax.xlane.f32.xlu0 %v3702
    %v3704 = vpop.xlane.xlu0 %3703
    %v3705 = vsel %vm3683, %v3058, -inf
    %3706 = vmax.xlane.f32.xlu0 %v3705
    %v3707 = vpop.xlane.xlu0 %3706
    %v3708 = vsel %vm3683, %v3134, -inf
    %3709 = vmax.xlane.f32.xlu0 %v3708
    %v3710 = vpop.xlane.xlu0 %3709
    %v3711 = vsel %vm3683, %v3212, -inf
    %3712 = vmax.xlane.f32.xlu0 %v3711
    %v3713 = vpop.xlane.xlu0 %3712
    %v3714 = vsel %vm3683, %v3290, -inf
    %3715 = vmax.xlane.f32.xlu0 %v3714
    %v3716 = vpop.xlane.xlu0 %3715
    %v3717 = vsel %vm3683, %v3368, -inf
    %3718 = vmax.xlane.f32.xlu0 %v3717
    %v3719 = vpop.xlane.xlu0 %3718
    %v3720 = vsel %vm3683, %v3446, -inf
    %3721 = vmax.xlane.f32.xlu0 %v3720
    %v3722 = vpop.xlane.xlu0 %3721
    %v3723 = vsel %vm3683, %v3524, -inf
    %3724 = vmax.xlane.f32.xlu0 %v3723
    %v3725 = vpop.xlane.xlu0 %3724
    %v3726 = vsel %vm3683, %v3602, -inf
    %3727 = vmax.xlane.f32.xlu0 %v3726
    %v3728 = vpop.xlane.xlu0 %3727
    %v3729 = vsel %vm3683, %v3680, -inf
    %3730 = vmax.xlane.f32.xlu0 %v3729
    %v3731 = vpop.xlane.xlu0 %3730
    %v3732 = vsub.f32 %v2512, %v3686
    %v3733 = vsub.f32 %v2590, %v3689
    %v3734 = vsub.f32 %v2668, %v3692
    %v3735 = vsub.f32 %v2746, %v3695
    %v3736 = vsub.f32 %v2824, %v3698
    %v3737 = vsub.f32 %v2902, %v3701
    %v3738 = vsub.f32 %v2980, %v3704
    %v3739 = vsub.f32 %v3058, %v3707
    %v3740 = vsub.f32 %v3134, %v3710
    %v3741 = vsub.f32 %v3212, %v3713
    %v3742 = vsub.f32 %v3290, %v3716
    %v3743 = vsub.f32 %v3368, %v3719
    %v3744 = vsub.f32 %v3446, %v3722
    %v3745 = vsub.f32 %v3524, %v3725
    %v3746 = vsub.f32 %v3602, %v3728
    %v3747 = vsub.f32 %v3680, %v3731
    %v3748 = vmul.f32 %v3732, 1.442695
    %v3749 = vpow.pop %v3748
    %v3750 = vmul.f32 %v3733, 1.442695
    %v3751 = vpow.pop %v3750
    %v3752 = vmul.f32 %v3734, 1.442695
    %v3753 = vpow.pop %v3752
    %v3754 = vmul.f32 %v3735, 1.442695
    %v3755 = vpow.pop %v3754
    %v3756 = vmul.f32 %v3736, 1.442695
    %v3757 = vpow.pop %v3756
    %v3758 = vmul.f32 %v3737, 1.442695
    %v3759 = vpow.pop %v3758
    %v3760 = vmul.f32 %v3738, 1.442695
    %v3761 = vpow.pop %v3760
    %v3762 = vmul.f32 %v3739, 1.442695
    %v3763 = vpow.pop %v3762
    %v3764 = vmul.f32 %v3740, 1.442695
    %v3765 = vpow.pop %v3764
    %v3766 = vmul.f32 %v3741, 1.442695
    %v3767 = vpow.pop %v3766
    %v3768 = vmul.f32 %v3742, 1.442695
    %v3769 = vpow.pop %v3768
    %v3770 = vmul.f32 %v3743, 1.442695
    %v3771 = vpow.pop %v3770
    %v3772 = vmul.f32 %v3744, 1.442695
    %v3773 = vpow.pop %v3772
    %v3774 = vmul.f32 %v3745, 1.442695
    %v3775 = vpow.pop %v3774
    %v3776 = vmul.f32 %v3746, 1.442695
    %v3777 = vpow.pop %v3776
    %v3778 = vmul.f32 %v3747, 1.442695
    %v3779 = vpow.pop %v3778
    %v3780 = vsel %vm3683, %v3749, 0.0
    %3781 = vadd.xlane.f32.xlu0 %v3780
    %v3782 = vpop.xlane.xlu0 %3781
    %v3783 = vsel %vm3683, %v3751, 0.0
    %3784 = vadd.xlane.f32.xlu0 %v3783
    %v3785 = vpop.xlane.xlu0 %3784
    %v3786 = vsel %vm3683, %v3753, 0.0
    %3787 = vadd.xlane.f32.xlu0 %v3786
    %v3788 = vpop.xlane.xlu0 %3787
    %v3789 = vsel %vm3683, %v3755, 0.0
    %3790 = vadd.xlane.f32.xlu0 %v3789
    %v3791 = vpop.xlane.xlu0 %3790
    %v3792 = vsel %vm3683, %v3757, 0.0
    %3793 = vadd.xlane.f32.xlu0 %v3792
    %v3794 = vpop.xlane.xlu0 %3793
    %v3795 = vsel %vm3683, %v3759, 0.0
    %3796 = vadd.xlane.f32.xlu0 %v3795
    %v3797 = vpop.xlane.xlu0 %3796
    %v3798 = vsel %vm3683, %v3761, 0.0
    %3799 = vadd.xlane.f32.xlu0 %v3798
    %v3800 = vpop.xlane.xlu0 %3799
    %v3801 = vsel %vm3683, %v3763, 0.0
    %3802 = vadd.xlane.f32.xlu0 %v3801
    %v3803 = vpop.xlane.xlu0 %3802
    %v3804 = vsel %vm3683, %v3765, 0.0
    %3805 = vadd.xlane.f32.xlu0 %v3804
    %v3806 = vpop.xlane.xlu0 %3805
    %v3807 = vsel %vm3683, %v3767, 0.0
    %3808 = vadd.xlane.f32.xlu0 %v3807
    %v3809 = vpop.xlane.xlu0 %3808
    %v3810 = vsel %vm3683, %v3769, 0.0
    %3811 = vadd.xlane.f32.xlu0 %v3810
    %v3812 = vpop.xlane.xlu0 %3811
    %v3813 = vsel %vm3683, %v3771, 0.0
    %3814 = vadd.xlane.f32.xlu0 %v3813
    %v3815 = vpop.xlane.xlu0 %3814
    %v3816 = vsel %vm3683, %v3773, 0.0
    %3817 = vadd.xlane.f32.xlu0 %v3816
    %v3818 = vpop.xlane.xlu0 %3817
    %v3819 = vsel %vm3683, %v3775, 0.0
    %3820 = vadd.xlane.f32.xlu0 %v3819
    %v3821 = vpop.xlane.xlu0 %3820
    %v3822 = vsel %vm3683, %v3777, 0.0
    %3823 = vadd.xlane.f32.xlu0 %v3822
    %v3824 = vpop.xlane.xlu0 %3823
    %v3825 = vsel %vm3683, %v3779, 0.0
    %3826 = vadd.xlane.f32.xlu0 %v3825
    %v3827 = vpop.xlane.xlu0 %3826
    %v3828 = vrcp.pop %v3782
    %v3829 = vrcp.pop %v3785
    %v3830 = vrcp.pop %v3788
    %v3831 = vrcp.pop %v3791
    %v3832 = vrcp.pop %v3794
    %v3833 = vrcp.pop %v3797
    %v3834 = vrcp.pop %v3800
    %v3835 = vrcp.pop %v3803
    %v3836 = vrcp.pop %v3806
    %v3837 = vrcp.pop %v3809
    %v3838 = vrcp.pop %v3812
    %v3839 = vrcp.pop %v3815
    %v3840 = vrcp.pop %v3818
    %v3841 = vrcp.pop %v3821
    %v3842 = vrcp.pop %v3824
    %v3843 = vrcp.pop %v3827
    %v3844 = vmul.f32 %v3749, %v3828
    %v3845 = vmul.f32 %v3751, %v3829
    %v3846 = vmul.f32 %v3753, %v3830
    %v3847 = vmul.f32 %v3755, %v3831
    %v3848 = vmul.f32 %v3757, %v3832
    %v3849 = vmul.f32 %v3759, %v3833
    %v3850 = vmul.f32 %v3761, %v3834
    %v3851 = vmul.f32 %v3763, %v3835
    %v3852 = vmul.f32 %v3765, %v3836
    %v3853 = vmul.f32 %v3767, %v3837
    %v3854 = vmul.f32 %v3769, %v3838
    %v3855 = vmul.f32 %v3771, %v3839
    %v3856 = vmul.f32 %v3773, %v3840
    %v3857 = vmul.f32 %v3775, %v3841
    %v3858 = vmul.f32 %v3777, %v3842
    %v3859 = vmul.f32 %v3779, %v3843
    %v3861 = vsel %vm3683, %v3844, 0
    %3863 = vmatprep.subr.mxu0 0.0
    %3864 = vmatpush1.msra.mxu0 %v2430
    %3865 = vmatprep.subr.mxu0 0.0
    %3866 = vmatpush1.msra.mxu0 0.0
    %3867 = vmatprep.subr.mxu0 0.0
    %3868 = vmatpush1.msra.mxu0 0.0
    %3869 = vmatprep.subr.mxu0 0.0
    %3870 = vmatpush1.msra.mxu0 0.0
    %3871 = vmatprep.subr.mxu0 0.0
    %3872 = vmatpush1.msra.mxu0 0.0
    %3873 = vmatprep.subr.mxu0 0.0
    %3874 = vmatpush1.msra.mxu0 0.0
    %3875 = vmatprep.subr.mxu0 0.0
    %3876 = vmatpush1.msra.mxu0 0.0
    %3877 = vmatprep.subr.mxu0 0.0
    %3878 = vmatpush1.msra.mxu0 0.0
    %3879 = vmatprep.subr.mxu0 0.0
    %3880 = vmatpush1.msra.mxu0 0.0
    %3881 = vmatprep.subr.mxu0 0.0
    %3882 = vmatpush1.msra.mxu0 0.0
    %3883 = vmatprep.subr.mxu0 0.0
    %3884 = vmatpush1.msra.mxu0 0.0
    %3885 = vmatprep.subr.mxu0 0.0
    %3886 = vmatpush1.msra.mxu0 0.0
    %3887 = vmatprep.subr.mxu0 0.0
    %3888 = vmatpush1.msra.mxu0 0.0
    %3889 = vmatprep.subr.mxu0 0.0
    %3890 = vmatpush1.msra.mxu0 0.0
    %3891 = vmatprep.subr.mxu0 0.0
    %3892 = vmatpush1.msra.mxu0 0.0
    %3893 = vmatprep.subr.mxu0 0.0
    %3894 = vmatpush1.msra.mxu0 0.0
    %3895 = vmatprep.subr.mxu0 0.0
    %3896 = vmatpush1.msra.mxu0 0.0
    %3897 = vmatprep.subr.mxu0 0.0
    %3898 = vmatpush1.msra.mxu0 0.0
    %3899 = vmatprep.subr.mxu0 0.0
    %3900 = vmatpush1.msra.mxu0 0.0
    %3901 = vmatprep.subr.mxu0 0.0
    %3902 = vmatpush1.msra.mxu0 0.0
    %3903 = vmatprep.subr.mxu0 0.0
    %3904 = vmatpush1.msra.mxu0 0.0
    %3905 = vmatprep.subr.mxu0 0.0
    %3906 = vmatpush1.msra.mxu0 0.0
    %3907 = vmatprep.subr.mxu0 0.0
    %3908 = vmatpush1.msra.mxu0 0.0
    %3909 = vmatprep.subr.mxu0 0.0
    %3910 = vmatpush1.msra.mxu0 0.0
    %3911 = vmatprep.subr.mxu0 0.0
    %3912 = vmatpush1.msra.mxu0 0.0
    %3913 = vmatprep.subr.mxu0 0.0
    %3914 = vmatpush1.msra.mxu0 0.0
    %3915 = vmatprep.subr.mxu0 0.0
    %3916 = vmatpush1.msra.mxu0 0.0
    %3917 = vmatprep.subr.mxu0 0.0
    %3918 = vmatpush1.msra.mxu0 0.0
    %3919 = vmatprep.subr.mxu0 0.0
    %3920 = vmatpush1.msra.mxu0 0.0
    %3921 = vmatprep.subr.mxu0 0.0
    %3922 = vmatpush1.msra.mxu0 0.0
    %3923 = vmatprep.subr.mxu0 0.0
    %3924 = vmatpush1.msra.mxu0 0.0
    %3925 = vmatprep.subr.mxu0 0.0
    %3926 = vmatpush1.msra.mxu0 0.0
    %3927 = vmatprep.mubr.f32.mxu0 0.0
    %3928 = vmatmul.mubr.f32.gmra.mrb[0].mxu0 %v3861
    %v3929 = vpop.f32.mrb[0].mxu0
    %v3930 = vadd.f32 0.0, %v3929
    %v3931 = vpop.f32.mrb[0].mxu0
    %3932 = vdwg.mxu0
    %3934 = vrot.lane.b32.xlu0 %v2430, 112
    %v3935 = vpop.permute.xlu0 %3934
    %v3938 = vsel %vm3683, %v3845, 0
    %3940 = vmatprep.subr.mxu0 0.0
    %3941 = vmatpush1.msra.mxu0 %v3935
    %3942 = vmatprep.subr.mxu0 0.0
    %3943 = vmatpush1.msra.mxu0 0.0
    %3944 = vmatprep.subr.mxu0 0.0
    %3945 = vmatpush1.msra.mxu0 0.0
    %3946 = vmatprep.subr.mxu0 0.0
    %3947 = vmatpush1.msra.mxu0 0.0
    %3948 = vmatprep.subr.mxu0 0.0
    %3949 = vmatpush1.msra.mxu0 0.0
    %3950 = vmatprep.subr.mxu0 0.0
    %3951 = vmatpush1.msra.mxu0 0.0
    %3952 = vmatprep.subr.mxu0 0.0
    %3953 = vmatpush1.msra.mxu0 0.0
    %3954 = vmatprep.subr.mxu0 0.0
    %3955 = vmatpush1.msra.mxu0 0.0
    %3956 = vmatprep.subr.mxu0 0.0
    %3957 = vmatpush1.msra.mxu0 0.0
    %3958 = vmatprep.subr.mxu0 0.0
    %3959 = vmatpush1.msra.mxu0 0.0
    %3960 = vmatprep.subr.mxu0 0.0
    %3961 = vmatpush1.msra.mxu0 0.0
    %3962 = vmatprep.subr.mxu0 0.0
    %3963 = vmatpush1.msra.mxu0 0.0
    %3964 = vmatprep.subr.mxu0 0.0
    %3965 = vmatpush1.msra.mxu0 0.0
    %3966 = vmatprep.subr.mxu0 0.0
    %3967 = vmatpush1.msra.mxu0 0.0
    %3968 = vmatprep.subr.mxu0 0.0
    %3969 = vmatpush1.msra.mxu0 0.0
    %3970 = vmatprep.subr.mxu0 0.0
    %3971 = vmatpush1.msra.mxu0 0.0
    %3972 = vmatprep.subr.mxu0 0.0
    %3973 = vmatpush1.msra.mxu0 0.0
    %3974 = vmatprep.subr.mxu0 0.0
    %3975 = vmatpush1.msra.mxu0 0.0
    %3976 = vmatprep.subr.mxu0 0.0
    %3977 = vmatpush1.msra.mxu0 0.0
    %3978 = vmatprep.subr.mxu0 0.0
    %3979 = vmatpush1.msra.mxu0 0.0
    %3980 = vmatprep.subr.mxu0 0.0
    %3981 = vmatpush1.msra.mxu0 0.0
    %3982 = vmatprep.subr.mxu0 0.0
    %3983 = vmatpush1.msra.mxu0 0.0
    %3984 = vmatprep.subr.mxu0 0.0
    %3985 = vmatpush1.msra.mxu0 0.0
    %3986 = vmatprep.subr.mxu0 0.0
    %3987 = vmatpush1.msra.mxu0 0.0
    %3988 = vmatprep.subr.mxu0 0.0
    %3989 = vmatpush1.msra.mxu0 0.0
    %3990 = vmatprep.subr.mxu0 0.0
    %3991 = vmatpush1.msra.mxu0 0.0
    %3992 = vmatprep.subr.mxu0 0.0
    %3993 = vmatpush1.msra.mxu0 0.0
    %3994 = vmatprep.subr.mxu0 0.0
    %3995 = vmatpush1.msra.mxu0 0.0
    %3996 = vmatprep.subr.mxu0 0.0
    %3997 = vmatpush1.msra.mxu0 0.0
    %3998 = vmatprep.subr.mxu0 0.0
    %3999 = vmatpush1.msra.mxu0 0.0
    %4000 = vmatprep.subr.mxu0 0.0
    %4001 = vmatpush1.msra.mxu0 0.0
    %4002 = vmatprep.subr.mxu0 0.0
    %4003 = vmatpush1.msra.mxu0 0.0
    %4004 = vmatprep.mubr.f32.mxu0 0.0
    %4005 = vmatmul.mubr.f32.gmra.mrb[0].mxu0 %v3938
    %v4006 = vpop.f32.mrb[0].mxu0
    %v4007 = vadd.f32 0.0, %v4006
    %v4008 = vpop.f32.mrb[0].mxu0
    %4009 = vdwg.mxu0
    %4010 = vrot.lane.b32.xlu0 %v2430, 96
    %v4011 = vpop.permute.xlu0 %4010
    %v4014 = vsel %vm3683, %v3846, 0
    %4016 = vmatprep.subr.mxu0 0.0
    %4017 = vmatpush1.msra.mxu0 %v4011
    %4018 = vmatprep.subr.mxu0 0.0
    %4019 = vmatpush1.msra.mxu0 0.0
    %4020 = vmatprep.subr.mxu0 0.0
    %4021 = vmatpush1.msra.mxu0 0.0
    %4022 = vmatprep.subr.mxu0 0.0
    %4023 = vmatpush1.msra.mxu0 0.0
    %4024 = vmatprep.subr.mxu0 0.0
    %4025 = vmatpush1.msra.mxu0 0.0
    %4026 = vmatprep.subr.mxu0 0.0
    %4027 = vmatpush1.msra.mxu0 0.0
    %4028 = vmatprep.subr.mxu0 0.0
    %4029 = vmatpush1.msra.mxu0 0.0
    %4030 = vmatprep.subr.mxu0 0.0
    %4031 = vmatpush1.msra.mxu0 0.0
    %4032 = vmatprep.subr.mxu0 0.0
    %4033 = vmatpush1.msra.mxu0 0.0
    %4034 = vmatprep.subr.mxu0 0.0
    %4035 = vmatpush1.msra.mxu0 0.0
    %4036 = vmatprep.subr.mxu0 0.0
    %4037 = vmatpush1.msra.mxu0 0.0
    %4038 = vmatprep.subr.mxu0 0.0
    %4039 = vmatpush1.msra.mxu0 0.0
    %4040 = vmatprep.subr.mxu0 0.0
    %4041 = vmatpush1.msra.mxu0 0.0
    %4042 = vmatprep.subr.mxu0 0.0
    %4043 = vmatpush1.msra.mxu0 0.0
    %4044 = vmatprep.subr.mxu0 0.0
    %4045 = vmatpush1.msra.mxu0 0.0
    %4046 = vmatprep.subr.mxu0 0.0
    %4047 = vmatpush1.msra.mxu0 0.0
    %4048 = vmatprep.subr.mxu0 0.0
    %4049 = vmatpush1.msra.mxu0 0.0
    %4050 = vmatprep.subr.mxu0 0.0
    %4051 = vmatpush1.msra.mxu0 0.0
    %4052 = vmatprep.subr.mxu0 0.0
    %4053 = vmatpush1.msra.mxu0 0.0
    %4054 = vmatprep.subr.mxu0 0.0
    %4055 = vmatpush1.msra.mxu0 0.0
    %4056 = vmatprep.subr.mxu0 0.0
    %4057 = vmatpush1.msra.mxu0 0.0
    %4058 = vmatprep.subr.mxu0 0.0
    %4059 = vmatpush1.msra.mxu0 0.0
    %4060 = vmatprep.subr.mxu0 0.0
    %4061 = vmatpush1.msra.mxu0 0.0
    %4062 = vmatprep.subr.mxu0 0.0
    %4063 = vmatpush1.msra.mxu0 0.0
    %4064 = vmatprep.subr.mxu0 0.0
    %4065 = vmatpush1.msra.mxu0 0.0
    %4066 = vmatprep.subr.mxu0 0.0
    %4067 = vmatpush1.msra.mxu0 0.0
    %4068 = vmatprep.subr.mxu0 0.0
    %4069 = vmatpush1.msra.mxu0 0.0
    %4070 = vmatprep.subr.mxu0 0.0
    %4071 = vmatpush1.msra.mxu0 0.0
    %4072 = vmatprep.subr.mxu0 0.0
    %4073 = vmatpush1.msra.mxu0 0.0
    %4074 = vmatprep.subr.mxu0 0.0
    %4075 = vmatpush1.msra.mxu0 0.0
    %4076 = vmatprep.subr.mxu0 0.0
    %4077 = vmatpush1.msra.mxu0 0.0
    %4078 = vmatprep.subr.mxu0 0.0
    %4079 = vmatpush1.msra.mxu0 0.0
    %4080 = vmatprep.mubr.f32.mxu0 0.0
    %4081 = vmatmul.mubr.f32.gmra.mrb[0].mxu0 %v4014
    %v4082 = vpop.f32.mrb[0].mxu0
    %v4083 = vadd.f32 0.0, %v4082
    %v4084 = vpop.f32.mrb[0].mxu0
    %4085 = vdwg.mxu0
    %4086 = vrot.lane.b32.xlu0 %v2430, 80
    %v4087 = vpop.permute.xlu0 %4086
    %v4090 = vsel %vm3683, %v3847, 0
    %4092 = vmatprep.subr.mxu0 0.0
    %4093 = vmatpush1.msra.mxu0 %v4087
    %4094 = vmatprep.subr.mxu0 0.0
    %4095 = vmatpush1.msra.mxu0 0.0
    %4096 = vmatprep.subr.mxu0 0.0
    %4097 = vmatpush1.msra.mxu0 0.0
    %4098 = vmatprep.subr.mxu0 0.0
    %4099 = vmatpush1.msra.mxu0 0.0
    %4100 = vmatprep.subr.mxu0 0.0
    %4101 = vmatpush1.msra.mxu0 0.0
    %4102 = vmatprep.subr.mxu0 0.0
    %4103 = vmatpush1.msra.mxu0 0.0
    %4104 = vmatprep.subr.mxu0 0.0
    %4105 = vmatpush1.msra.mxu0 0.0
    %4106 = vmatprep.subr.mxu0 0.0
    %4107 = vmatpush1.msra.mxu0 0.0
    %4108 = vmatprep.subr.mxu0 0.0
    %4109 = vmatpush1.msra.mxu0 0.0
    %4110 = vmatprep.subr.mxu0 0.0
    %4111 = vmatpush1.msra.mxu0 0.0
    %4112 = vmatprep.subr.mxu0 0.0
    %4113 = vmatpush1.msra.mxu0 0.0
    %4114 = vmatprep.subr.mxu0 0.0
    %4115 = vmatpush1.msra.mxu0 0.0
    %4116 = vmatprep.subr.mxu0 0.0
    %4117 = vmatpush1.msra.mxu0 0.0
    %4118 = vmatprep.subr.mxu0 0.0
    %4119 = vmatpush1.msra.mxu0 0.0
    %4120 = vmatprep.subr.mxu0 0.0
    %4121 = vmatpush1.msra.mxu0 0.0
    %4122 = vmatprep.subr.mxu0 0.0
    %4123 = vmatpush1.msra.mxu0 0.0
    %4124 = vmatprep.subr.mxu0 0.0
    %4125 = vmatpush1.msra.mxu0 0.0
    %4126 = vmatprep.subr.mxu0 0.0
    %4127 = vmatpush1.msra.mxu0 0.0
    %4128 = vmatprep.subr.mxu0 0.0
    %4129 = vmatpush1.msra.mxu0 0.0
    %4130 = vmatprep.subr.mxu0 0.0
    %4131 = vmatpush1.msra.mxu0 0.0
    %4132 = vmatprep.subr.mxu0 0.0
    %4133 = vmatpush1.msra.mxu0 0.0
    %4134 = vmatprep.subr.mxu0 0.0
    %4135 = vmatpush1.msra.mxu0 0.0
    %4136 = vmatprep.subr.mxu0 0.0
    %4137 = vmatpush1.msra.mxu0 0.0
    %4138 = vmatprep.subr.mxu0 0.0
    %4139 = vmatpush1.msra.mxu0 0.0
    %4140 = vmatprep.subr.mxu0 0.0
    %4141 = vmatpush1.msra.mxu0 0.0
    %4142 = vmatprep.subr.mxu0 0.0
    %4143 = vmatpush1.msra.mxu0 0.0
    %4144 = vmatprep.subr.mxu0 0.0
    %4145 = vmatpush1.msra.mxu0 0.0
    %4146 = vmatprep.subr.mxu0 0.0
    %4147 = vmatpush1.msra.mxu0 0.0
    %4148 = vmatprep.subr.mxu0 0.0
    %4149 = vmatpush1.msra.mxu0 0.0
    %4150 = vmatprep.subr.mxu0 0.0
    %4151 = vmatpush1.msra.mxu0 0.0
    %4152 = vmatprep.subr.mxu0 0.0
    %4153 = vmatpush1.msra.mxu0 0.0
    %4154 = vmatprep.subr.mxu0 0.0
    %4155 = vmatpush1.msra.mxu0 0.0
    %4156 = vmatprep.mubr.f32.mxu0 0.0
    %4157 = vmatmul.mubr.f32.gmra.mrb[0].mxu0 %v4090
    %v4158 = vpop.f32.mrb[0].mxu0
    %v4159 = vadd.f32 0.0, %v4158
    %v4160 = vpop.f32.mrb[0].mxu0
    %4161 = vdwg.mxu0
    %4162 = vrot.lane.b32.xlu0 %v2430, 64
    %v4163 = vpop.permute.xlu0 %4162
    %v4166 = vsel %vm3683, %v3848, 0
    %4168 = vmatprep.subr.mxu0 0.0
    %4169 = vmatpush1.msra.mxu0 %v4163
    %4170 = vmatprep.subr.mxu0 0.0
    %4171 = vmatpush1.msra.mxu0 0.0
    %4172 = vmatprep.subr.mxu0 0.0
    %4173 = vmatpush1.msra.mxu0 0.0
    %4174 = vmatprep.subr.mxu0 0.0
    %4175 = vmatpush1.msra.mxu0 0.0
    %4176 = vmatprep.subr.mxu0 0.0
    %4177 = vmatpush1.msra.mxu0 0.0
    %4178 = vmatprep.subr.mxu0 0.0
    %4179 = vmatpush1.msra.mxu0 0.0
    %4180 = vmatprep.subr.mxu0 0.0
    %4181 = vmatpush1.msra.mxu0 0.0
    %4182 = vmatprep.subr.mxu0 0.0
    %4183 = vmatpush1.msra.mxu0 0.0
    %4184 = vmatprep.subr.mxu0 0.0
    %4185 = vmatpush1.msra.mxu0 0.0
    %4186 = vmatprep.subr.mxu0 0.0
    %4187 = vmatpush1.msra.mxu0 0.0
    %4188 = vmatprep.subr.mxu0 0.0
    %4189 = vmatpush1.msra.mxu0 0.0
    %4190 = vmatprep.subr.mxu0 0.0
    %4191 = vmatpush1.msra.mxu0 0.0
    %4192 = vmatprep.subr.mxu0 0.0
    %4193 = vmatpush1.msra.mxu0 0.0
    %4194 = vmatprep.subr.mxu0 0.0
    %4195 = vmatpush1.msra.mxu0 0.0
    %4196 = vmatprep.subr.mxu0 0.0
    %4197 = vmatpush1.msra.mxu0 0.0
    %4198 = vmatprep.subr.mxu0 0.0
    %4199 = vmatpush1.msra.mxu0 0.0
    %4200 = vmatprep.subr.mxu0 0.0
    %4201 = vmatpush1.msra.mxu0 0.0
    %4202 = vmatprep.subr.mxu0 0.0
    %4203 = vmatpush1.msra.mxu0 0.0
    %4204 = vmatprep.subr.mxu0 0.0
    %4205 = vmatpush1.msra.mxu0 0.0
    %4206 = vmatprep.subr.mxu0 0.0
    %4207 = vmatpush1.msra.mxu0 0.0
    %4208 = vmatprep.subr.mxu0 0.0
    %4209 = vmatpush1.msra.mxu0 0.0
    %4210 = vmatprep.subr.mxu0 0.0
    %4211 = vmatpush1.msra.mxu0 0.0
    %4212 = vmatprep.subr.mxu0 0.0
    %4213 = vmatpush1.msra.mxu0 0.0
    %4214 = vmatprep.subr.mxu0 0.0
    %4215 = vmatpush1.msra.mxu0 0.0
    %4216 = vmatprep.subr.mxu0 0.0
    %4217 = vmatpush1.msra.mxu0 0.0
    %4218 = vmatprep.subr.mxu0 0.0
    %4219 = vmatpush1.msra.mxu0 0.0
    %4220 = vmatprep.subr.mxu0 0.0
    %4221 = vmatpush1.msra.mxu0 0.0
    %4222 = vmatprep.subr.mxu0 0.0
    %4223 = vmatpush1.msra.mxu0 0.0
    %4224 = vmatprep.subr.mxu0 0.0
    %4225 = vmatpush1.msra.mxu0 0.0
    %4226 = vmatprep.subr.mxu0 0.0
    %4227 = vmatpush1.msra.mxu0 0.0
    %4228 = vmatprep.subr.mxu0 0.0
    %4229 = vmatpush1.msra.mxu0 0.0
    %4230 = vmatprep.subr.mxu0 0.0
    %4231 = vmatpush1.msra.mxu0 0.0
    %4232 = vmatprep.mubr.f32.mxu0 0.0
    %4233 = vmatmul.mubr.f32.gmra.mrb[0].mxu0 %v4166
    %v4234 = vpop.f32.mrb[0].mxu0
    %v4235 = vadd.f32 0.0, %v4234
    %v4236 = vpop.f32.mrb[0].mxu0
    %4237 = vdwg.mxu0
    %4238 = vrot.lane.b32.xlu0 %v2430, 48
    %v4239 = vpop.permute.xlu0 %4238
    %v4242 = vsel %vm3683, %v3849, 0
    %4244 = vmatprep.subr.mxu0 0.0
    %4245 = vmatpush1.msra.mxu0 %v4239
    %4246 = vmatprep.subr.mxu0 0.0
    %4247 = vmatpush1.msra.mxu0 0.0
    %4248 = vmatprep.subr.mxu0 0.0
    %4249 = vmatpush1.msra.mxu0 0.0
    %4250 = vmatprep.subr.mxu0 0.0
    %4251 = vmatpush1.msra.mxu0 0.0
    %4252 = vmatprep.subr.mxu0 0.0
    %4253 = vmatpush1.msra.mxu0 0.0
    %4254 = vmatprep.subr.mxu0 0.0
    %4255 = vmatpush1.msra.mxu0 0.0
    %4256 = vmatprep.subr.mxu0 0.0
    %4257 = vmatpush1.msra.mxu0 0.0
    %4258 = vmatprep.subr.mxu0 0.0
    %4259 = vmatpush1.msra.mxu0 0.0
    %4260 = vmatprep.subr.mxu0 0.0
    %4261 = vmatpush1.msra.mxu0 0.0
    %4262 = vmatprep.subr.mxu0 0.0
    %4263 = vmatpush1.msra.mxu0 0.0
    %4264 = vmatprep.subr.mxu0 0.0
    %4265 = vmatpush1.msra.mxu0 0.0
    %4266 = vmatprep.subr.mxu0 0.0
    %4267 = vmatpush1.msra.mxu0 0.0
    %4268 = vmatprep.subr.mxu0 0.0
    %4269 = vmatpush1.msra.mxu0 0.0
    %4270 = vmatprep.subr.mxu0 0.0
    %4271 = vmatpush1.msra.mxu0 0.0
    %4272 = vmatprep.subr.mxu0 0.0
    %4273 = vmatpush1.msra.mxu0 0.0
    %4274 = vmatprep.subr.mxu0 0.0
    %4275 = vmatpush1.msra.mxu0 0.0
    %4276 = vmatprep.subr.mxu0 0.0
    %4277 = vmatpush1.msra.mxu0 0.0
    %4278 = vmatprep.subr.mxu0 0.0
    %4279 = vmatpush1.msra.mxu0 0.0
    %4280 = vmatprep.subr.mxu0 0.0
    %4281 = vmatpush1.msra.mxu0 0.0
    %4282 = vmatprep.subr.mxu0 0.0
    %4283 = vmatpush1.msra.mxu0 0.0
    %4284 = vmatprep.subr.mxu0 0.0
    %4285 = vmatpush1.msra.mxu0 0.0
    %4286 = vmatprep.subr.mxu0 0.0
    %4287 = vmatpush1.msra.mxu0 0.0
    %4288 = vmatprep.subr.mxu0 0.0
    %4289 = vmatpush1.msra.mxu0 0.0
    %4290 = vmatprep.subr.mxu0 0.0
    %4291 = vmatpush1.msra.mxu0 0.0
    %4292 = vmatprep.subr.mxu0 0.0
    %4293 = vmatpush1.msra.mxu0 0.0
    %4294 = vmatprep.subr.mxu0 0.0
    %4295 = vmatpush1.msra.mxu0 0.0
    %4296 = vmatprep.subr.mxu0 0.0
    %4297 = vmatpush1.msra.mxu0 0.0
    %4298 = vmatprep.subr.mxu0 0.0
    %4299 = vmatpush1.msra.mxu0 0.0
    %4300 = vmatprep.subr.mxu0 0.0
    %4301 = vmatpush1.msra.mxu0 0.0
    %4302 = vmatprep.subr.mxu0 0.0
    %4303 = vmatpush1.msra.mxu0 0.0
    %4304 = vmatprep.subr.mxu0 0.0
    %4305 = vmatpush1.msra.mxu0 0.0
    %4306 = vmatprep.subr.mxu0 0.0
    %4307 = vmatpush1.msra.mxu0 0.0
    %4308 = vmatprep.mubr.f32.mxu0 0.0
    %4309 = vmatmul.mubr.f32.gmra.mrb[0].mxu0 %v4242
    %v4310 = vpop.f32.mrb[0].mxu0
    %v4311 = vadd.f32 0.0, %v4310
    %v4312 = vpop.f32.mrb[0].mxu0
    %4313 = vdwg.mxu0
    %4314 = vrot.lane.b32.xlu0 %v2430, 32
    %v4315 = vpop.permute.xlu0 %4314
    %v4318 = vsel %vm3683, %v3850, 0
    %4320 = vmatprep.subr.mxu0 0.0
    %4321 = vmatpush1.msra.mxu0 %v4315
    %4322 = vmatprep.subr.mxu0 0.0
    %4323 = vmatpush1.msra.mxu0 0.0
    %4324 = vmatprep.subr.mxu0 0.0
    %4325 = vmatpush1.msra.mxu0 0.0
    %4326 = vmatprep.subr.mxu0 0.0
    %4327 = vmatpush1.msra.mxu0 0.0
    %4328 = vmatprep.subr.mxu0 0.0
    %4329 = vmatpush1.msra.mxu0 0.0
    %4330 = vmatprep.subr.mxu0 0.0
    %4331 = vmatpush1.msra.mxu0 0.0
    %4332 = vmatprep.subr.mxu0 0.0
    %4333 = vmatpush1.msra.mxu0 0.0
    %4334 = vmatprep.subr.mxu0 0.0
    %4335 = vmatpush1.msra.mxu0 0.0
    %4336 = vmatprep.subr.mxu0 0.0
    %4337 = vmatpush1.msra.mxu0 0.0
    %4338 = vmatprep.subr.mxu0 0.0
    %4339 = vmatpush1.msra.mxu0 0.0
    %4340 = vmatprep.subr.mxu0 0.0
    %4341 = vmatpush1.msra.mxu0 0.0
    %4342 = vmatprep.subr.mxu0 0.0
    %4343 = vmatpush1.msra.mxu0 0.0
    %4344 = vmatprep.subr.mxu0 0.0
    %4345 = vmatpush1.msra.mxu0 0.0
    %4346 = vmatprep.subr.mxu0 0.0
    %4347 = vmatpush1.msra.mxu0 0.0
    %4348 = vmatprep.subr.mxu0 0.0
    %4349 = vmatpush1.msra.mxu0 0.0
    %4350 = vmatprep.subr.mxu0 0.0
    %4351 = vmatpush1.msra.mxu0 0.0
    %4352 = vmatprep.subr.mxu0 0.0
    %4353 = vmatpush1.msra.mxu0 0.0
    %4354 = vmatprep.subr.mxu0 0.0
    %4355 = vmatpush1.msra.mxu0 0.0
    %4356 = vmatprep.subr.mxu0 0.0
    %4357 = vmatpush1.msra.mxu0 0.0
    %4358 = vmatprep.subr.mxu0 0.0
    %4359 = vmatpush1.msra.mxu0 0.0
    %4360 = vmatprep.subr.mxu0 0.0
    %4361 = vmatpush1.msra.mxu0 0.0
    %4362 = vmatprep.subr.mxu0 0.0
    %4363 = vmatpush1.msra.mxu0 0.0
    %4364 = vmatprep.subr.mxu0 0.0
    %4365 = vmatpush1.msra.mxu0 0.0
    %4366 = vmatprep.subr.mxu0 0.0
    %4367 = vmatpush1.msra.mxu0 0.0
    %4368 = vmatprep.subr.mxu0 0.0
    %4369 = vmatpush1.msra.mxu0 0.0
    %4370 = vmatprep.subr.mxu0 0.0
    %4371 = vmatpush1.msra.mxu0 0.0
    %4372 = vmatprep.subr.mxu0 0.0
    %4373 = vmatpush1.msra.mxu0 0.0
    %4374 = vmatprep.subr.mxu0 0.0
    %4375 = vmatpush1.msra.mxu0 0.0
    %4376 = vmatprep.subr.mxu0 0.0
    %4377 = vmatpush1.msra.mxu0 0.0
    %4378 = vmatprep.subr.mxu0 0.0
    %4379 = vmatpush1.msra.mxu0 0.0
    %4380 = vmatprep.subr.mxu0 0.0
    %4381 = vmatpush1.msra.mxu0 0.0
    %4382 = vmatprep.subr.mxu0 0.0
    %4383 = vmatpush1.msra.mxu0 0.0
    %4384 = vmatprep.mubr.f32.mxu0 0.0
    %4385 = vmatmul.mubr.f32.gmra.mrb[0].mxu0 %v4318
    %v4386 = vpop.f32.mrb[0].mxu0
    %v4387 = vadd.f32 0.0, %v4386
    %v4388 = vpop.f32.mrb[0].mxu0
    %4389 = vdwg.mxu0
    %4390 = vrot.lane.b32.xlu0 %v2430, 16
    %v4391 = vpop.permute.xlu0 %4390
    %v4394 = vsel %vm3683, %v3851, 0
    %4396 = vmatprep.subr.mxu0 0.0
    %4397 = vmatpush1.msra.mxu0 %v4391
    %4398 = vmatprep.subr.mxu0 0.0
    %4399 = vmatpush1.msra.mxu0 0.0
    %4400 = vmatprep.subr.mxu0 0.0
    %4401 = vmatpush1.msra.mxu0 0.0
    %4402 = vmatprep.subr.mxu0 0.0
    %4403 = vmatpush1.msra.mxu0 0.0
    %4404 = vmatprep.subr.mxu0 0.0
    %4405 = vmatpush1.msra.mxu0 0.0
    %4406 = vmatprep.subr.mxu0 0.0
    %4407 = vmatpush1.msra.mxu0 0.0
    %4408 = vmatprep.subr.mxu0 0.0
    %4409 = vmatpush1.msra.mxu0 0.0
    %4410 = vmatprep.subr.mxu0 0.0
    %4411 = vmatpush1.msra.mxu0 0.0
    %4412 = vmatprep.subr.mxu0 0.0
    %4413 = vmatpush1.msra.mxu0 0.0
    %4414 = vmatprep.subr.mxu0 0.0
    %4415 = vmatpush1.msra.mxu0 0.0
    %4416 = vmatprep.subr.mxu0 0.0
    %4417 = vmatpush1.msra.mxu0 0.0
    %4418 = vmatprep.subr.mxu0 0.0
    %4419 = vmatpush1.msra.mxu0 0.0
    %4420 = vmatprep.subr.mxu0 0.0
    %4421 = vmatpush1.msra.mxu0 0.0
    %4422 = vmatprep.subr.mxu0 0.0
    %4423 = vmatpush1.msra.mxu0 0.0
    %4424 = vmatprep.subr.mxu0 0.0
    %4425 = vmatpush1.msra.mxu0 0.0
    %4426 = vmatprep.subr.mxu0 0.0
    %4427 = vmatpush1.msra.mxu0 0.0
    %4428 = vmatprep.subr.mxu0 0.0
    %4429 = vmatpush1.msra.mxu0 0.0
    %4430 = vmatprep.subr.mxu0 0.0
    %4431 = vmatpush1.msra.mxu0 0.0
    %4432 = vmatprep.subr.mxu0 0.0
    %4433 = vmatpush1.msra.mxu0 0.0
    %4434 = vmatprep.subr.mxu0 0.0
    %4435 = vmatpush1.msra.mxu0 0.0
    %4436 = vmatprep.subr.mxu0 0.0
    %4437 = vmatpush1.msra.mxu0 0.0
    %4438 = vmatprep.subr.mxu0 0.0
    %4439 = vmatpush1.msra.mxu0 0.0
    %4440 = vmatprep.subr.mxu0 0.0
    %4441 = vmatpush1.msra.mxu0 0.0
    %4442 = vmatprep.subr.mxu0 0.0
    %4443 = vmatpush1.msra.mxu0 0.0
    %4444 = vmatprep.subr.mxu0 0.0
    %4445 = vmatpush1.msra.mxu0 0.0
    %4446 = vmatprep.subr.mxu0 0.0
    %4447 = vmatpush1.msra.mxu0 0.0
    %4448 = vmatprep.subr.mxu0 0.0
    %4449 = vmatpush1.msra.mxu0 0.0
    %4450 = vmatprep.subr.mxu0 0.0
    %4451 = vmatpush1.msra.mxu0 0.0
    %4452 = vmatprep.subr.mxu0 0.0
    %4453 = vmatpush1.msra.mxu0 0.0
    %4454 = vmatprep.subr.mxu0 0.0
    %4455 = vmatpush1.msra.mxu0 0.0
    %4456 = vmatprep.subr.mxu0 0.0
    %4457 = vmatpush1.msra.mxu0 0.0
    %4458 = vmatprep.subr.mxu0 0.0
    %4459 = vmatpush1.msra.mxu0 0.0
    %4460 = vmatprep.mubr.f32.mxu0 0.0
    %4461 = vmatmul.mubr.f32.gmra.mrb[0].mxu0 %v4394
    %v4462 = vpop.f32.mrb[0].mxu0
    %v4463 = vadd.f32 0.0, %v4462
    %v4464 = vpop.f32.mrb[0].mxu0
    %4465 = vdwg.mxu0
    %4467 = vrot.lane.b32.xlu0 %v4007, 16
    %v4468 = vpop.permute.xlu0 %4467
    %4471 = vrot.lane.b32.xlu0 %v4083, 32
    %v4472 = vpop.permute.xlu0 %4471
    %4475 = vrot.lane.b32.xlu0 %v4159, 48
    %v4476 = vpop.permute.xlu0 %4475
    %4479 = vrot.lane.b32.xlu0 %v4235, 64
    %v4480 = vpop.permute.xlu0 %4479
    %4483 = vrot.lane.b32.xlu0 %v4311, 80
    %v4484 = vpop.permute.xlu0 %4483
    %4487 = vrot.lane.b32.xlu0 %v4387, 96
    %v4488 = vpop.permute.xlu0 %4487
    %4491 = vrot.lane.b32.xlu0 %v4463, 112
    %v4492 = vpop.permute.xlu0 %4491
    %v4494 = vsel %vm2438, %v3930, %v4468
    %vm4495 = vcmask 261120
    %v4496 = vsel %vm4495, %v4494, %v4472
    %vm4497 = vcmask 392192
    %v4498 = vsel %vm4497, %v4496, %v4476
    %vm4499 = vcmask 523264
    %v4500 = vsel %vm4499, %v4498, %v4480
    %vm4501 = vcmask 654336
    %v4502 = vsel %vm4501, %v4500, %v4484
    %vm4503 = vcmask 785408
    %v4504 = vsel %vm4503, %v4502, %v4488
    %vm4505 = vcmask 916480
    %v4506 = vsel %vm4505, %v4504, %v4492
    %v4508 = vsel %vm3683, %v3852, 0
    %4510 = vmatprep.subr.mxu0 0.0
    %4511 = vmatpush1.msra.mxu0 %v2435
    %4512 = vmatprep.subr.mxu0 0.0
    %4513 = vmatpush1.msra.mxu0 0.0
    %4514 = vmatprep.subr.mxu0 0.0
    %4515 = vmatpush1.msra.mxu0 0.0
    %4516 = vmatprep.subr.mxu0 0.0
    %4517 = vmatpush1.msra.mxu0 0.0
    %4518 = vmatprep.subr.mxu0 0.0
    %4519 = vmatpush1.msra.mxu0 0.0
    %4520 = vmatprep.subr.mxu0 0.0
    %4521 = vmatpush1.msra.mxu0 0.0
    %4522 = vmatprep.subr.mxu0 0.0
    %4523 = vmatpush1.msra.mxu0 0.0
    %4524 = vmatprep.subr.mxu0 0.0
    %4525 = vmatpush1.msra.mxu0 0.0
    %4526 = vmatprep.subr.mxu0 0.0
    %4527 = vmatpush1.msra.mxu0 0.0
    %4528 = vmatprep.subr.mxu0 0.0
    %4529 = vmatpush1.msra.mxu0 0.0
    %4530 = vmatprep.subr.mxu0 0.0
    %4531 = vmatpush1.msra.mxu0 0.0
    %4532 = vmatprep.subr.mxu0 0.0
    %4533 = vmatpush1.msra.mxu0 0.0
    %4534 = vmatprep.subr.mxu0 0.0
    %4535 = vmatpush1.msra.mxu0 0.0
    %4536 = vmatprep.subr.mxu0 0.0
    %4537 = vmatpush1.msra.mxu0 0.0
    %4538 = vmatprep.subr.mxu0 0.0
    %4539 = vmatpush1.msra.mxu0 0.0
    %4540 = vmatprep.subr.mxu0 0.0
    %4541 = vmatpush1.msra.mxu0 0.0
    %4542 = vmatprep.subr.mxu0 0.0
    %4543 = vmatpush1.msra.mxu0 0.0
    %4544 = vmatprep.subr.mxu0 0.0
    %4545 = vmatpush1.msra.mxu0 0.0
    %4546 = vmatprep.subr.mxu0 0.0
    %4547 = vmatpush1.msra.mxu0 0.0
    %4548 = vmatprep.subr.mxu0 0.0
    %4549 = vmatpush1.msra.mxu0 0.0
    %4550 = vmatprep.subr.mxu0 0.0
    %4551 = vmatpush1.msra.mxu0 0.0
    %4552 = vmatprep.subr.mxu0 0.0
    %4553 = vmatpush1.msra.mxu0 0.0
    %4554 = vmatprep.subr.mxu0 0.0
    %4555 = vmatpush1.msra.mxu0 0.0
    %4556 = vmatprep.subr.mxu0 0.0
    %4557 = vmatpush1.msra.mxu0 0.0
    %4558 = vmatprep.subr.mxu0 0.0
    %4559 = vmatpush1.msra.mxu0 0.0
    %4560 = vmatprep.subr.mxu0 0.0
    %4561 = vmatpush1.msra.mxu0 0.0
    %4562 = vmatprep.subr.mxu0 0.0
    %4563 = vmatpush1.msra.mxu0 0.0
    %4564 = vmatprep.subr.mxu0 0.0
    %4565 = vmatpush1.msra.mxu0 0.0
    %4566 = vmatprep.subr.mxu0 0.0
    %4567 = vmatpush1.msra.mxu0 0.0
    %4568 = vmatprep.subr.mxu0 0.0
    %4569 = vmatpush1.msra.mxu0 0.0
    %4570 = vmatprep.subr.mxu0 0.0
    %4571 = vmatpush1.msra.mxu0 0.0
    %4572 = vmatprep.subr.mxu0 0.0
    %4573 = vmatpush1.msra.mxu0 0.0
    %4574 = vmatprep.mubr.f32.mxu0 0.0
    %4575 = vmatmul.mubr.f32.gmra.mrb[0].mxu0 %v4508
    %v4576 = vpop.f32.mrb[0].mxu0
    %v4577 = vadd.f32 0.0, %v4576
    %v4578 = vpop.f32.mrb[0].mxu0
    %4579 = vdwg.mxu0
    %4581 = vrot.lane.b32.xlu0 %v2435, 112
    %v4582 = vpop.permute.xlu0 %4581
    %v4585 = vsel %vm3683, %v3853, 0
    %4587 = vmatprep.subr.mxu0 0.0
    %4588 = vmatpush1.msra.mxu0 %v4582
    %4589 = vmatprep.subr.mxu0 0.0
    %4590 = vmatpush1.msra.mxu0 0.0
    %4591 = vmatprep.subr.mxu0 0.0
    %4592 = vmatpush1.msra.mxu0 0.0
    %4593 = vmatprep.subr.mxu0 0.0
    %4594 = vmatpush1.msra.mxu0 0.0
    %4595 = vmatprep.subr.mxu0 0.0
    %4596 = vmatpush1.msra.mxu0 0.0
    %4597 = vmatprep.subr.mxu0 0.0
    %4598 = vmatpush1.msra.mxu0 0.0
    %4599 = vmatprep.subr.mxu0 0.0
    %4600 = vmatpush1.msra.mxu0 0.0
    %4601 = vmatprep.subr.mxu0 0.0
    %4602 = vmatpush1.msra.mxu0 0.0
    %4603 = vmatprep.subr.mxu0 0.0
    %4604 = vmatpush1.msra.mxu0 0.0
    %4605 = vmatprep.subr.mxu0 0.0
    %4606 = vmatpush1.msra.mxu0 0.0
    %4607 = vmatprep.subr.mxu0 0.0
    %4608 = vmatpush1.msra.mxu0 0.0
    %4609 = vmatprep.subr.mxu0 0.0
    %4610 = vmatpush1.msra.mxu0 0.0
    %4611 = vmatprep.subr.mxu0 0.0
    %4612 = vmatpush1.msra.mxu0 0.0
    %4613 = vmatprep.subr.mxu0 0.0
    %4614 = vmatpush1.msra.mxu0 0.0
    %4615 = vmatprep.subr.mxu0 0.0
    %4616 = vmatpush1.msra.mxu0 0.0
    %4617 = vmatprep.subr.mxu0 0.0
    %4618 = vmatpush1.msra.mxu0 0.0
    %4619 = vmatprep.subr.mxu0 0.0
    %4620 = vmatpush1.msra.mxu0 0.0
    %4621 = vmatprep.subr.mxu0 0.0
    %4622 = vmatpush1.msra.mxu0 0.0
    %4623 = vmatprep.subr.mxu0 0.0
    %4624 = vmatpush1.msra.mxu0 0.0
    %4625 = vmatprep.subr.mxu0 0.0
    %4626 = vmatpush1.msra.mxu0 0.0
    %4627 = vmatprep.subr.mxu0 0.0
    %4628 = vmatpush1.msra.mxu0 0.0
    %4629 = vmatprep.subr.mxu0 0.0
    %4630 = vmatpush1.msra.mxu0 0.0
    %4631 = vmatprep.subr.mxu0 0.0
    %4632 = vmatpush1.msra.mxu0 0.0
    %4633 = vmatprep.subr.mxu0 0.0
    %4634 = vmatpush1.msra.mxu0 0.0
    %4635 = vmatprep.subr.mxu0 0.0
    %4636 = vmatpush1.msra.mxu0 0.0
    %4637 = vmatprep.subr.mxu0 0.0
    %4638 = vmatpush1.msra.mxu0 0.0
    %4639 = vmatprep.subr.mxu0 0.0
    %4640 = vmatpush1.msra.mxu0 0.0
    %4641 = vmatprep.subr.mxu0 0.0
    %4642 = vmatpush1.msra.mxu0 0.0
    %4643 = vmatprep.subr.mxu0 0.0
    %4644 = vmatpush1.msra.mxu0 0.0
    %4645 = vmatprep.subr.mxu0 0.0
    %4646 = vmatpush1.msra.mxu0 0.0
    %4647 = vmatprep.subr.mxu0 0.0
    %4648 = vmatpush1.msra.mxu0 0.0
    %4649 = vmatprep.subr.mxu0 0.0
    %4650 = vmatpush1.msra.mxu0 0.0
    %4651 = vmatprep.mubr.f32.mxu0 0.0
    %4652 = vmatmul.mubr.f32.gmra.mrb[0].mxu0 %v4585
    %v4653 = vpop.f32.mrb[0].mxu0
    %v4654 = vadd.f32 0.0, %v4653
    %v4655 = vpop.f32.mrb[0].mxu0
    %4656 = vdwg.mxu0
    %4657 = vrot.lane.b32.xlu0 %v2435, 96
    %v4658 = vpop.permute.xlu0 %4657
    %v4661 = vsel %vm3683, %v3854, 0
    %4663 = vmatprep.subr.mxu0 0.0
    %4664 = vmatpush1.msra.mxu0 %v4658
    %4665 = vmatprep.subr.mxu0 0.0
    %4666 = vmatpush1.msra.mxu0 0.0
    %4667 = vmatprep.subr.mxu0 0.0
    %4668 = vmatpush1.msra.mxu0 0.0
    %4669 = vmatprep.subr.mxu0 0.0
    %4670 = vmatpush1.msra.mxu0 0.0
    %4671 = vmatprep.subr.mxu0 0.0
    %4672 = vmatpush1.msra.mxu0 0.0
    %4673 = vmatprep.subr.mxu0 0.0
    %4674 = vmatpush1.msra.mxu0 0.0
    %4675 = vmatprep.subr.mxu0 0.0
    %4676 = vmatpush1.msra.mxu0 0.0
    %4677 = vmatprep.subr.mxu0 0.0
    %4678 = vmatpush1.msra.mxu0 0.0
    %4679 = vmatprep.subr.mxu0 0.0
    %4680 = vmatpush1.msra.mxu0 0.0
    %4681 = vmatprep.subr.mxu0 0.0
    %4682 = vmatpush1.msra.mxu0 0.0
    %4683 = vmatprep.subr.mxu0 0.0
    %4684 = vmatpush1.msra.mxu0 0.0
    %4685 = vmatprep.subr.mxu0 0.0
    %4686 = vmatpush1.msra.mxu0 0.0
    %4687 = vmatprep.subr.mxu0 0.0
    %4688 = vmatpush1.msra.mxu0 0.0
    %4689 = vmatprep.subr.mxu0 0.0
    %4690 = vmatpush1.msra.mxu0 0.0
    %4691 = vmatprep.subr.mxu0 0.0
    %4692 = vmatpush1.msra.mxu0 0.0
    %4693 = vmatprep.subr.mxu0 0.0
    %4694 = vmatpush1.msra.mxu0 0.0
    %4695 = vmatprep.subr.mxu0 0.0
    %4696 = vmatpush1.msra.mxu0 0.0
    %4697 = vmatprep.subr.mxu0 0.0
    %4698 = vmatpush1.msra.mxu0 0.0
    %4699 = vmatprep.subr.mxu0 0.0
    %4700 = vmatpush1.msra.mxu0 0.0
    %4701 = vmatprep.subr.mxu0 0.0
    %4702 = vmatpush1.msra.mxu0 0.0
    %4703 = vmatprep.subr.mxu0 0.0
    %4704 = vmatpush1.msra.mxu0 0.0
    %4705 = vmatprep.subr.mxu0 0.0
    %4706 = vmatpush1.msra.mxu0 0.0
    %4707 = vmatprep.subr.mxu0 0.0
    %4708 = vmatpush1.msra.mxu0 0.0
    %4709 = vmatprep.subr.mxu0 0.0
    %4710 = vmatpush1.msra.mxu0 0.0
    %4711 = vmatprep.subr.mxu0 0.0
    %4712 = vmatpush1.msra.mxu0 0.0
    %4713 = vmatprep.subr.mxu0 0.0
    %4714 = vmatpush1.msra.mxu0 0.0
    %4715 = vmatprep.subr.mxu0 0.0
    %4716 = vmatpush1.msra.mxu0 0.0
    %4717 = vmatprep.subr.mxu0 0.0
    %4718 = vmatpush1.msra.mxu0 0.0
    %4719 = vmatprep.subr.mxu0 0.0
    %4720 = vmatpush1.msra.mxu0 0.0
    %4721 = vmatprep.subr.mxu0 0.0
    %4722 = vmatpush1.msra.mxu0 0.0
    %4723 = vmatprep.subr.mxu0 0.0
    %4724 = vmatpush1.msra.mxu0 0.0
    %4725 = vmatprep.subr.mxu0 0.0
    %4726 = vmatpush1.msra.mxu0 0.0
    %4727 = vmatprep.mubr.f32.mxu0 0.0
    %4728 = vmatmul.mubr.f32.gmra.mrb[0].mxu0 %v4661
    %v4729 = vpop.f32.mrb[0].mxu0
    %v4730 = vadd.f32 0.0, %v4729
    %v4731 = vpop.f32.mrb[0].mxu0
    %4732 = vdwg.mxu0
    %4733 = vrot.lane.b32.xlu0 %v2435, 80
    %v4734 = vpop.permute.xlu0 %4733
    %v4737 = vsel %vm3683, %v3855, 0
    %4739 = vmatprep.subr.mxu0 0.0
    %4740 = vmatpush1.msra.mxu0 %v4734
    %4741 = vmatprep.subr.mxu0 0.0
    %4742 = vmatpush1.msra.mxu0 0.0
    %4743 = vmatprep.subr.mxu0 0.0
    %4744 = vmatpush1.msra.mxu0 0.0
    %4745 = vmatprep.subr.mxu0 0.0
    %4746 = vmatpush1.msra.mxu0 0.0
    %4747 = vmatprep.subr.mxu0 0.0
    %4748 = vmatpush1.msra.mxu0 0.0
    %4749 = vmatprep.subr.mxu0 0.0
    %4750 = vmatpush1.msra.mxu0 0.0
    %4751 = vmatprep.subr.mxu0 0.0
    %4752 = vmatpush1.msra.mxu0 0.0
    %4753 = vmatprep.subr.mxu0 0.0
    %4754 = vmatpush1.msra.mxu0 0.0
    %4755 = vmatprep.subr.mxu0 0.0
    %4756 = vmatpush1.msra.mxu0 0.0
    %4757 = vmatprep.subr.mxu0 0.0
    %4758 = vmatpush1.msra.mxu0 0.0
    %4759 = vmatprep.subr.mxu0 0.0
    %4760 = vmatpush1.msra.mxu0 0.0
    %4761 = vmatprep.subr.mxu0 0.0
    %4762 = vmatpush1.msra.mxu0 0.0
    %4763 = vmatprep.subr.mxu0 0.0
    %4764 = vmatpush1.msra.mxu0 0.0
    %4765 = vmatprep.subr.mxu0 0.0
    %4766 = vmatpush1.msra.mxu0 0.0
    %4767 = vmatprep.subr.mxu0 0.0
    %4768 = vmatpush1.msra.mxu0 0.0
    %4769 = vmatprep.subr.mxu0 0.0
    %4770 = vmatpush1.msra.mxu0 0.0
    %4771 = vmatprep.subr.mxu0 0.0
    %4772 = vmatpush1.msra.mxu0 0.0
    %4773 = vmatprep.subr.mxu0 0.0
    %4774 = vmatpush1.msra.mxu0 0.0
    %4775 = vmatprep.subr.mxu0 0.0
    %4776 = vmatpush1.msra.mxu0 0.0
    %4777 = vmatprep.subr.mxu0 0.0
    %4778 = vmatpush1.msra.mxu0 0.0
    %4779 = vmatprep.subr.mxu0 0.0
    %4780 = vmatpush1.msra.mxu0 0.0
    %4781 = vmatprep.subr.mxu0 0.0
    %4782 = vmatpush1.msra.mxu0 0.0
    %4783 = vmatprep.subr.mxu0 0.0
    %4784 = vmatpush1.msra.mxu0 0.0
    %4785 = vmatprep.subr.mxu0 0.0
    %4786 = vmatpush1.msra.mxu0 0.0
    %4787 = vmatprep.subr.mxu0 0.0
    %4788 = vmatpush1.msra.mxu0 0.0
    %4789 = vmatprep.subr.mxu0 0.0
    %4790 = vmatpush1.msra.mxu0 0.0
    %4791 = vmatprep.subr.mxu0 0.0
    %4792 = vmatpush1.msra.mxu0 0.0
    %4793 = vmatprep.subr.mxu0 0.0
    %4794 = vmatpush1.msra.mxu0 0.0
    %4795 = vmatprep.subr.mxu0 0.0
    %4796 = vmatpush1.msra.mxu0 0.0
    %4797 = vmatprep.subr.mxu0 0.0
    %4798 = vmatpush1.msra.mxu0 0.0
    %4799 = vmatprep.subr.mxu0 0.0
    %4800 = vmatpush1.msra.mxu0 0.0
    %4801 = vmatprep.subr.mxu0 0.0
    %4802 = vmatpush1.msra.mxu0 0.0
    %4803 = vmatprep.mubr.f32.mxu0 0.0
    %4804 = vmatmul.mubr.f32.gmra.mrb[0].mxu0 %v4737
    %v4805 = vpop.f32.mrb[0].mxu0
    %v4806 = vadd.f32 0.0, %v4805
    %v4807 = vpop.f32.mrb[0].mxu0
    %4808 = vdwg.mxu0
    %4809 = vrot.lane.b32.xlu0 %v2435, 64
    %v4810 = vpop.permute.xlu0 %4809
    %v4813 = vsel %vm3683, %v3856, 0
    %4815 = vmatprep.subr.mxu0 0.0
    %4816 = vmatpush1.msra.mxu0 %v4810
    %4817 = vmatprep.subr.mxu0 0.0
    %4818 = vmatpush1.msra.mxu0 0.0
    %4819 = vmatprep.subr.mxu0 0.0
    %4820 = vmatpush1.msra.mxu0 0.0
    %4821 = vmatprep.subr.mxu0 0.0
    %4822 = vmatpush1.msra.mxu0 0.0
    %4823 = vmatprep.subr.mxu0 0.0
    %4824 = vmatpush1.msra.mxu0 0.0
    %4825 = vmatprep.subr.mxu0 0.0
    %4826 = vmatpush1.msra.mxu0 0.0
    %4827 = vmatprep.subr.mxu0 0.0
    %4828 = vmatpush1.msra.mxu0 0.0
    %4829 = vmatprep.subr.mxu0 0.0
    %4830 = vmatpush1.msra.mxu0 0.0
    %4831 = vmatprep.subr.mxu0 0.0
    %4832 = vmatpush1.msra.mxu0 0.0
    %4833 = vmatprep.subr.mxu0 0.0
    %4834 = vmatpush1.msra.mxu0 0.0
    %4835 = vmatprep.subr.mxu0 0.0
    %4836 = vmatpush1.msra.mxu0 0.0
    %4837 = vmatprep.subr.mxu0 0.0
    %4838 = vmatpush1.msra.mxu0 0.0
    %4839 = vmatprep.subr.mxu0 0.0
    %4840 = vmatpush1.msra.mxu0 0.0
    %4841 = vmatprep.subr.mxu0 0.0
    %4842 = vmatpush1.msra.mxu0 0.0
    %4843 = vmatprep.subr.mxu0 0.0
    %4844 = vmatpush1.msra.mxu0 0.0
    %4845 = vmatprep.subr.mxu0 0.0
    %4846 = vmatpush1.msra.mxu0 0.0
    %4847 = vmatprep.subr.mxu0 0.0
    %4848 = vmatpush1.msra.mxu0 0.0
    %4849 = vmatprep.subr.mxu0 0.0
    %4850 = vmatpush1.msra.mxu0 0.0
    %4851 = vmatprep.subr.mxu0 0.0
    %4852 = vmatpush1.msra.mxu0 0.0
    %4853 = vmatprep.subr.mxu0 0.0
    %4854 = vmatpush1.msra.mxu0 0.0
    %4855 = vmatprep.subr.mxu0 0.0
    %4856 = vmatpush1.msra.mxu0 0.0
    %4857 = vmatprep.subr.mxu0 0.0
    %4858 = vmatpush1.msra.mxu0 0.0
    %4859 = vmatprep.subr.mxu0 0.0
    %4860 = vmatpush1.msra.mxu0 0.0
    %4861 = vmatprep.subr.mxu0 0.0
    %4862 = vmatpush1.msra.mxu0 0.0
    %4863 = vmatprep.subr.mxu0 0.0
    %4864 = vmatpush1.msra.mxu0 0.0
    %4865 = vmatprep.subr.mxu0 0.0
    %4866 = vmatpush1.msra.mxu0 0.0
    %4867 = vmatprep.subr.mxu0 0.0
    %4868 = vmatpush1.msra.mxu0 0.0
    %4869 = vmatprep.subr.mxu0 0.0
    %4870 = vmatpush1.msra.mxu0 0.0
    %4871 = vmatprep.subr.mxu0 0.0
    %4872 = vmatpush1.msra.mxu0 0.0
    %4873 = vmatprep.subr.mxu0 0.0
    %4874 = vmatpush1.msra.mxu0 0.0
    %4875 = vmatprep.subr.mxu0 0.0
    %4876 = vmatpush1.msra.mxu0 0.0
    %4877 = vmatprep.subr.mxu0 0.0
    %4878 = vmatpush1.msra.mxu0 0.0
    %4879 = vmatprep.mubr.f32.mxu0 0.0
    %4880 = vmatmul.mubr.f32.gmra.mrb[0].mxu0 %v4813
    %v4881 = vpop.f32.mrb[0].mxu0
    %v4882 = vadd.f32 0.0, %v4881
    %v4883 = vpop.f32.mrb[0].mxu0
    %4884 = vdwg.mxu0
    %4885 = vrot.lane.b32.xlu0 %v2435, 48
    %v4886 = vpop.permute.xlu0 %4885
    %v4889 = vsel %vm3683, %v3857, 0
    %4891 = vmatprep.subr.mxu0 0.0
    %4892 = vmatpush1.msra.mxu0 %v4886
    %4893 = vmatprep.subr.mxu0 0.0
    %4894 = vmatpush1.msra.mxu0 0.0
    %4895 = vmatprep.subr.mxu0 0.0
    %4896 = vmatpush1.msra.mxu0 0.0
    %4897 = vmatprep.subr.mxu0 0.0
    %4898 = vmatpush1.msra.mxu0 0.0
    %4899 = vmatprep.subr.mxu0 0.0
    %4900 = vmatpush1.msra.mxu0 0.0
    %4901 = vmatprep.subr.mxu0 0.0
    %4902 = vmatpush1.msra.mxu0 0.0
    %4903 = vmatprep.subr.mxu0 0.0
    %4904 = vmatpush1.msra.mxu0 0.0
    %4905 = vmatprep.subr.mxu0 0.0
    %4906 = vmatpush1.msra.mxu0 0.0
    %4907 = vmatprep.subr.mxu0 0.0
    %4908 = vmatpush1.msra.mxu0 0.0
    %4909 = vmatprep.subr.mxu0 0.0
    %4910 = vmatpush1.msra.mxu0 0.0
    %4911 = vmatprep.subr.mxu0 0.0
    %4912 = vmatpush1.msra.mxu0 0.0
    %4913 = vmatprep.subr.mxu0 0.0
    %4914 = vmatpush1.msra.mxu0 0.0
    %4915 = vmatprep.subr.mxu0 0.0
    %4916 = vmatpush1.msra.mxu0 0.0
    %4917 = vmatprep.subr.mxu0 0.0
    %4918 = vmatpush1.msra.mxu0 0.0
    %4919 = vmatprep.subr.mxu0 0.0
    %4920 = vmatpush1.msra.mxu0 0.0
    %4921 = vmatprep.subr.mxu0 0.0
    %4922 = vmatpush1.msra.mxu0 0.0
    %4923 = vmatprep.subr.mxu0 0.0
    %4924 = vmatpush1.msra.mxu0 0.0
    %4925 = vmatprep.subr.mxu0 0.0
    %4926 = vmatpush1.msra.mxu0 0.0
    %4927 = vmatprep.subr.mxu0 0.0
    %4928 = vmatpush1.msra.mxu0 0.0
    %4929 = vmatprep.subr.mxu0 0.0
    %4930 = vmatpush1.msra.mxu0 0.0
    %4931 = vmatprep.subr.mxu0 0.0
    %4932 = vmatpush1.msra.mxu0 0.0
    %4933 = vmatprep.subr.mxu0 0.0
    %4934 = vmatpush1.msra.mxu0 0.0
    %4935 = vmatprep.subr.mxu0 0.0
    %4936 = vmatpush1.msra.mxu0 0.0
    %4937 = vmatprep.subr.mxu0 0.0
    %4938 = vmatpush1.msra.mxu0 0.0
    %4939 = vmatprep.subr.mxu0 0.0
    %4940 = vmatpush1.msra.mxu0 0.0
    %4941 = vmatprep.subr.mxu0 0.0
    %4942 = vmatpush1.msra.mxu0 0.0
    %4943 = vmatprep.subr.mxu0 0.0
    %4944 = vmatpush1.msra.mxu0 0.0
    %4945 = vmatprep.subr.mxu0 0.0
    %4946 = vmatpush1.msra.mxu0 0.0
    %4947 = vmatprep.subr.mxu0 0.0
    %4948 = vmatpush1.msra.mxu0 0.0
    %4949 = vmatprep.subr.mxu0 0.0
    %4950 = vmatpush1.msra.mxu0 0.0
    %4951 = vmatprep.subr.mxu0 0.0
    %4952 = vmatpush1.msra.mxu0 0.0
    %4953 = vmatprep.subr.mxu0 0.0
    %4954 = vmatpush1.msra.mxu0 0.0
    %4955 = vmatprep.mubr.f32.mxu0 0.0
    %4956 = vmatmul.mubr.f32.gmra.mrb[0].mxu0 %v4889
    %v4957 = vpop.f32.mrb[0].mxu0
    %v4958 = vadd.f32 0.0, %v4957
    %v4959 = vpop.f32.mrb[0].mxu0
    %4960 = vdwg.mxu0
    %4961 = vrot.lane.b32.xlu0 %v2435, 32
    %v4962 = vpop.permute.xlu0 %4961
    %v4965 = vsel %vm3683, %v3858, 0
    %4967 = vmatprep.subr.mxu0 0.0
    %4968 = vmatpush1.msra.mxu0 %v4962
    %4969 = vmatprep.subr.mxu0 0.0
    %4970 = vmatpush1.msra.mxu0 0.0
    %4971 = vmatprep.subr.mxu0 0.0
    %4972 = vmatpush1.msra.mxu0 0.0
    %4973 = vmatprep.subr.mxu0 0.0
    %4974 = vmatpush1.msra.mxu0 0.0
    %4975 = vmatprep.subr.mxu0 0.0
    %4976 = vmatpush1.msra.mxu0 0.0
    %4977 = vmatprep.subr.mxu0 0.0
    %4978 = vmatpush1.msra.mxu0 0.0
    %4979 = vmatprep.subr.mxu0 0.0
    %4980 = vmatpush1.msra.mxu0 0.0
    %4981 = vmatprep.subr.mxu0 0.0
    %4982 = vmatpush1.msra.mxu0 0.0
    %4983 = vmatprep.subr.mxu0 0.0
    %4984 = vmatpush1.msra.mxu0 0.0
    %4985 = vmatprep.subr.mxu0 0.0
    %4986 = vmatpush1.msra.mxu0 0.0
    %4987 = vmatprep.subr.mxu0 0.0
    %4988 = vmatpush1.msra.mxu0 0.0
    %4989 = vmatprep.subr.mxu0 0.0
    %4990 = vmatpush1.msra.mxu0 0.0
    %4991 = vmatprep.subr.mxu0 0.0
    %4992 = vmatpush1.msra.mxu0 0.0
    %4993 = vmatprep.subr.mxu0 0.0
    %4994 = vmatpush1.msra.mxu0 0.0
    %4995 = vmatprep.subr.mxu0 0.0
    %4996 = vmatpush1.msra.mxu0 0.0
    %4997 = vmatprep.subr.mxu0 0.0
    %4998 = vmatpush1.msra.mxu0 0.0
    %4999 = vmatprep.subr.mxu0 0.0
    %5000 = vmatpush1.msra.mxu0 0.0
    %5001 = vmatprep.subr.mxu0 0.0
    %5002 = vmatpush1.msra.mxu0 0.0
    %5003 = vmatprep.subr.mxu0 0.0
    %5004 = vmatpush1.msra.mxu0 0.0
    %5005 = vmatprep.subr.mxu0 0.0
    %5006 = vmatpush1.msra.mxu0 0.0
    %5007 = vmatprep.subr.mxu0 0.0
    %5008 = vmatpush1.msra.mxu0 0.0
    %5009 = vmatprep.subr.mxu0 0.0
    %5010 = vmatpush1.msra.mxu0 0.0
    %5011 = vmatprep.subr.mxu0 0.0
    %5012 = vmatpush1.msra.mxu0 0.0
    %5013 = vmatprep.subr.mxu0 0.0
    %5014 = vmatpush1.msra.mxu0 0.0
    %5015 = vmatprep.subr.mxu0 0.0
    %5016 = vmatpush1.msra.mxu0 0.0
    %5017 = vmatprep.subr.mxu0 0.0
    %5018 = vmatpush1.msra.mxu0 0.0
    %5019 = vmatprep.subr.mxu0 0.0
    %5020 = vmatpush1.msra.mxu0 0.0
    %5021 = vmatprep.subr.mxu0 0.0
    %5022 = vmatpush1.msra.mxu0 0.0
    %5023 = vmatprep.subr.mxu0 0.0
    %5024 = vmatpush1.msra.mxu0 0.0
    %5025 = vmatprep.subr.mxu0 0.0
    %5026 = vmatpush1.msra.mxu0 0.0
    %5027 = vmatprep.subr.mxu0 0.0
    %5028 = vmatpush1.msra.mxu0 0.0
    %5029 = vmatprep.subr.mxu0 0.0
    %5030 = vmatpush1.msra.mxu0 0.0
    %5031 = vmatprep.mubr.f32.mxu0 0.0
    %5032 = vmatmul.mubr.f32.gmra.mrb[0].mxu0 %v4965
    %v5033 = vpop.f32.mrb[0].mxu0
    %v5034 = vadd.f32 0.0, %v5033
    %v5035 = vpop.f32.mrb[0].mxu0
    %5036 = vdwg.mxu0
    %5037 = vrot.lane.b32.xlu0 %v2435, 16
    %v5038 = vpop.permute.xlu0 %5037
    %v5041 = vsel %vm3683, %v3859, 0
    %5043 = vmatprep.subr.mxu0 0.0
    %5044 = vmatpush1.msra.mxu0 %v5038
    %5045 = vmatprep.subr.mxu0 0.0
    %5046 = vmatpush1.msra.mxu0 0.0
    %5047 = vmatprep.subr.mxu0 0.0
    %5048 = vmatpush1.msra.mxu0 0.0
    %5049 = vmatprep.subr.mxu0 0.0
    %5050 = vmatpush1.msra.mxu0 0.0
    %5051 = vmatprep.subr.mxu0 0.0
    %5052 = vmatpush1.msra.mxu0 0.0
    %5053 = vmatprep.subr.mxu0 0.0
    %5054 = vmatpush1.msra.mxu0 0.0
    %5055 = vmatprep.subr.mxu0 0.0
    %5056 = vmatpush1.msra.mxu0 0.0
    %5057 = vmatprep.subr.mxu0 0.0
    %5058 = vmatpush1.msra.mxu0 0.0
    %5059 = vmatprep.subr.mxu0 0.0
    %5060 = vmatpush1.msra.mxu0 0.0
    %5061 = vmatprep.subr.mxu0 0.0
    %5062 = vmatpush1.msra.mxu0 0.0
    %5063 = vmatprep.subr.mxu0 0.0
    %5064 = vmatpush1.msra.mxu0 0.0
    %5065 = vmatprep.subr.mxu0 0.0
    %5066 = vmatpush1.msra.mxu0 0.0
    %5067 = vmatprep.subr.mxu0 0.0
    %5068 = vmatpush1.msra.mxu0 0.0
    %5069 = vmatprep.subr.mxu0 0.0
    %5070 = vmatpush1.msra.mxu0 0.0
    %5071 = vmatprep.subr.mxu0 0.0
    %5072 = vmatpush1.msra.mxu0 0.0
    %5073 = vmatprep.subr.mxu0 0.0
    %5074 = vmatpush1.msra.mxu0 0.0
    %5075 = vmatprep.subr.mxu0 0.0
    %5076 = vmatpush1.msra.mxu0 0.0
    %5077 = vmatprep.subr.mxu0 0.0
    %5078 = vmatpush1.msra.mxu0 0.0
    %5079 = vmatprep.subr.mxu0 0.0
    %5080 = vmatpush1.msra.mxu0 0.0
    %5081 = vmatprep.subr.mxu0 0.0
    %5082 = vmatpush1.msra.mxu0 0.0
    %5083 = vmatprep.subr.mxu0 0.0
    %5084 = vmatpush1.msra.mxu0 0.0
    %5085 = vmatprep.subr.mxu0 0.0
    %5086 = vmatpush1.msra.mxu0 0.0
    %5087 = vmatprep.subr.mxu0 0.0
    %5088 = vmatpush1.msra.mxu0 0.0
    %5089 = vmatprep.subr.mxu0 0.0
    %5090 = vmatpush1.msra.mxu0 0.0
    %5091 = vmatprep.subr.mxu0 0.0
    %5092 = vmatpush1.msra.mxu0 0.0
    %5093 = vmatprep.subr.mxu0 0.0
    %5094 = vmatpush1.msra.mxu0 0.0
    %5095 = vmatprep.subr.mxu0 0.0
    %5096 = vmatpush1.msra.mxu0 0.0
    %5097 = vmatprep.subr.mxu0 0.0
    %5098 = vmatpush1.msra.mxu0 0.0
    %5099 = vmatprep.subr.mxu0 0.0
    %5100 = vmatpush1.msra.mxu0 0.0
    %5101 = vmatprep.subr.mxu0 0.0
    %5102 = vmatpush1.msra.mxu0 0.0
    %5103 = vmatprep.subr.mxu0 0.0
    %5104 = vmatpush1.msra.mxu0 0.0
    %5105 = vmatprep.subr.mxu0 0.0
    %5106 = vmatpush1.msra.mxu0 0.0
    %5107 = vmatprep.mubr.f32.mxu0 0.0
    %5108 = vmatmul.mubr.f32.gmra.mrb[0].mxu0 %v5041
    %v5109 = vpop.f32.mrb[0].mxu0
    %v5110 = vadd.f32 0.0, %v5109
    %v5111 = vpop.f32.mrb[0].mxu0
    %5112 = vdwg.mxu0
    %5114 = vrot.lane.b32.xlu0 %v4654, 16
    %v5115 = vpop.permute.xlu0 %5114
    %5118 = vrot.lane.b32.xlu0 %v4730, 32
    %v5119 = vpop.permute.xlu0 %5118
    %5122 = vrot.lane.b32.xlu0 %v4806, 48
    %v5123 = vpop.permute.xlu0 %5122
    %5126 = vrot.lane.b32.xlu0 %v4882, 64
    %v5127 = vpop.permute.xlu0 %5126
    %5130 = vrot.lane.b32.xlu0 %v4958, 80
    %v5131 = vpop.permute.xlu0 %5130
    %5134 = vrot.lane.b32.xlu0 %v5034, 96
    %v5135 = vpop.permute.xlu0 %5134
    %5138 = vrot.lane.b32.xlu0 %v5110, 112
    %v5139 = vpop.permute.xlu0 %5138
    %v5141 = vsel %vm2438, %v4577, %v5115
    %v5142 = vsel %vm4495, %v5141, %v5119
    %v5143 = vsel %vm4497, %v5142, %v5123
    %v5144 = vsel %vm4499, %v5143, %v5127
    %v5145 = vsel %vm4501, %v5144, %v5131
    %v5146 = vsel %vm4503, %v5145, %v5135
    %v5147 = vsel %vm4505, %v5146, %v5139
    %v5148 = vld [vmem:[#allocation10] sm:$0xff]
    %v5149 = vld [vmem:[#allocation10 + $0x8] sm:$0xff]
    %v5150 = vld [vmem:[#allocation10 + $0x10] sm:$0xff]
    %v5151 = vld [vmem:[#allocation10 + $0x18] sm:$0xff]
    %v5152 = vld [vmem:[#allocation10 + $0x20] sm:$0xff]
    %v5153 = vld [vmem:[#allocation10 + $0x28] sm:$0xff]
    %v5154 = vld [vmem:[#allocation10 + $0x30] sm:$0xff]
    %v5155 = vld [vmem:[#allocation10 + $0x38] sm:$0xff]
    %v5156 = vld [vmem:[#allocation10 + $0x40] sm:$0xff]
    %v5157 = vld [vmem:[#allocation10 + $0x48] sm:$0xff]
    %v5158 = vld [vmem:[#allocation10 + $0x50] sm:$0xff]
    %v5159 = vld [vmem:[#allocation10 + $0x58] sm:$0xff]
    %v5160 = vld [vmem:[#allocation10 + $0x60] sm:$0xff]
    %v5161 = vld [vmem:[#allocation10 + $0x68] sm:$0xff]
    %v5162 = vld [vmem:[#allocation10 + $0x70] sm:$0xff]
    %v5163 = vld [vmem:[#allocation10 + $0x78] sm:$0xff]
    %v5164 = vld [vmem:[%s7] sm:$0x1]
    %v5166 = vlaneseq
    %v5167 = vshrl.u32 %v5166, 7
    %v5168 = vsub.s32 0, %v5167
    %v5169 = vrot.slane %v5164, %v5168
    %5171 = vmatprep.subr.mxu0 0.0
    %5172 = vmatpush1.msra.mxu0 %v5148
    %5173 = vmatprep.subr.mxu0 0.0
    %5174 = vmatpush1.msra.mxu0 %v5149
    %5175 = vmatprep.subr.mxu0 0.0
    %5176 = vmatpush1.msra.mxu0 %v5150
    %5177 = vmatprep.subr.mxu0 0.0
    %5178 = vmatpush1.msra.mxu0 %v5151
    %5179 = vmatprep.subr.mxu0 0.0
    %5180 = vmatpush1.msra.mxu0 %v5152
    %5181 = vmatprep.subr.mxu0 0.0
    %5182 = vmatpush1.msra.mxu0 %v5153
    %5183 = vmatprep.subr.mxu0 0.0
    %5184 = vmatpush1.msra.mxu0 %v5154
    %5185 = vmatprep.subr.mxu0 0.0
    %5186 = vmatpush1.msra.mxu0 %v5155
    %5187 = vmatprep.subr.mxu0 0.0
    %5188 = vmatpush1.msra.mxu0 %v5156
    %5189 = vmatprep.subr.mxu0 0.0
    %5190 = vmatpush1.msra.mxu0 %v5157
    %5191 = vmatprep.subr.mxu0 0.0
    %5192 = vmatpush1.msra.mxu0 %v5158
    %5193 = vmatprep.subr.mxu0 0.0
    %5194 = vmatpush1.msra.mxu0 %v5159
    %5195 = vmatprep.subr.mxu0 0.0
    %5196 = vmatpush1.msra.mxu0 %v5160
    %5197 = vmatprep.subr.mxu0 0.0
    %5198 = vmatpush1.msra.mxu0 %v5161
    %5199 = vmatprep.subr.mxu0 0.0
    %5200 = vmatpush1.msra.mxu0 %v5162
    %5201 = vmatprep.subr.mxu0 0.0
    %5202 = vmatpush1.msra.mxu0 %v5163
    %5203 = vmatprep.subr.mxu0 0.0
    %5204 = vmatpush1.msra.mxu0 0.0
    %5205 = vmatprep.subr.mxu0 0.0
    %5206 = vmatpush1.msra.mxu0 0.0
    %5207 = vmatprep.subr.mxu0 0.0
    %5208 = vmatpush1.msra.mxu0 0.0
    %5209 = vmatprep.subr.mxu0 0.0
    %5210 = vmatpush1.msra.mxu0 0.0
    %5211 = vmatprep.subr.mxu0 0.0
    %5212 = vmatpush1.msra.mxu0 0.0
    %5213 = vmatprep.subr.mxu0 0.0
    %5214 = vmatpush1.msra.mxu0 0.0
    %5215 = vmatprep.subr.mxu0 0.0
    %5216 = vmatpush1.msra.mxu0 0.0
    %5217 = vmatprep.subr.mxu0 0.0
    %5218 = vmatpush1.msra.mxu0 0.0
    %5219 = vmatprep.subr.mxu0 0.0
    %5220 = vmatpush1.msra.mxu0 0.0
    %5221 = vmatprep.subr.mxu0 0.0
    %5222 = vmatpush1.msra.mxu0 0.0
    %5223 = vmatprep.subr.mxu0 0.0
    %5224 = vmatpush1.msra.mxu0 0.0
    %5225 = vmatprep.subr.mxu0 0.0
    %5226 = vmatpush1.msra.mxu0 0.0
    %5227 = vmatprep.subr.mxu0 0.0
    %5228 = vmatpush1.msra.mxu0 0.0
    %5229 = vmatprep.subr.mxu0 0.0
    %5230 = vmatpush1.msra.mxu0 0.0
    %5231 = vmatprep.subr.mxu0 0.0
    %5232 = vmatpush1.msra.mxu0 0.0
    %5233 = vmatprep.subr.mxu0 0.0
    %5234 = vmatpush1.msra.mxu0 0.0
    %5235 = vmatprep.mubr.f32.mxu0 0.0
    %5236 = vmatmul.mubr.f32.gmra.mrb[0].mxu0 %v4506
    %v5237 = vpop.f32.mrb[0].mxu0
    %v5238 = vadd.f32 %v5169, %v5237
    %v5239 = vpop.f32.mrb[0].mxu0
    %5240 = vmatprep.mubr.f32.mxu0 0.0
    %5241 = vmatmul.mubr.f32.gmra.mrb[0].mxu0 %v5147
    %v5242 = vpop.f32.mrb[0].mxu0
    %v5243 = vadd.f32 %v5169, %v5242
    %v5244 = vpop.f32.mrb[0].mxu0
    %5245 = vdwg.mxu0
    %5246 = vst [vmem:[%s9] sm:$0xff] %v5238
    %5247 = vst [vmem:[%s9 + $0x8] sm:$0xff] %v5243
    // Predicated region
    $region54: #{model_forward.1} parent=1 // pred_check
      _
    $region55: #{model_forward.1} parent=1 // pred_check_branch
      %5249 = sbr.rel (0) target = $region57
    $region56: #{model_forward.1} parent=1 // pred_region
      %s5251 = ssub.s32 256, 256
      %5252 = vsyncadd [#allocation4], %s5251
      %s5253 = sshll.u32 [#allocation11], 4
      %s5254 = int_to_ptr.vmem [resolvable:$true] %s5253
      %5259 = dma.vmem_to_hbm [thread:$0]  %s5254, 256, %s8, [#allocation4], 128, 128, 8
    $region57: #{model_forward.1} parent=1 // pred_fallthru
      _
    // Predicated region
    $region58: #{model_forward.1} parent=1 // pred_check
      _
    $region59: #{model_forward.1} parent=1 // pred_check_branch
      %5261 = sbr.rel (0) target = $region61
    $region60: #{model_forward.1} parent=1 // pred_region
      _
    $region61: #{model_forward.1} parent=1 // pred_fallthru
      _
    // Predicated region
    $region62: #{model_forward.1} parent=1 // pred_check
      _
    $region63: #{model_forward.1} parent=1 // pred_check_branch
      %5263 = sbr.rel (0) target = $region65
    $region64: #{model_forward.1} parent=1 // pred_region
      %5264 = dma.done [#allocation4], 256
    $region65: #{model_forward.1} parent=1 // pred_fallthru
      _
    // Predicated region
    $region66: #{model_forward.1} parent=1 // pred_check
      _
    $region67: #{model_forward.1} parent=1 // pred_check_branch
      %5266 = sbr.rel (0) target = $region69
    $region68: #{model_forward.1} parent=1 // pred_region
      _
    $region69: #{model_forward.1} parent=1 // pred_fallthru
      _
    %5267 = vsyncpa [#allocation3], 1
    %5268 = vsyncpa [#allocation6], 1
    %5269 = vsyncpa [#allocation9], 1
    %5270 = vsyncpa [#allocation4], 1

</llo_original>
